<compile_context>
chip_gen: v5e
topology: v5e:2x2
jax: 0.10.0
libtpu: 0.0.40
codegen_flags: <defaults>
</compile_context>

<pallas_src>
import math
import functools

import jax
import jax.numpy as jnp
from jax import lax
from jax.experimental import pallas as pl
from jax.experimental.pallas import tpu as pltpu


# ----------------------------------------------------------------------------
# In-kernel helpers
# ----------------------------------------------------------------------------
def _layernorm(x, g, b, eps=1e-5):
    # PyTorch nn.LayerNorm semantics: biased variance over last dim, eps=1e-5.
    mu = jnp.mean(x, axis=-1, keepdims=True)
    var = jnp.mean(jnp.square(x - mu), axis=-1, keepdims=True)
    return (x - mu) * lax.rsqrt(var + eps) * g + b


def _erf_f32(x):
    # Exact-GELU erf: float32 rational approximation (mul/add/div only,
    # guaranteed to lower in Mosaic). Accurate to f32 like lax.erf.
    x = jnp.clip(x, -4.0, 4.0)
    x2 = x * x
    p = x2 * (-2.72614225801306e-10) + 2.77068142495902e-08
    p = x2 * p + (-2.10102402082508e-06)
    p = x2 * p + (-5.69250639462346e-05)
    p = x2 * p + (-7.34990630326855e-04)
    p = x2 * p + (-2.95459980854025e-03)
    p = x2 * p + (-1.60960333262415e-02)
    p = x * p
    q = x2 * (-1.45660718464996e-05) + (-2.13374055278905e-04)
    q = x2 * q + (-1.68282697438203e-03)
    q = x2 * q + (-7.37332916720468e-03)
    q = x2 * q + (-1.42647390514189e-02)
    return p / q


def _gelu_exact(x):
    # nn.GELU() default (approximate='none'): x * 0.5 * (1 + erf(x / sqrt(2)))
    return 0.5 * x * (1.0 + _erf_f32(x * (1.0 / math.sqrt(2.0))))


# ----------------------------------------------------------------------------
# Pallas kernels
# ----------------------------------------------------------------------------
def _linear_kernel(x_ref, w_ref, b_ref, o_ref):
    o_ref[...] = (
        jnp.dot(x_ref[...], w_ref[...], preferred_element_type=jnp.float32)
        + b_ref[...]
    ).astype(o_ref.dtype)


def linear_pallas(x2d, w, b, block_m=512):
    # Row-tiled y = x @ W + b.  For large M the 512-row blocks keep the
    # working set small and restore DMA/compute pipelining.
    M, K = x2d.shape
    N = w.shape[1]
    bm = M if M <= block_m else block_m
    return pl.pallas_call(
        _linear_kernel,
        out_shape=jax.ShapeDtypeStruct((M, N), jnp.float32),
        grid=(pl.cdiv(M, bm),),
        in_specs=[pl.BlockSpec((bm, K), lambda i: (i, 0)),
                  pl.BlockSpec((K, N), lambda i: (0, 0)),
                  pl.BlockSpec((1, N), lambda i: (0, 0))],
        out_specs=pl.BlockSpec((bm, N), lambda i: (i, 0)),
        compiler_params=pltpu.CompilerParams(
            dimension_semantics=("parallel",)),
    )(x2d, w, b.reshape(1, N))


def _bottleneck_kernel(x_ref, wl_ref, bl_ref, wd_ref, bd_ref, o_ref):
    # cls -> latent -> decoder_embed, fused (two chained Linears, one launch).
    lat = (jnp.dot(x_ref[...], wl_ref[...], preferred_element_type=jnp.float32)
           + bl_ref[...])
    o_ref[...] = (jnp.dot(lat, wd_ref[...], preferred_element_type=jnp.float32)
                  + bd_ref[...])


def bottleneck_pallas(cls_tok, w_lat, b_lat, w_de, b_de):
    B = cls_tok.shape[0]
    L = w_lat.shape[1]
    D = w_de.shape[1]
    return pl.pallas_call(
        _bottleneck_kernel,
        out_shape=jax.ShapeDtypeStruct((B, D), jnp.float32),
    )(cls_tok, w_lat, b_lat.reshape(1, L), w_de, b_de.reshape(1, D))


def _layer_kernel(heads, dim_head, scale,
                  x_ref, g1_ref, be1_ref, wqkv_ref, wo_ref, bo_ref,
                  g2_ref, be2_ref, w1_ref, b1_ref, w2_ref, b2_ref,
                  o_ref):
    """Fused transformer layer for a (Bb, N, D) block of tokens."""
    Bb, N, D = x_ref.shape
    f32 = jnp.float32

    # Hoist all weight loads out of the (static, tiny) batch loop.
    g1, be1 = g1_ref[...], be1_ref[...]
    g2, be2 = g2_ref[...], be2_ref[...]
    wqkv = wqkv_ref[...]            # (3*heads, D, dh), head-major, lane-aligned
    wo = wo_ref[...]                # (heads, dh, D)
    bo = bo_ref[...]
    w1, b1 = w1_ref[...], b1_ref[...]
    w2, b2 = w2_ref[...], b2_ref[...]

    for b in range(Bb):                       # Bb is 1 or B (static unroll)
        x = x_ref[b]                          # (N, D)

        # ---- PreNorm -> multi-head attention -> residual -------------------
        xn = _layernorm(x, g1, be1)
        xb = jnp.broadcast_to(xn[None], (3 * heads, N, D))
        # All q/k/v heads from one batched dot_general; the resulting tensor
        # is head-major so q/k/v splits are major-dim views (no lane slicing).
        qkv = jnp.einsum("hnd,hdk->hnk", xb, wqkv, preferred_element_type=f32)
        q3 = qkv[:heads]                      # (heads, N, dh)
        k3 = qkv[heads:2 * heads]
        v3 = qkv[2 * heads:]

        s = jnp.einsum("hqd,hkd->hqk", q3, k3,
                       preferred_element_type=f32) * scale
        s = s - jnp.max(s, axis=-1, keepdims=True)
        e = jnp.exp(s)
        p = e * pl.reciprocal(jnp.sum(e, axis=-1, keepdims=True), approx=True)
        o3 = jnp.einsum("hqk,hkd->hqd", p, v3, preferred_element_type=f32)

        # Output projection as one batched dot; summing over heads is exactly
        # concat(heads) @ W_out.
        yh = jnp.einsum("hqd,hdo->hqo", o3, wo, preferred_element_type=f32)
        y1 = x + jnp.sum(yh, axis=0) + bo

        # ---- PreNorm -> Linear -> GELU(exact) -> Linear -> residual --------
        y1n = _layernorm(y1, g2, be2)
        h = jnp.dot(y1n, w1, preferred_element_type=f32) + b1
        h = _gelu_exact(h)
        y2 = jnp.dot(h, w2, preferred_element_type=f32) + b2
        o_ref[b] = y1 + y2


def _fs(shape):
    n = len(shape)
    return pl.BlockSpec(shape, lambda g: (0,) * n)


def transformer_layer(x, lp, heads, dim_head, fold_batch):
    B, N, D = x.shape
    dh = dim_head
    a, f = lp["attn"], lp["ffn"]
    M = f["w1"].shape[1]
    scale = dh ** -0.5

    # Head-major weight layouts (trace-time reshapes/transposes, free).
    wqkv3 = a["wqkv"].reshape(D, 3, heads, dh).transpose(1, 2, 0, 3)
    wqkv3 = wqkv3.reshape(3 * heads, D, dh)
    wo3 = a["wout"].reshape(heads, dh, D)

    # v7x (2 TCs): keep a parallel batch grid axis. v5e/v6e (1 TC): fold the
    # whole batch into a single block and avoid the serial grid loop.
    G = B if (not fold_batch and B > 1) else 1
    Bb = B // G

    # TODO(synk): for real ViT sizes (dim>=768, mlp_dim>=3072) tile the MLP
    # weights / set vmem_limit_bytes so the fused layer fits v7x's 64 MiB VMEM.
    kernel = functools.partial(_layer_kernel, heads, dh, scale)
    return pl.pallas_call(
        kernel,
        out_shape=jax.ShapeDtypeStruct((B, N, D), jnp.float32),
        grid=(G,),
        in_specs=[
            pl.BlockSpec((Bb, N, D), lambda g: (g, 0, 0)),
            _fs((1, D)), _fs((1, D)),
            _fs((3 * heads, D, dh)), _fs((heads, dh, D)), _fs((1, D)),
            _fs((1, D)), _fs((1, D)),
            _fs((D, M)), _fs((1, M)), _fs((M, D)), _fs((1, D)),
        ],
        out_specs=pl.BlockSpec((Bb, N, D), lambda g: (g, 0, 0)),
        compiler_params=pltpu.CompilerParams(
            dimension_semantics=("parallel",)),
    )(x, a["ln_g"].reshape(1, D), a["ln_b"].reshape(1, D),
      wqkv3, wo3, a["bout"].reshape(1, D),
      f["ln_g"].reshape(1, D), f["ln_b"].reshape(1, D),
      f["w1"], f["b1"].reshape(1, M), f["w2"], f["b2"].reshape(1, D))


# ----------------------------------------------------------------------------
# Full forward pass (dropouts are p=0.0 -> identity at inference)
# ----------------------------------------------------------------------------
def _fold_batch_default():
    try:
        kind = jax.devices()[0].device_kind.lower()
    except Exception:
        return True
    return "v7" not in kind        # keep parallel batch axis only on v7x


def vit3d_forward(params, x, cfg):
    B, C, Dv, Hv, Wv = x.shape
    p = cfg["patch_size"]
    d, h, w = Dv // p, Hv // p, Wv // p
    Np = d * h * w
    dim = cfg["dim"]
    NC = cfg["num_classes"]
    patch_dim = C * p * p * p
    fold_batch = cfg.get("fold_batch", True)

    # --- to_patch_embedding: Rearrange + Linear -----------------------------
    xp = x.reshape(B, C, d, p, h, p, w, p)
    xp = xp.transpose(0, 2, 4, 6, 3, 5, 7, 1).reshape(B, Np, patch_dim)
    tok = linear_pallas(xp.reshape(B * Np, patch_dim),
                        params["w_pe"], params["b_pe"]).reshape(B, Np, dim)

    # --- cls token + positional embedding -----------------------------------
    cls = jnp.broadcast_to(params["cls_token"], (B, 1, dim))
    seq = jnp.concatenate([cls, tok], axis=1)            # (B, Np+1, dim)
    seq = seq + params["pos_emb"][:, : Np + 1]

    # --- encoder transformer (one fused pallas_call per layer) --------------
    for lp in params["enc_layers"]:
        seq = transformer_layer(seq, lp, cfg["heads"], cfg["dim_head"],
                                fold_batch)

    # --- latent bottleneck (two chained Linears, one fused call) ------------
    dec_cls = bottleneck_pallas(seq[:, 0], params["w_lat"], params["b_lat"],
                                params["w_de"], params["b_de"])

    # decoder input: [decoder_embed(latent), decoder_pos_embed[1:]]
    dec_seq = jnp.broadcast_to(params["dec_pos_emb"][:, 1:], (B, Np, dim))
    dec_seq = jnp.concatenate([dec_cls[:, None, :], dec_seq], axis=1)

    # --- decoder transformer -------------------------------------------------
    for lp in params["dec_layers"]:
        dec_seq = transformer_layer(dec_seq, lp, cfg["heads"], cfg["dim_head"],
                                    fold_batch)

    # --- decoder_to_patch with 1x1x1 final_proj Conv3d folded in -------------
    # Patch features are ordered (p_d, p_h, p_w, C); the conv is pointwise on
    # C, so it contracts into the projection weights/bias at trace time.
    w_fold = jnp.einsum("dpc,cn->dpn",
                        params["w_dp"].reshape(dim, p ** 3, C),
                        params["w_conv"]).reshape(dim, p ** 3 * NC)
    b_fold = (params["b_dp"].reshape(p ** 3, C) @ params["w_conv"]
              + params["b_conv"]).reshape(p ** 3 * NC)
    patches = linear_pallas(dec_seq[:, 1:].reshape(B * Np, dim),
                            w_fold, b_fold).reshape(B, Np, p ** 3 * NC)

    vol = patches.reshape(B, d, h, w, p, p, p, NC)
    out = vol.transpose(0, 7, 1, 4, 2, 5, 3, 6).reshape(B, NC, Dv, Hv, Wv)
    return out


# ----------------------------------------------------------------------------
# Deterministic parameter init (synthetic weights; shapes match the module)
# ----------------------------------------------------------------------------
def init_params(key, cfg):
    C, Dv, Hv, Wv = cfg["input_shape"]
    p = cfg["patch_size"]
    Np = (Dv // p) * (Hv // p) * (Wv // p)
    dim, heads, dim_head = cfg["dim"], cfg["heads"], cfg["dim_head"]
    mlp = cfg["mlp_dim"]
    inner = heads * dim_head
    patch_dim = C * p ** 3

    keys = iter(jax.random.split(key, 256))

    def nrm(shape, s=0.02):
        return (s * jax.random.normal(next(keys), shape)).astype(jnp.float32)

    def layer():
        return {
            "attn": {"ln_g": jnp.ones((dim,), jnp.float32),
                     "ln_b": jnp.zeros((dim,), jnp.float32),
                     "wqkv": nrm((dim, 3 * inner)),      # to_qkv (bias=False)
                     "wout": nrm((inner, dim)),          # to_out Linear
                     "bout": nrm((dim,))},
            "ffn": {"ln_g": jnp.ones((dim,), jnp.float32),
                    "ln_b": jnp.zeros((dim,), jnp.float32),
                    "w1": nrm((dim, mlp)), "b1": nrm((mlp,)),
                    "w2": nrm((mlp, dim)), "b2": nrm((dim,))},
        }

    return {
        "w_pe": nrm((patch_dim, dim)), "b_pe": nrm((dim,)),
        "pos_emb": nrm((1, Np + 1, dim), 1.0),
        "cls_token": nrm((1, 1, dim), 1.0),
        "enc_layers": [layer() for _ in range(cfg["depth"])],
        "w_lat": nrm((dim, cfg["latent_size"])),
        "b_lat": nrm((cfg["latent_size"],)),
        "w_de": nrm((cfg["latent_size"], dim)), "b_de": nrm((dim,)),
        "dec_pos_emb": nrm((1, Np + 1, dim), 1.0),
        "dec_layers": [layer() for _ in range(cfg["depth"])],
        "w_dp": nrm((dim, patch_dim)), "b_dp": nrm((patch_dim,)),
        # Conv3d(C, num_classes, k=1): weight stored as (C, num_classes)
        "w_conv": nrm((C, cfg["num_classes"])),
        "b_conv": nrm((cfg["num_classes"],)),
    }


# ----------------------------------------------------------------------------
if __name__ == "__main__":
    cfg = dict(
        input_shape=(2, 8, 8, 8),   # (channels, depth, height, width)
        latent_size=32,
        num_classes=3,
        patch_size=4,               # -> 8 patches, patch_dim = 128
        dim=64,
        depth=2,
        heads=4,
        mlp_dim=128,
        dim_head=16,
    )
    cfg["fold_batch"] = _fold_batch_default()
    B = 2

    key = jax.random.PRNGKey(0)
    pkey, xkey = jax.random.split(key)
    params = init_params(pkey, cfg)
    x = jax.random.normal(xkey, (B,) + cfg["input_shape"], dtype=jnp.float32)

    fwd = jax.jit(functools.partial(vit3d_forward, cfg=cfg))
    y = fwd(params, x)
    jax.block_until_ready(y)

    C, Dv, Hv, Wv = cfg["input_shape"]
    assert y.shape == (B, cfg["num_classes"], Dv, Hv, Wv), y.shape
    assert y.dtype == jnp.float32
    print("KERNEL_OK")
</pallas_src>

<mosaic_0001>
module attributes {stable_mosaic.version = 11 : i64} {
  func.func @_linear_kernel(%arg0: i32, %arg1: memref<16x128xf32, #tpu.memory_space<vmem>>, %arg2: memref<128x64xf32, #tpu.memory_space<vmem>>, %arg3: memref<1x64xf32, #tpu.memory_space<vmem>>, %arg4: memref<16x64xf32, #tpu.memory_space<vmem>>) attributes {dimension_semantics = [#tpu.dimension_semantics<parallel>], iteration_bounds = array<i64: 1>, scalar_prefetch = 0 : i64, scratch_operands = 0 : i64, tpu.core_type = #tpu.core_type<tc>, window_params = [{transform_indices = @transform_0, window_bounds = array<i64: 16, 128>}, {pipeline_mode = #tpu.pipeline_mode<synchronous>, transform_indices = @transform_1, window_bounds = array<i64: 128, 64>}, {pipeline_mode = #tpu.pipeline_mode<synchronous>, transform_indices = @transform_2, window_bounds = array<i64: 1, 64>}, {transform_indices = @transform_3, window_bounds = array<i64: 16, 64>}]} {
    %c0 = arith.constant 0 : index
    %c0_0 = arith.constant 0 : index
    %0 = vector.load %arg1[%c0, %c0_0] : memref<16x128xf32, #tpu.memory_space<vmem>>, vector<16x128xf32>
    %c0_1 = arith.constant 0 : index
    %c0_2 = arith.constant 0 : index
    %1 = vector.load %arg2[%c0_1, %c0_2] : memref<128x64xf32, #tpu.memory_space<vmem>>, vector<128x64xf32>
    %cst = arith.constant dense<0.000000e+00> : vector<16x64xf32>
    %2 = tpu.matmul %0, %1, %cst {dimension_numbers = #tpu.dot_dimension_numbers<[1], [0], [0], [1], [0, 0, 1, 1], [], []>} : vector<16x128xf32>, vector<128x64xf32>, vector<16x64xf32> -> vector<16x64xf32>
    %c0_3 = arith.constant 0 : index
    %c0_4 = arith.constant 0 : index
    %3 = vector.load %arg3[%c0_3, %c0_4] : memref<1x64xf32, #tpu.memory_space<vmem>>, vector<1x64xf32>
    %4 = vector.broadcast %3 : vector<1x64xf32> to vector<16x64xf32>
    %5 = arith.addf %2, %4 : vector<16x64xf32>
    %c0_5 = arith.constant 0 : index
    %c0_6 = arith.constant 0 : index
    %6 = vector.load %arg4[%c0_5, %c0_6] : memref<16x64xf32, #tpu.memory_space<vmem>>, vector<16x64xf32>
    tpu.vector_store %arg4[%c0_5, %c0_6], %5 {strides = array<i32>} : memref<16x64xf32, #tpu.memory_space<vmem>>, vector<16x64xf32>,
    return
  }
  func.func @transform_0(%arg0: i32) -> (i32, i32) {
    %c0_i32 = arith.constant 0 : i32
    %c0_i32_0 = arith.constant 0 : i32
    return %arg0, %c0_i32 : i32, i32
  }
  func.func @transform_1(%arg0: i32) -> (i32, i32) {
    %c0_i32 = arith.constant 0 : i32
    %c0_i32_0 = arith.constant 0 : i32
    %c0_i32_1 = arith.constant 0 : i32
    return %c0_i32, %c0_i32_0 : i32, i32
  }
  func.func @transform_2(%arg0: i32) -> (i32, i32) {
    %c0_i32 = arith.constant 0 : i32
    %c0_i32_0 = arith.constant 0 : i32
    %c0_i32_1 = arith.constant 0 : i32
    return %c0_i32, %c0_i32_0 : i32, i32
  }
  func.func @transform_3(%arg0: i32) -> (i32, i32) {
    %c0_i32 = arith.constant 0 : i32
    %c0_i32_0 = arith.constant 0 : i32
    return %arg0, %c0_i32 : i32, i32
  }
}

module attributes {stable_mosaic.version = 11 : i64} {
  func.func @_layer_kernel(%arg0: i32, %arg1: memref<2x9x64xf32, #tpu.memory_space<vmem>>, %arg2: memref<1x64xf32, #tpu.memory_space<vmem>>, %arg3: memref<1x64xf32, #tpu.memory_space<vmem>>, %arg4: memref<12x64x16xf32, #tpu.memory_space<vmem>>, %arg5: memref<4x16x64xf32, #tpu.memory_space<vmem>>, %arg6: memref<1x64xf32, #tpu.memory_space<vmem>>, %arg7: memref<1x64xf32, #tpu.memory_space<vmem>>, %arg8: memref<1x64xf32, #tpu.memory_space<vmem>>, %arg9: memref<64x128xf32, #tpu.memory_space<vmem>>, %arg10: memref<1x128xf32, #tpu.memory_space<vmem>>, %arg11: memref<128x64xf32, #tpu.memory_space<vmem>>, %arg12: memref<1x64xf32, #tpu.memory_space<vmem>>, %arg13: memref<2x9x64xf32, #tpu.memory_space<vmem>>) attributes {dimension_semantics = [#tpu.dimension_semantics<parallel>], iteration_bounds = array<i64: 1>, scalar_prefetch = 0 : i64, scratch_operands = 0 : i64, tpu.core_type = #tpu.core_type<tc>, window_params = [{transform_indices = @transform_0, window_bounds = array<i64: 2, 9, 64>}, {pipeline_mode = #tpu.pipeline_mode<synchronous>, transform_indices = @transform_1, window_bounds = array<i64: 1, 64>}, {pipeline_mode = #tpu.pipeline_mode<synchronous>, transform_indices = @transform_2, window_bounds = array<i64: 1, 64>}, {pipeline_mode = #tpu.pipeline_mode<synchronous>, transform_indices = @transform_3, window_bounds = array<i64: 12, 64, 16>}, {pipeline_mode = #tpu.pipeline_mode<synchronous>, transform_indices = @transform_4, window_bounds = array<i64: 4, 16, 64>}, {pipeline_mode = #tpu.pipeline_mode<synchronous>, transform_indices = @transform_5, window_bounds = array<i64: 1, 64>}, {pipeline_mode = #tpu.pipeline_mode<synchronous>, transform_indices = @transform_6, window_bounds = array<i64: 1, 64>}, {pipeline_mode = #tpu.pipeline_mode<synchronous>, transform_indices = @transform_7, window_bounds = array<i64: 1, 64>}, {pipeline_mode = #tpu.pipeline_mode<synchronous>, transform_indices = @transform_8, window_bounds = array<i64: 64, 128>}, {pipeline_mode = #tpu.pipeline_mode<synchronous>, transform_indices = @transform_9, window_bounds = array<i64: 1, 128>}, {pipeline_mode = #tpu.pipeline_mode<synchronous>, transform_indices = @transform_10, window_bounds = array<i64: 128, 64>}, {pipeline_mode = #tpu.pipeline_mode<synchronous>, transform_indices = @transform_11, window_bounds = array<i64: 1, 64>}, {transform_indices = @transform_12, window_bounds = array<i64: 2, 9, 64>}]} {
    %c0 = arith.constant 0 : index
    %c0_0 = arith.constant 0 : index
    %0 = vector.load %arg2[%c0, %c0_0] : memref<1x64xf32, #tpu.memory_space<vmem>>, vector<1x64xf32>
    %c0_1 = arith.constant 0 : index
    %c0_2 = arith.constant 0 : index
    %1 = vector.load %arg3[%c0_1, %c0_2] : memref<1x64xf32, #tpu.memory_space<vmem>>, vector<1x64xf32>
    %c0_3 = arith.constant 0 : index
    %c0_4 = arith.constant 0 : index
    %2 = vector.load %arg7[%c0_3, %c0_4] : memref<1x64xf32, #tpu.memory_space<vmem>>, vector<1x64xf32>
    %c0_5 = arith.constant 0 : index
    %c0_6 = arith.constant 0 : index
    %3 = vector.load %arg8[%c0_5, %c0_6] : memref<1x64xf32, #tpu.memory_space<vmem>>, vector<1x64xf32>
    %c0_7 = arith.constant 0 : index
    %c0_8 = arith.constant 0 : index
    %c0_9 = arith.constant 0 : index
    %4 = vector.load %arg4[%c0_7, %c0_8, %c0_9] : memref<12x64x16xf32, #tpu.memory_space<vmem>>, vector<12x64x16xf32>
    %c0_10 = arith.constant 0 : index
    %c0_11 = arith.constant 0 : index
    %c0_12 = arith.constant 0 : index
    %5 = vector.load %arg5[%c0_10, %c0_11, %c0_12] : memref<4x16x64xf32, #tpu.memory_space<vmem>>, vector<4x16x64xf32>
    %c0_13 = arith.constant 0 : index
    %c0_14 = arith.constant 0 : index
    %6 = vector.load %arg6[%c0_13, %c0_14] : memref<1x64xf32, #tpu.memory_space<vmem>>, vector<1x64xf32>
    %c0_15 = arith.constant 0 : index
    %c0_16 = arith.constant 0 : index
    %7 = vector.load %arg9[%c0_15, %c0_16] : memref<64x128xf32, #tpu.memory_space<vmem>>, vector<64x128xf32>
    %c0_17 = arith.constant 0 : index
    %c0_18 = arith.constant 0 : index
    %8 = vector.load %arg10[%c0_17, %c0_18] : memref<1x128xf32, #tpu.memory_space<vmem>>, vector<1x128xf32>
    %c0_19 = arith.constant 0 : index
    %c0_20 = arith.constant 0 : index
    %9 = vector.load %arg11[%c0_19, %c0_20] : memref<128x64xf32, #tpu.memory_space<vmem>>, vector<128x64xf32>
    %c0_21 = arith.constant 0 : index
    %c0_22 = arith.constant 0 : index
    %10 = vector.load %arg12[%c0_21, %c0_22] : memref<1x64xf32, #tpu.memory_space<vmem>>, vector<1x64xf32>
    %c0_23 = arith.constant 0 : index
    %c0_24 = arith.constant 0 : index
    %c0_25 = arith.constant 0 : index
    %11 = vector.load %arg1[%c0_23, %c0_24, %c0_25] : memref<2x9x64xf32, #tpu.memory_space<vmem>>, vector<1x9x64xf32>
    %12 = vector.shape_cast %11 : vector<1x9x64xf32> to vector<9x64xf32>
    %cst = arith.constant dense<0.000000e+00> : vector<9xf32>
    %13 = vector.multi_reduction <add>, %12, %cst [1] : vector<9x64xf32> to vector<9xf32>
    %14 = vector.shape_cast %13 : vector<9xf32> to vector<9x1xf32>
    %cst_26 = arith.constant 6.400000e+01 : f32
    %15 = vector.broadcast %cst_26 : f32 to vector<9x1xf32>
    %16 = arith.divf %14, %15 : vector<9x1xf32>
    %17 = vector.broadcast %16 : vector<9x1xf32> to vector<9x64xf32>
    %18 = arith.subf %12, %17 : vector<9x64xf32>
    %19 = arith.mulf %18, %18 : vector<9x64xf32>
    %cst_27 = arith.constant dense<0.000000e+00> : vector<9xf32>
    %20 = vector.multi_reduction <add>, %19, %cst_27 [1] : vector<9x64xf32> to vector<9xf32>
    %21 = vector.shape_cast %20 : vector<9xf32> to vector<9x1xf32>
    %cst_28 = arith.constant 6.400000e+01 : f32
    %22 = vector.broadcast %cst_28 : f32 to vector<9x1xf32>
    %23 = arith.divf %21, %22 : vector<9x1xf32>
    %24 = vector.broadcast %16 : vector<9x1xf32> to vector<9x64xf32>
    %25 = arith.subf %12, %24 : vector<9x64xf32>
    %cst_29 = arith.constant 9.99999974E-6 : f32
    %26 = vector.broadcast %cst_29 : f32 to vector<9x1xf32>
    %27 = arith.addf %23, %26 : vector<9x1xf32>
    %28 = math.rsqrt %27 : vector<9x1xf32>
    %29 = vector.broadcast %28 : vector<9x1xf32> to vector<9x64xf32>
    %30 = arith.mulf %25, %29 : vector<9x64xf32>
    %31 = vector.broadcast %0 : vector<1x64xf32> to vector<9x64xf32>
    %32 = arith.mulf %30, %31 : vector<9x64xf32>
    %33 = vector.broadcast %1 : vector<1x64xf32> to vector<9x64xf32>
    %34 = arith.addf %32, %33 : vector<9x64xf32>
    %35 = vector.shape_cast %34 : vector<9x64xf32> to vector<1x9x64xf32>
    %36 = vector.shape_cast %35 : vector<1x9x64xf32> to vector<1x9x64xf32>
    %37 = vector.broadcast %36 : vector<1x9x64xf32> to vector<12x9x64xf32>
    "tpu.trace_start"() <{level = 10 : i32, message = "hnd,hdk->hnk"}> : () -> ()
    %cst_30 = arith.constant dense<0.000000e+00> : vector<12x9x16xf32>
    %38 = tpu.matmul %37, %4, %cst_30 {dimension_numbers = #tpu.dot_dimension_numbers<[2], [1], [1], [2], [0, 0, 0, 1, 1, 2], [0], [0]>} : vector<12x9x64xf32>, vector<12x64x16xf32>, vector<12x9x16xf32> -> vector<12x9x16xf32>
    "tpu.trace_stop"() : () -> ()
    %39 = vector.extract_strided_slice %38 {offsets = [0, 0, 0], sizes = [4, 9, 16], strides = [1, 1, 1]} : vector<12x9x16xf32> to vector<4x9x16xf32>
    %40 = vector.extract_strided_slice %38 {offsets = [4, 0, 0], sizes = [4, 9, 16], strides = [1, 1, 1]} : vector<12x9x16xf32> to vector<4x9x16xf32>
    %41 = vector.extract_strided_slice %38 {offsets = [8, 0, 0], sizes = [4, 9, 16], strides = [1, 1, 1]} : vector<12x9x16xf32> to vector<4x9x16xf32>
    "tpu.trace_start"() <{level = 10 : i32, message = "hqd,hkd->hqk"}> : () -> ()
    %cst_31 = arith.constant dense<0.000000e+00> : vector<4x9x9xf32>
    %42 = tpu.matmul %39, %40, %cst_31 {dimension_numbers = #tpu.dot_dimension_numbers<[2], [2], [1], [1], [0, 0, 0, 1, 1, 1], [0], [0]>} : vector<4x9x16xf32>, vector<4x9x16xf32>, vector<4x9x9xf32> -> vector<4x9x9xf32>
    "tpu.trace_stop"() : () -> ()
    %cst_32 = arith.constant 2.500000e-01 : f32
    %43 = vector.broadcast %cst_32 : f32 to vector<4x9x9xf32>
    %44 = arith.mulf %42, %43 : vector<4x9x9xf32>
    %cst_33 = arith.constant dense<0xFF800000> : vector<4x9xf32>
    %45 = vector.multi_reduction <maximumf>, %44, %cst_33 [2] : vector<4x9x9xf32> to vector<4x9xf32>
    %46 = vector.shape_cast %45 : vector<4x9xf32> to vector<4x9x1xf32>
    %47 = vector.broadcast %46 : vector<4x9x1xf32> to vector<4x9x9xf32>
    %48 = arith.subf %44, %47 : vector<4x9x9xf32>
    %49 = math.exp %48 : vector<4x9x9xf32>
    %cst_34 = arith.constant dense<0.000000e+00> : vector<4x9xf32>
    %50 = vector.multi_reduction <add>, %49, %cst_34 [2] : vector<4x9x9xf32> to vector<4x9xf32>
    %51 = vector.shape_cast %50 : vector<4x9xf32> to vector<4x9x1xf32>
    %52 = tpu.reciprocal %51 {approx = true} : vector<4x9x1xf32> -> vector<4x9x1xf32>
    %53 = vector.broadcast %52 : vector<4x9x1xf32> to vector<4x9x9xf32>
    %54 = arith.mulf %49, %53 : vector<4x9x9xf32>
    "tpu.trace_start"() <{level = 10 : i32, message = "hqk,hkd->hqd"}> : () -> ()
    %cst_35 = arith.constant dense<0.000000e+00> : vector<4x9x16xf32>
    %55 = tpu.matmul %54, %41, %cst_35 {dimension_numbers = #tpu.dot_dimension_numbers<[2], [1], [1], [2], [0, 0, 0, 1, 1, 2], [0], [0]>} : vector<4x9x9xf32>, vector<4x9x16xf32>, vector<4x9x16xf32> -> vector<4x9x16xf32>
    "tpu.trace_stop"() : () -> ()
    "tpu.trace_start"() <{level = 10 : i32, message = "hqd,hdo->hqo"}> : () -> ()
    %cst_36 = arith.constant dense<0.000000e+00> : vector<4x9x64xf32>
    %56 = tpu.matmul %55, %5, %cst_36 {dimension_numbers = #tpu.dot_dimension_numbers<[2], [1], [1], [2], [0, 0, 0, 1, 1, 2], [0], [0]>} : vector<4x9x16xf32>, vector<4x16x64xf32>, vector<4x9x64xf32> -> vector<4x9x64xf32>
    "tpu.trace_stop"() : () -> ()
    %cst_37 = arith.constant dense<0.000000e+00> : vector<9x64xf32>
    %57 = vector.multi_reduction <add>, %56, %cst_37 [0] : vector<4x9x64xf32> to vector<9x64xf32>
    %58 = arith.addf %12, %57 : vector<9x64xf32>
    %59 = vector.broadcast %6 : vector<1x64xf32> to vector<9x64xf32>
    %60 = arith.addf %58, %59 : vector<9x64xf32>
    %cst_38 = arith.constant dense<0.000000e+00> : vector<9xf32>
    %61 = vector.multi_reduction <add>, %60, %cst_38 [1] : vector<9x64xf32> to vector<9xf32>
    %62 = vector.shape_cast %61 : vector<9xf32> to vector<9x1xf32>
    %cst_39 = arith.constant 6.400000e+01 : f32
    %63 = vector.broadcast %cst_39 : f32 to vector<9x1xf32>
    %64 = arith.divf %62, %63 : vector<9x1xf32>
    %65 = vector.broadcast %64 : vector<9x1xf32> to vector<9x64xf32>
    %66 = arith.subf %60, %65 : vector<9x64xf32>
    %67 = arith.mulf %66, %66 : vector<9x64xf32>
    %cst_40 = arith.constant dense<0.000000e+00> : vector<9xf32>
    %68 = vector.multi_reduction <add>, %67, %cst_40 [1] : vector<9x64xf32> to vector<9xf32>
    %69 = vector.shape_cast %68 : vector<9xf32> to vector<9x1xf32>
    %cst_41 = arith.constant 6.400000e+01 : f32
    %70 = vector.broadcast %cst_41 : f32 to vector<9x1xf32>
    %71 = arith.divf %69, %70 : vector<9x1xf32>
    %72 = vector.broadcast %64 : vector<9x1xf32> to vector<9x64xf32>
    %73 = arith.subf %60, %72 : vector<9x64xf32>
    %cst_42 = arith.constant 9.99999974E-6 : f32
    %74 = vector.broadcast %cst_42 : f32 to vector<9x1xf32>
    %75 = arith.addf %71, %74 : vector<9x1xf32>
    %76 = math.rsqrt %75 : vector<9x1xf32>
    %77 = vector.broadcast %76 : vector<9x1xf32> to vector<9x64xf32>
    %78 = arith.mulf %73, %77 : vector<9x64xf32>
    %79 = vector.broadcast %2 : vector<1x64xf32> to vector<9x64xf32>
    %80 = arith.mulf %78, %79 : vector<9x64xf32>
    %81 = vector.broadcast %3 : vector<1x64xf32> to vector<9x64xf32>
    %82 = arith.addf %80, %81 : vector<9x64xf32>
    %cst_43 = arith.constant dense<0.000000e+00> : vector<9x128xf32>
    %83 = tpu.matmul %82, %7, %cst_43 {dimension_numbers = #tpu.dot_dimension_numbers<[1], [0], [0], [1], [0, 0, 1, 1], [], []>} : vector<9x64xf32>, vector<64x128xf32>, vector<9x128xf32> -> vector<9x128xf32>
    %84 = vector.broadcast %8 : vector<1x128xf32> to vector<9x128xf32>
    %85 = arith.addf %83, %84 : vector<9x128xf32>
    %cst_44 = arith.constant 5.000000e-01 : f32
    %86 = vector.broadcast %cst_44 : f32 to vector<9x128xf32>
    %87 = arith.mulf %86, %85 : vector<9x128xf32>
    %cst_45 = arith.constant 0.707106769 : f32
    %88 = vector.broadcast %cst_45 : f32 to vector<9x128xf32>
    %89 = arith.mulf %85, %88 : vector<9x128xf32>
    %cst_46 = arith.constant -4.000000e+00 : f32
    %cst_47 = arith.constant 4.000000e+00 : f32
    %90 = vector.broadcast %cst_46 : f32 to vector<9x128xf32>
    %91 = arith.maximumf %90, %89 : vector<9x128xf32>
    %92 = vector.broadcast %cst_47 : f32 to vector<9x128xf32>
    %93 = arith.minimumf %92, %91 : vector<9x128xf32>
    %94 = arith.mulf %93, %93 : vector<9x128xf32>
    %cst_48 = arith.constant -2.72614237E-10 : f32
    %95 = vector.broadcast %cst_48 : f32 to vector<9x128xf32>
    %96 = arith.mulf %94, %95 : vector<9x128xf32>
    %cst_49 = arith.constant 2.77068146E-8 : f32
    %97 = vector.broadcast %cst_49 : f32 to vector<9x128xf32>
    %98 = arith.addf %96, %97 : vector<9x128xf32>
    %99 = arith.mulf %94, %98 : vector<9x128xf32>
    %cst_50 = arith.constant -2.10102394E-6 : f32
    %100 = vector.broadcast %cst_50 : f32 to vector<9x128xf32>
    %101 = arith.addf %99, %100 : vector<9x128xf32>
    %102 = arith.mulf %94, %101 : vector<9x128xf32>
    %cst_51 = arith.constant -5.69250624E-5 : f32
    %103 = vector.broadcast %cst_51 : f32 to vector<9x128xf32>
    %104 = arith.addf %102, %103 : vector<9x128xf32>
    %105 = arith.mulf %94, %104 : vector<9x128xf32>
    %cst_52 = arith.constant -7.34990637E-4 : f32
    %106 = vector.broadcast %cst_52 : f32 to vector<9x128xf32>
    %107 = arith.addf %105, %106 : vector<9x128xf32>
    %108 = arith.mulf %94, %107 : vector<9x128xf32>
    %cst_53 = arith.constant -2.954600e-03 : f32
    %109 = vector.broadcast %cst_53 : f32 to vector<9x128xf32>
    %110 = arith.addf %108, %109 : vector<9x128xf32>
    %111 = arith.mulf %94, %110 : vector<9x128xf32>
    %cst_54 = arith.constant -0.0160960332 : f32
    %112 = vector.broadcast %cst_54 : f32 to vector<9x128xf32>
    %113 = arith.addf %111, %112 : vector<9x128xf32>
    %114 = arith.mulf %93, %113 : vector<9x128xf32>
    %cst_55 = arith.constant -1.45660715E-5 : f32
    %115 = vector.broadcast %cst_55 : f32 to vector<9x128xf32>
    %116 = arith.mulf %94, %115 : vector<9x128xf32>
    %cst_56 = arith.constant -2.13374049E-4 : f32
    %117 = vector.broadcast %cst_56 : f32 to vector<9x128xf32>
    %118 = arith.addf %116, %117 : vector<9x128xf32>
    %119 = arith.mulf %94, %118 : vector<9x128xf32>
    %cst_57 = arith.constant -0.00168282702 : f32
    %120 = vector.broadcast %cst_57 : f32 to vector<9x128xf32>
    %121 = arith.addf %119, %120 : vector<9x128xf32>
    %122 = arith.mulf %94, %121 : vector<9x128xf32>
    %cst_58 = arith.constant -0.00737332925 : f32
    %123 = vector.broadcast %cst_58 : f32 to vector<9x128xf32>
    %124 = arith.addf %122, %123 : vector<9x128xf32>
    %125 = arith.mulf %94, %124 : vector<9x128xf32>
    %cst_59 = arith.constant -0.0142647391 : f32
    %126 = vector.broadcast %cst_59 : f32 to vector<9x128xf32>
    %127 = arith.addf %125, %126 : vector<9x128xf32>
    %128 = arith.divf %114, %127 : vector<9x128xf32>
    %cst_60 = arith.constant 1.000000e+00 : f32
    %129 = vector.broadcast %cst_60 : f32 to vector<9x128xf32>
    %130 = arith.addf %129, %128 : vector<9x128xf32>
    %131 = arith.mulf %87, %130 : vector<9x128xf32>
    %cst_61 = arith.constant dense<0.000000e+00> : vector<9x64xf32>
    %132 = tpu.matmul %131, %9, %cst_61 {dimension_numbers = #tpu.dot_dimension_numbers<[1], [0], [0], [1], [0, 0, 1, 1], [], []>} : vector<9x128xf32>, vector<128x64xf32>, vector<9x64xf32> -> vector<9x64xf32>
    %133 = vector.broadcast %10 : vector<1x64xf32> to vector<9x64xf32>
    %134 = arith.addf %132, %133 : vector<9x64xf32>
    %135 = arith.addf %60, %134 : vector<9x64xf32>
    %c0_62 = arith.constant 0 : index
    %c0_63 = arith.constant 0 : index
    %c0_64 = arith.constant 0 : index
    %136 = vector.load %arg13[%c0_62, %c0_63, %c0_64] : memref<2x9x64xf32, #tpu.memory_space<vmem>>, vector<1x9x64xf32>
    %137 = vector.shape_cast %136 : vector<1x9x64xf32> to vector<9x64xf32>
    %138 = vector.shape_cast %135 : vector<9x64xf32> to vector<1x9x64xf32>
    tpu.vector_store %arg13[%c0_62, %c0_63, %c0_64], %138 {strides = array<i32>} : memref<2x9x64xf32, #tpu.memory_space<vmem>>, vector<1x9x64xf32>,
    %c1 = arith.constant 1 : index
    %c0_65 = arith.constant 0 : index
    %c0_66 = arith.constant 0 : index
    %139 = vector.load %arg1[%c1, %c0_65, %c0_66] : memref<2x9x64xf32, #tpu.memory_space<vmem>>, vector<1x9x64xf32>
    %140 = vector.shape_cast %139 : vector<1x9x64xf32> to vector<9x64xf32>
    %cst_67 = arith.constant dense<0.000000e+00> : vector<9xf32>
    %141 = vector.multi_reduction <add>, %140, %cst_67 [1] : vector<9x64xf32> to vector<9xf32>
    %142 = vector.shape_cast %141 : vector<9xf32> to vector<9x1xf32>
    %cst_68 = arith.constant 6.400000e+01 : f32
    %143 = vector.broadcast %cst_68 : f32 to vector<9x1xf32>
    %144 = arith.divf %142, %143 : vector<9x1xf32>
    %145 = vector.broadcast %144 : vector<9x1xf32> to vector<9x64xf32>
    %146 = arith.subf %140, %145 : vector<9x64xf32>
    %147 = arith.mulf %146, %146 : vector<9x64xf32>
    %cst_69 = arith.constant dense<0.000000e+00> : vector<9xf32>
    %148 = vector.multi_reduction <add>, %147, %cst_69 [1] : vector<9x64xf32> to vector<9xf32>
    %149 = vector.shape_cast %148 : vector<9xf32> to vector<9x1xf32>
    %cst_70 = arith.constant 6.400000e+01 : f32
    %150 = vector.broadcast %cst_70 : f32 to vector<9x1xf32>
    %151 = arith.divf %149, %150 : vector<9x1xf32>
    %152 = vector.broadcast %144 : vector<9x1xf32> to vector<9x64xf32>
    %153 = arith.subf %140, %152 : vector<9x64xf32>
    %cst_71 = arith.constant 9.99999974E-6 : f32
    %154 = vector.broadcast %cst_71 : f32 to vector<9x1xf32>
    %155 = arith.addf %151, %154 : vector<9x1xf32>
    %156 = math.rsqrt %155 : vector<9x1xf32>
    %157 = vector.broadcast %156 : vector<9x1xf32> to vector<9x64xf32>
    %158 = arith.mulf %153, %157 : vector<9x64xf32>
    %159 = vector.broadcast %0 : vector<1x64xf32> to vector<9x64xf32>
    %160 = arith.mulf %158, %159 : vector<9x64xf32>
    %161 = vector.broadcast %1 : vector<1x64xf32> to vector<9x64xf32>
    %162 = arith.addf %160, %161 : vector<9x64xf32>
    %163 = vector.shape_cast %162 : vector<9x64xf32> to vector<1x9x64xf32>
    %164 = vector.shape_cast %163 : vector<1x9x64xf32> to vector<1x9x64xf32>
    %165 = vector.broadcast %164 : vector<1x9x64xf32> to vector<12x9x64xf32>
    "tpu.trace_start"() <{level = 10 : i32, message = "hnd,hdk->hnk"}> : () -> ()
    %cst_72 = arith.constant dense<0.000000e+00> : vector<12x9x16xf32>
    %166 = tpu.matmul %165, %4, %cst_72 {dimension_numbers = #tpu.dot_dimension_numbers<[2], [1], [1], [2], [0, 0, 0, 1, 1, 2], [0], [0]>} : vector<12x9x64xf32>, vector<12x64x16xf32>, vector<12x9x16xf32> -> vector<12x9x16xf32>
    "tpu.trace_stop"() : () -> ()
    %167 = vector.extract_strided_slice %166 {offsets = [0, 0, 0], sizes = [4, 9, 16], strides = [1, 1, 1]} : vector<12x9x16xf32> to vector<4x9x16xf32>
    %168 = vector.extract_strided_slice %166 {offsets = [4, 0, 0], sizes = [4, 9, 16], strides = [1, 1, 1]} : vector<12x9x16xf32> to vector<4x9x16xf32>
    %169 = vector.extract_strided_slice %166 {offsets = [8, 0, 0], sizes = [4, 9, 16], strides = [1, 1, 1]} : vector<12x9x16xf32> to vector<4x9x16xf32>
    "tpu.trace_start"() <{level = 10 : i32, message = "hqd,hkd->hqk"}> : () -> ()
    %cst_73 = arith.constant dense<0.000000e+00> : vector<4x9x9xf32>
    %170 = tpu.matmul %167, %168, %cst_73 {dimension_numbers = #tpu.dot_dimension_numbers<[2], [2], [1], [1], [0, 0, 0, 1, 1, 1], [0], [0]>} : vector<4x9x16xf32>, vector<4x9x16xf32>, vector<4x9x9xf32> -> vector<4x9x9xf32>
    "tpu.trace_stop"() : () -> ()
    %cst_74 = arith.constant 2.500000e-01 : f32
    %171 = vector.broadcast %cst_74 : f32 to vector<4x9x9xf32>
    %172 = arith.mulf %170, %171 : vector<4x9x9xf32>
    %cst_75 = arith.constant dense<0xFF800000> : vector<4x9xf32>
    %173 = vector.multi_reduction <maximumf>, %172, %cst_75 [2] : vector<4x9x9xf32> to vector<4x9xf32>
    %174 = vector.shape_cast %173 : vector<4x9xf32> to vector<4x9x1xf32>
    %175 = vector.broadcast %174 : vector<4x9x1xf32> to vector<4x9x9xf32>
    %176 = arith.subf %172, %175 : vector<4x9x9xf32>
    %177 = math.exp %176 : vector<4x9x9xf32>
    %cst_76 = arith.constant dense<0.000000e+00> : vector<4x9xf32>
    %178 = vector.multi_reduction <add>, %177, %cst_76 [2] : vector<4x9x9xf32> to vector<4x9xf32>
    %179 = vector.shape_cast %178 : vector<4x9xf32> to vector<4x9x1xf32>
    %180 = tpu.reciprocal %179 {approx = true} : vector<4x9x1xf32> -> vector<4x9x1xf32>
    %181 = vector.broadcast %180 : vector<4x9x1xf32> to vector<4x9x9xf32>
    %182 = arith.mulf %177, %181 : vector<4x9x9xf32>
    "tpu.trace_start"() <{level = 10 : i32, message = "hqk,hkd->hqd"}> : () -> ()
    %cst_77 = arith.constant dense<0.000000e+00> : vector<4x9x16xf32>
    %183 = tpu.matmul %182, %169, %cst_77 {dimension_numbers = #tpu.dot_dimension_numbers<[2], [1], [1], [2], [0, 0, 0, 1, 1, 2], [0], [0]>} : vector<4x9x9xf32>, vector<4x9x16xf32>, vector<4x9x16xf32> -> vector<4x9x16xf32>
    "tpu.trace_stop"() : () -> ()
    "tpu.trace_start"() <{level = 10 : i32, message = "hqd,hdo->hqo"}> : () -> ()
    %cst_78 = arith.constant dense<0.000000e+00> : vector<4x9x64xf32>
    %184 = tpu.matmul %183, %5, %cst_78 {dimension_numbers = #tpu.dot_dimension_numbers<[2], [1], [1], [2], [0, 0, 0, 1, 1, 2], [0], [0]>} : vector<4x9x16xf32>, vector<4x16x64xf32>, vector<4x9x64xf32> -> vector<4x9x64xf32>
    "tpu.trace_stop"() : () -> ()
    %cst_79 = arith.constant dense<0.000000e+00> : vector<9x64xf32>
    %185 = vector.multi_reduction <add>, %184, %cst_79 [0] : vector<4x9x64xf32> to vector<9x64xf32>
    %186 = arith.addf %140, %185 : vector<9x64xf32>
    %187 = vector.broadcast %6 : vector<1x64xf32> to vector<9x64xf32>
    %188 = arith.addf %186, %187 : vector<9x64xf32>
    %cst_80 = arith.constant dense<0.000000e+00> : vector<9xf32>
    %189 = vector.multi_reduction <add>, %188, %cst_80 [1] : vector<9x64xf32> to vector<9xf32>
    %190 = vector.shape_cast %189 : vector<9xf32> to vector<9x1xf32>
    %cst_81 = arith.constant 6.400000e+01 : f32
    %191 = vector.broadcast %cst_81 : f32 to vector<9x1xf32>
    %192 = arith.divf %190, %191 : vector<9x1xf32>
    %193 = vector.broadcast %192 : vector<9x1xf32> to vector<9x64xf32>
    %194 = arith.subf %188, %193 : vector<9x64xf32>
    %195 = arith.mulf %194, %194 : vector<9x64xf32>
    %cst_82 = arith.constant dense<0.000000e+00> : vector<9xf32>
    %196 = vector.multi_reduction <add>, %195, %cst_82 [1] : vector<9x64xf32> to vector<9xf32>
    %197 = vector.shape_cast %196 : vector<9xf32> to vector<9x1xf32>
    %cst_83 = arith.constant 6.400000e+01 : f32
    %198 = vector.broadcast %cst_83 : f32 to vector<9x1xf32>
    %199 = arith.divf %197, %198 : vector<9x1xf32>
    %200 = vector.broadcast %192 : vector<9x1xf32> to vector<9x64xf32>
    %201 = arith.subf %188, %200 : vector<9x64xf32>
    %cst_84 = arith.constant 9.99999974E-6 : f32
    %202 = vector.broadcast %cst_84 : f32 to vector<9x1xf32>
    %203 = arith.addf %199, %202 : vector<9x1xf32>
    %204 = math.rsqrt %203 : vector<9x1xf32>
    %205 = vector.broadcast %204 : vector<9x1xf32> to vector<9x64xf32>
    %206 = arith.mulf %201, %205 : vector<9x64xf32>
    %207 = vector.broadcast %2 : vector<1x64xf32> to vector<9x64xf32>
    %208 = arith.mulf %206, %207 : vector<9x64xf32>
    %209 = vector.broadcast %3 : vector<1x64xf32> to vector<9x64xf32>
    %210 = arith.addf %208, %209 : vector<9x64xf32>
    %cst_85 = arith.constant dense<0.000000e+00> : vector<9x128xf32>
    %211 = tpu.matmul %210, %7, %cst_85 {dimension_numbers = #tpu.dot_dimension_numbers<[1], [0], [0], [1], [0, 0, 1, 1], [], []>} : vector<9x64xf32>, vector<64x128xf32>, vector<9x128xf32> -> vector<9x128xf32>
    %212 = vector.broadcast %8 : vector<1x128xf32> to vector<9x128xf32>
    %213 = arith.addf %211, %212 : vector<9x128xf32>
    %cst_86 = arith.constant 5.000000e-01 : f32
    %214 = vector.broadcast %cst_86 : f32 to vector<9x128xf32>
    %215 = arith.mulf %214, %213 : vector<9x128xf32>
    %cst_87 = arith.constant 0.707106769 : f32
    %216 = vector.broadcast %cst_87 : f32 to vector<9x128xf32>
    %217 = arith.mulf %213, %216 : vector<9x128xf32>
    %cst_88 = arith.constant -4.000000e+00 : f32
    %cst_89 = arith.constant 4.000000e+00 : f32
    %218 = vector.broadcast %cst_88 : f32 to vector<9x128xf32>
    %219 = arith.maximumf %218, %217 : vector<9x128xf32>
    %220 = vector.broadcast %cst_89 : f32 to vector<9x128xf32>
    %221 = arith.minimumf %220, %219 : vector<9x128xf32>
    %222 = arith.mulf %221, %221 : vector<9x128xf32>
    %cst_90 = arith.constant -2.72614237E-10 : f32
    %223 = vector.broadcast %cst_90 : f32 to vector<9x128xf32>
    %224 = arith.mulf %222, %223 : vector<9x128xf32>
    %cst_91 = arith.constant 2.77068146E-8 : f32
    %225 = vector.broadcast %cst_91 : f32 to vector<9x128xf32>
    %226 = arith.addf %224, %225 : vector<9x128xf32>
    %227 = arith.mulf %222, %226 : vector<9x128xf32>
    %cst_92 = arith.constant -2.10102394E-6 : f32
    %228 = vector.broadcast %cst_92 : f32 to vector<9x128xf32>
    %229 = arith.addf %227, %228 : vector<9x128xf32>
    %230 = arith.mulf %222, %229 : vector<9x128xf32>
    %cst_93 = arith.constant -5.69250624E-5 : f32
    %231 = vector.broadcast %cst_93 : f32 to vector<9x128xf32>
    %232 = arith.addf %230, %231 : vector<9x128xf32>
    %233 = arith.mulf %222, %232 : vector<9x128xf32>
    %cst_94 = arith.constant -7.34990637E-4 : f32
    %234 = vector.broadcast %cst_94 : f32 to vector<9x128xf32>
    %235 = arith.addf %233, %234 : vector<9x128xf32>
    %236 = arith.mulf %222, %235 : vector<9x128xf32>
    %cst_95 = arith.constant -2.954600e-03 : f32
    %237 = vector.broadcast %cst_95 : f32 to vector<9x128xf32>
    %238 = arith.addf %236, %237 : vector<9x128xf32>
    %239 = arith.mulf %222, %238 : vector<9x128xf32>
    %cst_96 = arith.constant -0.0160960332 : f32
    %240 = vector.broadcast %cst_96 : f32 to vector<9x128xf32>
    %241 = arith.addf %239, %240 : vector<9x128xf32>
    %242 = arith.mulf %221, %241 : vector<9x128xf32>
    %cst_97 = arith.constant -1.45660715E-5 : f32
    %243 = vector.broadcast %cst_97 : f32 to vector<9x128xf32>
    %244 = arith.mulf %222, %243 : vector<9x128xf32>
    %cst_98 = arith.constant -2.13374049E-4 : f32
    %245 = vector.broadcast %cst_98 : f32 to vector<9x128xf32>
    %246 = arith.addf %244, %245 : vector<9x128xf32>
    %247 = arith.mulf %222, %246 : vector<9x128xf32>
    %cst_99 = arith.constant -0.00168282702 : f32
    %248 = vector.broadcast %cst_99 : f32 to vector<9x128xf32>
    %249 = arith.addf %247, %248 : vector<9x128xf32>
    %250 = arith.mulf %222, %249 : vector<9x128xf32>
    %cst_100 = arith.constant -0.00737332925 : f32
    %251 = vector.broadcast %cst_100 : f32 to vector<9x128xf32>
    %252 = arith.addf %250, %251 : vector<9x128xf32>
    %253 = arith.mulf %222, %252 : vector<9x128xf32>
    %cst_101 = arith.constant -0.0142647391 : f32
    %254 = vector.broadcast %cst_101 : f32 to vector<9x128xf32>
    %255 = arith.addf %253, %254 : vector<9x128xf32>
    %256 = arith.divf %242, %255 : vector<9x128xf32>
    %cst_102 = arith.constant 1.000000e+00 : f32
    %257 = vector.broadcast %cst_102 : f32 to vector<9x128xf32>
    %258 = arith.addf %257, %256 : vector<9x128xf32>
    %259 = arith.mulf %215, %258 : vector<9x128xf32>
    %cst_103 = arith.constant dense<0.000000e+00> : vector<9x64xf32>
    %260 = tpu.matmul %259, %9, %cst_103 {dimension_numbers = #tpu.dot_dimension_numbers<[1], [0], [0], [1], [0, 0, 1, 1], [], []>} : vector<9x128xf32>, vector<128x64xf32>, vector<9x64xf32> -> vector<9x64xf32>
    %261 = vector.broadcast %10 : vector<1x64xf32> to vector<9x64xf32>
    %262 = arith.addf %260, %261 : vector<9x64xf32>
    %263 = arith.addf %188, %262 : vector<9x64xf32>
    %c1_104 = arith.constant 1 : index
    %c0_105 = arith.constant 0 : index
    %c0_106 = arith.constant 0 : index
    %264 = vector.load %arg13[%c1_104, %c0_105, %c0_106] : memref<2x9x64xf32, #tpu.memory_space<vmem>>, vector<1x9x64xf32>
    %265 = vector.shape_cast %264 : vector<1x9x64xf32> to vector<9x64xf32>
    %266 = vector.shape_cast %263 : vector<9x64xf32> to vector<1x9x64xf32>
    tpu.vector_store %arg13[%c1_104, %c0_105, %c0_106], %266 {strides = array<i32>} : memref<2x9x64xf32, #tpu.memory_space<vmem>>, vector<1x9x64xf32>,
    return
  }
  func.func @transform_0(%arg0: i32) -> (i32, i32, i32) {
    %c0_i32 = arith.constant 0 : i32
    %c0_i32_0 = arith.constant 0 : i32
    %c0_i32_1 = arith.constant 0 : i32
    return %arg0, %c0_i32, %c0_i32_0 : i32, i32, i32
  }
  func.func @transform_1(%arg0: i32) -> (i32, i32) {
    %c0_i32 = arith.constant 0 : i32
    %c0_i32_0 = arith.constant 0 : i32
    %c0_i32_1 = arith.constant 0 : i32
    return %c0_i32, %c0_i32_0 : i32, i32
  }
  func.func @transform_2(%arg0: i32) -> (i32, i32) {
    %c0_i32 = arith.constant 0 : i32
    %c0_i32_0 = arith.constant 0 : i32
    %c0_i32_1 = arith.constant 0 : i32
    return %c0_i32, %c0_i32_0 : i32, i32
  }
  func.func @transform_3(%arg0: i32) -> (i32, i32, i32) {
    %c0_i32 = arith.constant 0 : i32
    %c0_i32_0 = arith.constant 0 : i32
    %c0_i32_1 = arith.constant 0 : i32
    %c0_i32_2 = arith.constant 0 : i32
    return %c0_i32, %c0_i32_0, %c0_i32_1 : i32, i32, i32
  }
  func.func @transform_4(%arg0: i32) -> (i32, i32, i32) {
    %c0_i32 = arith.constant 0 : i32
    %c0_i32_0 = arith.constant 0 : i32
    %c0_i32_1 = arith.constant 0 : i32
    %c0_i32_2 = arith.constant 0 : i32
    return %c0_i32, %c0_i32_0, %c0_i32_1 : i32, i32, i32
  }
  func.func @transform_5(%arg0: i32) -> (i32, i32) {
    %c0_i32 = arith.constant 0 : i32
    %c0_i32_0 = arith.constant 0 : i32
    %c0_i32_1 = arith.constant 0 : i32
    return %c0_i32, %c0_i32_0 : i32, i32
  }
  func.func @transform_6(%arg0: i32) -> (i32, i32) {
    %c0_i32 = arith.constant 0 : i32
    %c0_i32_0 = arith.constant 0 : i32
    %c0_i32_1 = arith.constant 0 : i32
    return %c0_i32, %c0_i32_0 : i32, i32
  }
  func.func @transform_7(%arg0: i32) -> (i32, i32) {
    %c0_i32 = arith.constant 0 : i32
    %c0_i32_0 = arith.constant 0 : i32
    %c0_i32_1 = arith.constant 0 : i32
    return %c0_i32, %c0_i32_0 : i32, i32
  }
  func.func @transform_8(%arg0: i32) -> (i32, i32) {
    %c0_i32 = arith.constant 0 : i32
    %c0_i32_0 = arith.constant 0 : i32
    %c0_i32_1 = arith.constant 0 : i32
    return %c0_i32, %c0_i32_0 : i32, i32
  }
  func.func @transform_9(%arg0: i32) -> (i32, i32) {
    %c0_i32 = arith.constant 0 : i32
    %c0_i32_0 = arith.constant 0 : i32
    %c0_i32_1 = arith.constant 0 : i32
    return %c0_i32, %c0_i32_0 : i32, i32
  }
  func.func @transform_10(%arg0: i32) -> (i32, i32) {
    %c0_i32 = arith.constant 0 : i32
    %c0_i32_0 = arith.constant 0 : i32
    %c0_i32_1 = arith.constant 0 : i32
    return %c0_i32, %c0_i32_0 : i32, i32
  }
  func.func @transform_11(%arg0: i32) -> (i32, i32) {
    %c0_i32 = arith.constant 0 : i32
    %c0_i32_0 = arith.constant 0 : i32
    %c0_i32_1 = arith.constant 0 : i32
    return %c0_i32, %c0_i32_0 : i32, i32
  }
  func.func @transform_12(%arg0: i32) -> (i32, i32, i32) {
    %c0_i32 = arith.constant 0 : i32
    %c0_i32_0 = arith.constant 0 : i32
    %c0_i32_1 = arith.constant 0 : i32
    return %arg0, %c0_i32, %c0_i32_0 : i32, i32, i32
  }
}

module attributes {stable_mosaic.version = 11 : i64} {
  func.func @_bottleneck_kernel(%arg0: memref<2x64xf32, #tpu.memory_space<vmem>>, %arg1: memref<64x32xf32, #tpu.memory_space<vmem>>, %arg2: memref<1x32xf32, #tpu.memory_space<vmem>>, %arg3: memref<32x64xf32, #tpu.memory_space<vmem>>, %arg4: memref<1x64xf32, #tpu.memory_space<vmem>>, %arg5: memref<2x64xf32, #tpu.memory_space<vmem>>) attributes {dimension_semantics = [], scalar_prefetch = 0 : i64, scratch_operands = 0 : i64, tpu.core_type = #tpu.core_type<tc>} {
    %c0 = arith.constant 0 : index
    %c0_0 = arith.constant 0 : index
    %0 = vector.load %arg0[%c0, %c0_0] : memref<2x64xf32, #tpu.memory_space<vmem>>, vector<2x64xf32>
    %c0_1 = arith.constant 0 : index
    %c0_2 = arith.constant 0 : index
    %1 = vector.load %arg1[%c0_1, %c0_2] : memref<64x32xf32, #tpu.memory_space<vmem>>, vector<64x32xf32>
    %cst = arith.constant dense<0.000000e+00> : vector<2x32xf32>
    %2 = tpu.matmul %0, %1, %cst {dimension_numbers = #tpu.dot_dimension_numbers<[1], [0], [0], [1], [0, 0, 1, 1], [], []>} : vector<2x64xf32>, vector<64x32xf32>, vector<2x32xf32> -> vector<2x32xf32>
    %c0_3 = arith.constant 0 : index
    %c0_4 = arith.constant 0 : index
    %3 = vector.load %arg2[%c0_3, %c0_4] : memref<1x32xf32, #tpu.memory_space<vmem>>, vector<1x32xf32>
    %4 = vector.broadcast %3 : vector<1x32xf32> to vector<2x32xf32>
    %5 = arith.addf %2, %4 : vector<2x32xf32>
    %c0_5 = arith.constant 0 : index
    %c0_6 = arith.constant 0 : index
    %6 = vector.load %arg3[%c0_5, %c0_6] : memref<32x64xf32, #tpu.memory_space<vmem>>, vector<32x64xf32>
    %cst_7 = arith.constant dense<0.000000e+00> : vector<2x64xf32>
    %7 = tpu.matmul %5, %6, %cst_7 {dimension_numbers = #tpu.dot_dimension_numbers<[1], [0], [0], [1], [0, 0, 1, 1], [], []>} : vector<2x32xf32>, vector<32x64xf32>, vector<2x64xf32> -> vector<2x64xf32>
    %c0_8 = arith.constant 0 : index
    %c0_9 = arith.constant 0 : index
    %8 = vector.load %arg4[%c0_8, %c0_9] : memref<1x64xf32, #tpu.memory_space<vmem>>, vector<1x64xf32>
    %9 = vector.broadcast %8 : vector<1x64xf32> to vector<2x64xf32>
    %10 = arith.addf %7, %9 : vector<2x64xf32>
    %c0_10 = arith.constant 0 : index
    %c0_11 = arith.constant 0 : index
    %11 = vector.load %arg5[%c0_10, %c0_11] : memref<2x64xf32, #tpu.memory_space<vmem>>, vector<2x64xf32>
    tpu.vector_store %arg5[%c0_10, %c0_11], %10 {strides = array<i32>} : memref<2x64xf32, #tpu.memory_space<vmem>>, vector<2x64xf32>,
    return
  }
}

module attributes {stable_mosaic.version = 11 : i64} {
  func.func @_linear_kernel(%arg0: i32, %arg1: memref<16x64xf32, #tpu.memory_space<vmem>>, %arg2: memref<64x192xf32, #tpu.memory_space<vmem>>, %arg3: memref<1x192xf32, #tpu.memory_space<vmem>>, %arg4: memref<16x192xf32, #tpu.memory_space<vmem>>) attributes {dimension_semantics = [#tpu.dimension_semantics<parallel>], iteration_bounds = array<i64: 1>, scalar_prefetch = 0 : i64, scratch_operands = 0 : i64, tpu.core_type = #tpu.core_type<tc>, window_params = [{transform_indices = @transform_0, window_bounds = array<i64: 16, 64>}, {pipeline_mode = #tpu.pipeline_mode<synchronous>, transform_indices = @transform_1, window_bounds = array<i64: 64, 192>}, {pipeline_mode = #tpu.pipeline_mode<synchronous>, transform_indices = @transform_2, window_bounds = array<i64: 1, 192>}, {transform_indices = @transform_3, window_bounds = array<i64: 16, 192>}]} {
    %c0 = arith.constant 0 : index
    %c0_0 = arith.constant 0 : index
    %0 = vector.load %arg1[%c0, %c0_0] : memref<16x64xf32, #tpu.memory_space<vmem>>, vector<16x64xf32>
    %c0_1 = arith.constant 0 : index
    %c0_2 = arith.constant 0 : index
    %1 = vector.load %arg2[%c0_1, %c0_2] : memref<64x192xf32, #tpu.memory_space<vmem>>, vector<64x192xf32>
    %cst = arith.constant dense<0.000000e+00> : vector<16x192xf32>
    %2 = tpu.matmul %0, %1, %cst {dimension_numbers = #tpu.dot_dimension_numbers<[1], [0], [0], [1], [0, 0, 1, 1], [], []>} : vector<16x64xf32>, vector<64x192xf32>, vector<16x192xf32> -> vector<16x192xf32>
    %c0_3 = arith.constant 0 : index
    %c0_4 = arith.constant 0 : index
    %3 = vector.load %arg3[%c0_3, %c0_4] : memref<1x192xf32, #tpu.memory_space<vmem>>, vector<1x192xf32>
    %4 = vector.broadcast %3 : vector<1x192xf32> to vector<16x192xf32>
    %5 = arith.addf %2, %4 : vector<16x192xf32>
    %c0_5 = arith.constant 0 : index
    %c0_6 = arith.constant 0 : index
    %6 = vector.load %arg4[%c0_5, %c0_6] : memref<16x192xf32, #tpu.memory_space<vmem>>, vector<16x192xf32>
    tpu.vector_store %arg4[%c0_5, %c0_6], %5 {strides = array<i32>} : memref<16x192xf32, #tpu.memory_space<vmem>>, vector<16x192xf32>,
    return
  }
  func.func @transform_0(%arg0: i32) -> (i32, i32) {
    %c0_i32 = arith.constant 0 : i32
    %c0_i32_0 = arith.constant 0 : i32
    return %arg0, %c0_i32 : i32, i32
  }
  func.func @transform_1(%arg0: i32) -> (i32, i32) {
    %c0_i32 = arith.constant 0 : i32
    %c0_i32_0 = arith.constant 0 : i32
    %c0_i32_1 = arith.constant 0 : i32
    return %c0_i32, %c0_i32_0 : i32, i32
  }
  func.func @transform_2(%arg0: i32) -> (i32, i32) {
    %c0_i32 = arith.constant 0 : i32
    %c0_i32_0 = arith.constant 0 : i32
    %c0_i32_1 = arith.constant 0 : i32
    return %c0_i32, %c0_i32_0 : i32, i32
  }
  func.func @transform_3(%arg0: i32) -> (i32, i32) {
    %c0_i32 = arith.constant 0 : i32
    %c0_i32_0 = arith.constant 0 : i32
    return %arg0, %c0_i32 : i32, i32
  }
}

</mosaic_0001>

<llo_original>
// kernel: vit3d_forward.7
$region0: #{vit3d_forward.7}
  #allocation0 [shape = 'u32[]', space=smem, size = 0x4, offset = 0x4, fixed_abs, tag = 'smem constant byte address 0x4 - core index']
  #allocation1 [shape = 'u32[72,128]{1,0:T(1,128)}', space=vmem, size = 0x9000, scoped, tag = 'internal scratch']
  %s0 = inlined_call_operand.vmem [shape: f32[16,128], index: 0, kind: input, shape index: {}]
  %s1 = inlined_call_operand.vmem [shape: f32[128,64], index: 1, kind: input, shape index: {}]
  %s2 = inlined_call_operand.vmem [shape: f32[1,64], index: 2, kind: input, shape index: {}]
  %s3 = inlined_call_operand.vmem [shape: f32[16,64], index: 3, kind: output, shape index: {}]
  %s4 = sld [smem:[#allocation0]]
  $region22: #{vit3d_forward.7} parent=0
    _
  %s6 = ssub.s32 1, %s4
  %s7 = scalar_select 0, %s6, %s4
  // Predicated region
  $region2: #{vit3d_forward.7} parent=0 // pred_check
    _
  $region3: #{vit3d_forward.7} parent=0 // pred_check_branch
    %9 = sbr.rel (0) target = $region5
  $region4: #{vit3d_forward.7} parent=0 // pred_region
    _
  $region5: #{vit3d_forward.7} parent=0 // pred_fallthru
    _
  // Predicated region
  $region6: #{vit3d_forward.7} parent=0 // pred_check
    _
  $region7: #{vit3d_forward.7} parent=0 // pred_check_branch
    %11 = sbr.rel (0) target = $region9
  $region8: #{vit3d_forward.7} parent=0 // pred_region
    _
  $region9: #{vit3d_forward.7} parent=0 // pred_fallthru
    _
  // Predicated region
  $region10: #{vit3d_forward.7} parent=0 // pred_check
    _
  $region11: #{vit3d_forward.7} parent=0 // pred_check_branch
    %13 = sbr.rel (0) target = $region13
  $region12: #{vit3d_forward.7} parent=0 // pred_region
    _
  $region13: #{vit3d_forward.7} parent=0 // pred_fallthru
    _
  %v14 = vld [vmem:[%s0] sm:$0xff]
  %v15 = vld [vmem:[%s0 + $0x8] sm:$0xff]
  %v16 = vld [vmem:[%s1] sm:$0xff]
  %v17 = vld [vmem:[%s1 + $0x8] sm:$0xff]
  %v18 = vld [vmem:[%s1 + $0x10] sm:$0xff]
  %v19 = vld [vmem:[%s1 + $0x18] sm:$0xff]
  %v20 = vld [vmem:[%s1 + $0x20] sm:$0xff]
  %v21 = vld [vmem:[%s1 + $0x28] sm:$0xff]
  %v22 = vld [vmem:[%s1 + $0x30] sm:$0xff]
  %v23 = vld [vmem:[%s1 + $0x38] sm:$0xff]
  %v24 = vld [vmem:[%s1 + $0x40] sm:$0xff]
  %v25 = vld [vmem:[%s1 + $0x48] sm:$0xff]
  %v26 = vld [vmem:[%s1 + $0x50] sm:$0xff]
  %v27 = vld [vmem:[%s1 + $0x58] sm:$0xff]
  %v28 = vld [vmem:[%s1 + $0x60] sm:$0xff]
  %v29 = vld [vmem:[%s1 + $0x68] sm:$0xff]
  %v30 = vld [vmem:[%s1 + $0x70] sm:$0xff]
  %v31 = vld [vmem:[%s1 + $0x78] sm:$0xff]
  %v32 = vld [vmem:[%s2] sm:$0x1]
  %v34 = vperm.slane %v32, 0
  %36 = vmatpush.msra.mxu0 %v31
  %37 = vmatpush.msra.mxu0 %v30
  %38 = vmatpush.msra.mxu0 %v29
  %39 = vmatpush.msra.mxu0 %v28
  %40 = vmatpush.msra.mxu0 %v27
  %41 = vmatpush.msra.mxu0 %v26
  %42 = vmatpush.msra.mxu0 %v25
  %43 = vmatpush.msra.mxu0 %v24
  %44 = vmatpush.msra.mxu0 %v23
  %45 = vmatpush.msra.mxu0 %v22
  %46 = vmatpush.msra.mxu0 %v21
  %47 = vmatpush.msra.mxu0 %v20
  %48 = vmatpush.msra.mxu0 %v19
  %49 = vmatpush.msra.mxu0 %v18
  %50 = vmatpush.msra.mxu0 %v17
  %51 = vmatpush.msra.mxu0 %v16
  %52 = vmatmul.f32.gmra.mxu0 %v14
  %v53 = vpop.f32.mrf.mxu0
  %v54 = vadd.f32 %v34, %v53
  %55 = vmatmul.f32.gmra.mxu0 %v15
  %v56 = vpop.f32.mrf.mxu0
  %v57 = vadd.f32 %v34, %v56
  %58 = vdwg.mxu0
  %vm59 = vcmask 523264
  %60 = vst.msk [vmem:[%s3] sm:$0xff] %vm59, %v54
  %61 = vst.msk [vmem:[%s3 + $0x8] sm:$0xff] %vm59, %v57
  // Predicated region
  $region14: #{vit3d_forward.7} parent=0 // pred_check
    _
  $region15: #{vit3d_forward.7} parent=0 // pred_check_branch
    %63 = sbr.rel (0) target = $region17
  $region16: #{vit3d_forward.7} parent=0 // pred_region
    _
  $region17: #{vit3d_forward.7} parent=0 // pred_fallthru
    _
  // Predicated region
  $region18: #{vit3d_forward.7} parent=0 // pred_check
    _
  $region19: #{vit3d_forward.7} parent=0 // pred_check_branch
    %65 = sbr.rel (0) target = $region21
  $region20: #{vit3d_forward.7} parent=0 // pred_region
    _
  $region21: #{vit3d_forward.7} parent=0 // pred_fallthru
    _

// kernel: vit3d_forward.10
$region0: #{vit3d_forward.10}
  #allocation0 [shape = 'u32[]', space=smem, size = 0x4, offset = 0x4, fixed_abs, tag = 'smem constant byte address 0x4 - core index']
  #allocation1 [shape = 'u32[72,128]{1,0:T(1,128)}', space=vmem, size = 0x9000, scoped, tag = 'internal scratch']
  %s0 = inlined_call_operand.vmem [shape: f32[2,64], index: 0, kind: input, shape index: {}]
  %s1 = inlined_call_operand.vmem [shape: f32[64,32], index: 1, kind: input, shape index: {}]
  %s2 = inlined_call_operand.vmem [shape: f32[1,32], index: 2, kind: input, shape index: {}]
  %s3 = inlined_call_operand.vmem [shape: f32[32,64], index: 3, kind: input, shape index: {}]
  %s4 = inlined_call_operand.vmem [shape: f32[1,64], index: 4, kind: input, shape index: {}]
  %s5 = inlined_call_operand.vmem [shape: f32[2,64], index: 5, kind: output, shape index: {}]
  %s6 = sld [smem:[#allocation0]]
  $region30: #{vit3d_forward.10} parent=0
    _
  %s8 = ssub.s32 1, %s6
  %s9 = scalar_select 0, %s8, %s6
  // Predicated region
  $region2: #{vit3d_forward.10} parent=0 // pred_check
    _
  $region3: #{vit3d_forward.10} parent=0 // pred_check_branch
    %11 = sbr.rel (0) target = $region5
  $region4: #{vit3d_forward.10} parent=0 // pred_region
    _
  $region5: #{vit3d_forward.10} parent=0 // pred_fallthru
    _
  // Predicated region
  $region6: #{vit3d_forward.10} parent=0 // pred_check
    _
  $region7: #{vit3d_forward.10} parent=0 // pred_check_branch
    %13 = sbr.rel (0) target = $region9
  $region8: #{vit3d_forward.10} parent=0 // pred_region
    _
  $region9: #{vit3d_forward.10} parent=0 // pred_fallthru
    _
  // Predicated region
  $region10: #{vit3d_forward.10} parent=0 // pred_check
    _
  $region11: #{vit3d_forward.10} parent=0 // pred_check_branch
    %15 = sbr.rel (0) target = $region13
  $region12: #{vit3d_forward.10} parent=0 // pred_region
    _
  $region13: #{vit3d_forward.10} parent=0 // pred_fallthru
    _
  // Predicated region
  $region14: #{vit3d_forward.10} parent=0 // pred_check
    _
  $region15: #{vit3d_forward.10} parent=0 // pred_check_branch
    %17 = sbr.rel (0) target = $region17
  $region16: #{vit3d_forward.10} parent=0 // pred_region
    _
  $region17: #{vit3d_forward.10} parent=0 // pred_fallthru
    _
  // Predicated region
  $region18: #{vit3d_forward.10} parent=0 // pred_check
    _
  $region19: #{vit3d_forward.10} parent=0 // pred_check_branch
    %19 = sbr.rel (0) target = $region21
  $region20: #{vit3d_forward.10} parent=0 // pred_region
    _
  $region21: #{vit3d_forward.10} parent=0 // pred_fallthru
    _
  %v20 = vld [vmem:[%s0] sm:$0x3]
  %v21 = vld [vmem:[%s1] sm:$0xff]
  %v22 = vld [vmem:[%s1 + $0x8] sm:$0xff]
  %v23 = vld [vmem:[%s1 + $0x10] sm:$0xff]
  %v24 = vld [vmem:[%s1 + $0x18] sm:$0xff]
  %v25 = vld [vmem:[%s1 + $0x20] sm:$0xff]
  %v26 = vld [vmem:[%s1 + $0x28] sm:$0xff]
  %v27 = vld [vmem:[%s1 + $0x30] sm:$0xff]
  %v28 = vld [vmem:[%s1 + $0x38] sm:$0xff]
  %v29 = vld [vmem:[%s2] sm:$0x1]
  %v31 = vperm.slane %v29, 0
  %vm33 = vcmask 523264
  %v35 = vsel %vm33, %v20, 0
  %37 = vmatpush.msra.mxu0 0.0
  %38 = vmatpush.msra.mxu0 0.0
  %39 = vmatpush.msra.mxu0 0.0
  %40 = vmatpush.msra.mxu0 0.0
  %41 = vmatpush.msra.mxu0 0.0
  %42 = vmatpush.msra.mxu0 0.0
  %43 = vmatpush.msra.mxu0 0.0
  %44 = vmatpush.msra.mxu0 0.0
  %45 = vmatpush.msra.mxu0 %v28
  %46 = vmatpush.msra.mxu0 %v27
  %47 = vmatpush.msra.mxu0 %v26
  %48 = vmatpush.msra.mxu0 %v25
  %49 = vmatpush.msra.mxu0 %v24
  %50 = vmatpush.msra.mxu0 %v23
  %51 = vmatpush.msra.mxu0 %v22
  %52 = vmatpush.msra.mxu0 %v21
  %53 = vmatmul.f32.gmra.mxu0 %v35
  %v54 = vpop.f32.mrf.mxu0
  %v55 = vadd.f32 %v31, %v54
  %56 = vdwg.mxu0
  %v57 = vld [vmem:[%s3] sm:$0xff]
  %v58 = vld [vmem:[%s3 + $0x8] sm:$0xff]
  %v59 = vld [vmem:[%s3 + $0x10] sm:$0xff]
  %v60 = vld [vmem:[%s3 + $0x18] sm:$0xff]
  %v61 = vld [vmem:[%s4] sm:$0x1]
  %v63 = vperm.slane %v61, 0
  %vm65 = vcmask 261120
  %v67 = vsel %vm65, %v55, 0
  %69 = vmatpush.msra.mxu0 0.0
  %70 = vmatpush.msra.mxu0 0.0
  %71 = vmatpush.msra.mxu0 0.0
  %72 = vmatpush.msra.mxu0 0.0
  %73 = vmatpush.msra.mxu0 0.0
  %74 = vmatpush.msra.mxu0 0.0
  %75 = vmatpush.msra.mxu0 0.0
  %76 = vmatpush.msra.mxu0 0.0
  %77 = vmatpush.msra.mxu0 0.0
  %78 = vmatpush.msra.mxu0 0.0
  %79 = vmatpush.msra.mxu0 0.0
  %80 = vmatpush.msra.mxu0 0.0
  %81 = vmatpush.msra.mxu0 %v60
  %82 = vmatpush.msra.mxu0 %v59
  %83 = vmatpush.msra.mxu0 %v58
  %84 = vmatpush.msra.mxu0 %v57
  %85 = vmatmul.f32.gmra.mxu0 %v67
  %v86 = vpop.f32.mrf.mxu0
  %v87 = vadd.f32 %v63, %v86
  %88 = vdwg.mxu0
  %vm89 = vcmask 517120
  %90 = vst.msk [vmem:[%s5] sm:$0x3] %vm89, %v87
  // Predicated region
  $region22: #{vit3d_forward.10} parent=0 // pred_check
    _
  $region23: #{vit3d_forward.10} parent=0 // pred_check_branch
    %92 = sbr.rel (0) target = $region25
  $region24: #{vit3d_forward.10} parent=0 // pred_region
    _
  $region25: #{vit3d_forward.10} parent=0 // pred_fallthru
    _
  // Predicated region
  $region26: #{vit3d_forward.10} parent=0 // pred_check
    _
  $region27: #{vit3d_forward.10} parent=0 // pred_check_branch
    %94 = sbr.rel (0) target = $region29
  $region28: #{vit3d_forward.10} parent=0 // pred_region
    _
  $region29: #{vit3d_forward.10} parent=0 // pred_fallthru
    _

// kernel: vit3d_forward.8
$region0: #{vit3d_forward.8}
  #allocation0 [shape = 'u32[]', space=smem, size = 0x4, offset = 0x4, fixed_abs, tag = 'smem constant byte address 0x4 - core index']
  #allocation1 [shape = 'u32[72,128]{1,0:T(1,128)}', space=vmem, size = 0x9000, scoped, tag = 'internal scratch']
  %s0 = inlined_call_operand.vmem [shape: f32[2,9,64], index: 0, kind: input, shape index: {}]
  %s1 = inlined_call_operand.vmem [shape: f32[1,64], index: 1, kind: input, shape index: {}]
  %s2 = inlined_call_operand.vmem [shape: f32[1,64], index: 2, kind: input, shape index: {}]
  %s3 = inlined_call_operand.vmem [shape: f32[12,64,16], index: 3, kind: input, shape index: {}]
  %s4 = inlined_call_operand.vmem [shape: f32[4,16,64], index: 4, kind: input, shape index: {}]
  %s5 = inlined_call_operand.vmem [shape: f32[1,64], index: 5, kind: input, shape index: {}]
  %s6 = inlined_call_operand.vmem [shape: f32[1,64], index: 6, kind: input, shape index: {}]
  %s7 = inlined_call_operand.vmem [shape: f32[1,64], index: 7, kind: input, shape index: {}]
  %s8 = inlined_call_operand.vmem [shape: f32[64,128], index: 8, kind: input, shape index: {}]
  %s9 = inlined_call_operand.vmem [shape: f32[1,128], index: 9, kind: input, shape index: {}]
  %s10 = inlined_call_operand.vmem [shape: f32[128,64], index: 10, kind: input, shape index: {}]
  %s11 = inlined_call_operand.vmem [shape: f32[1,64], index: 11, kind: input, shape index: {}]
  %s12 = inlined_call_operand.vmem [shape: f32[2,9,64], index: 12, kind: output, shape index: {}]
  %s13 = sld [smem:[#allocation0]]
  $region58: #{vit3d_forward.8} parent=0
    _
  %s15 = ssub.s32 1, %s13
  %s16 = scalar_select 0, %s15, %s13
  // Predicated region
  $region2: #{vit3d_forward.8} parent=0 // pred_check
    _
  $region3: #{vit3d_forward.8} parent=0 // pred_check_branch
    %18 = sbr.rel (0) target = $region5
  $region4: #{vit3d_forward.8} parent=0 // pred_region
    _
  $region5: #{vit3d_forward.8} parent=0 // pred_fallthru
    _
  // Predicated region
  $region6: #{vit3d_forward.8} parent=0 // pred_check
    _
  $region7: #{vit3d_forward.8} parent=0 // pred_check_branch
    %20 = sbr.rel (0) target = $region9
  $region8: #{vit3d_forward.8} parent=0 // pred_region
    _
  $region9: #{vit3d_forward.8} parent=0 // pred_fallthru
    _
  // Predicated region
  $region10: #{vit3d_forward.8} parent=0 // pred_check
    _
  $region11: #{vit3d_forward.8} parent=0 // pred_check_branch
    %22 = sbr.rel (0) target = $region13
  $region12: #{vit3d_forward.8} parent=0 // pred_region
    _
  $region13: #{vit3d_forward.8} parent=0 // pred_fallthru
    _
  // Predicated region
  $region14: #{vit3d_forward.8} parent=0 // pred_check
    _
  $region15: #{vit3d_forward.8} parent=0 // pred_check_branch
    %24 = sbr.rel (0) target = $region17
  $region16: #{vit3d_forward.8} parent=0 // pred_region
    _
  $region17: #{vit3d_forward.8} parent=0 // pred_fallthru
    _
  // Predicated region
  $region18: #{vit3d_forward.8} parent=0 // pred_check
    _
  $region19: #{vit3d_forward.8} parent=0 // pred_check_branch
    %26 = sbr.rel (0) target = $region21
  $region20: #{vit3d_forward.8} parent=0 // pred_region
    _
  $region21: #{vit3d_forward.8} parent=0 // pred_fallthru
    _
  // Predicated region
  $region22: #{vit3d_forward.8} parent=0 // pred_check
    _
  $region23: #{vit3d_forward.8} parent=0 // pred_check_branch
    %28 = sbr.rel (0) target = $region25
  $region24: #{vit3d_forward.8} parent=0 // pred_region
    _
  $region25: #{vit3d_forward.8} parent=0 // pred_fallthru
    _
  // Predicated region
  $region26: #{vit3d_forward.8} parent=0 // pred_check
    _
  $region27: #{vit3d_forward.8} parent=0 // pred_check_branch
    %30 = sbr.rel (0) target = $region29
  $region28: #{vit3d_forward.8} parent=0 // pred_region
    _
  $region29: #{vit3d_forward.8} parent=0 // pred_fallthru
    _
  // Predicated region
  $region30: #{vit3d_forward.8} parent=0 // pred_check
    _
  $region31: #{vit3d_forward.8} parent=0 // pred_check_branch
    %32 = sbr.rel (0) target = $region33
  $region32: #{vit3d_forward.8} parent=0 // pred_region
    _
  $region33: #{vit3d_forward.8} parent=0 // pred_fallthru
    _
  // Predicated region
  $region34: #{vit3d_forward.8} parent=0 // pred_check
    _
  $region35: #{vit3d_forward.8} parent=0 // pred_check_branch
    %34 = sbr.rel (0) target = $region37
  $region36: #{vit3d_forward.8} parent=0 // pred_region
    _
  $region37: #{vit3d_forward.8} parent=0 // pred_fallthru
    _
  // Predicated region
  $region38: #{vit3d_forward.8} parent=0 // pred_check
    _
  $region39: #{vit3d_forward.8} parent=0 // pred_check_branch
    %36 = sbr.rel (0) target = $region41
  $region40: #{vit3d_forward.8} parent=0 // pred_region
    _
  $region41: #{vit3d_forward.8} parent=0 // pred_fallthru
    _
  // Predicated region
  $region42: #{vit3d_forward.8} parent=0 // pred_check
    _
  $region43: #{vit3d_forward.8} parent=0 // pred_check_branch
    %38 = sbr.rel (0) target = $region45
  $region44: #{vit3d_forward.8} parent=0 // pred_region
    _
  $region45: #{vit3d_forward.8} parent=0 // pred_fallthru
    _
  // Predicated region
  $region46: #{vit3d_forward.8} parent=0 // pred_check
    _
  $region47: #{vit3d_forward.8} parent=0 // pred_check_branch
    %40 = sbr.rel (0) target = $region49
  $region48: #{vit3d_forward.8} parent=0 // pred_region
    _
  $region49: #{vit3d_forward.8} parent=0 // pred_fallthru
    _
  %v41 = vld [vmem:[%s1] sm:$0x1]
  %v42 = vld [vmem:[%s2] sm:$0x1]
  %v43 = vld [vmem:[%s6] sm:$0x1]
  %v44 = vld [vmem:[%s7] sm:$0x1]
  %v45 = vld [vmem:[%s3] sm:$0xff]
  %v46 = vld [vmem:[%s3 + $0x8] sm:$0xff]
  %v47 = vld [vmem:[%s3 + $0x10] sm:$0xff]
  %v48 = vld [vmem:[%s3 + $0x18] sm:$0xff]
  %v49 = vld [vmem:[%s3 + $0x20] sm:$0xff]
  %v50 = vld [vmem:[%s3 + $0x28] sm:$0xff]
  %v51 = vld [vmem:[%s3 + $0x30] sm:$0xff]
  %v52 = vld [vmem:[%s3 + $0x38] sm:$0xff]
  %v53 = vld [vmem:[%s3 + $0x40] sm:$0xff]
  %v54 = vld [vmem:[%s3 + $0x48] sm:$0xff]
  %v55 = vld [vmem:[%s3 + $0x50] sm:$0xff]
  %v56 = vld [vmem:[%s3 + $0x58] sm:$0xff]
  %v57 = vld [vmem:[%s3 + $0x60] sm:$0xff]
  %v58 = vld [vmem:[%s3 + $0x68] sm:$0xff]
  %v59 = vld [vmem:[%s3 + $0x70] sm:$0xff]
  %v60 = vld [vmem:[%s3 + $0x78] sm:$0xff]
  %v61 = vld [vmem:[%s3 + $0x80] sm:$0xff]
  %v62 = vld [vmem:[%s3 + $0x88] sm:$0xff]
  %v63 = vld [vmem:[%s3 + $0x90] sm:$0xff]
  %v64 = vld [vmem:[%s3 + $0x98] sm:$0xff]
  %v65 = vld [vmem:[%s3 + $0xa0] sm:$0xff]
  %v66 = vld [vmem:[%s3 + $0xa8] sm:$0xff]
  %v67 = vld [vmem:[%s3 + $0xb0] sm:$0xff]
  %v68 = vld [vmem:[%s3 + $0xb8] sm:$0xff]
  %v69 = vld [vmem:[%s3 + $0xc0] sm:$0xff]
  %v70 = vld [vmem:[%s3 + $0xc8] sm:$0xff]
  %v71 = vld [vmem:[%s3 + $0xd0] sm:$0xff]
  %v72 = vld [vmem:[%s3 + $0xd8] sm:$0xff]
  %v73 = vld [vmem:[%s3 + $0xe0] sm:$0xff]
  %v74 = vld [vmem:[%s3 + $0xe8] sm:$0xff]
  %v75 = vld [vmem:[%s3 + $0xf0] sm:$0xff]
  %v76 = vld [vmem:[%s3 + $0xf8] sm:$0xff]
  %v77 = vld [vmem:[%s3 + $0x100] sm:$0xff]
  %v78 = vld [vmem:[%s3 + $0x108] sm:$0xff]
  %v79 = vld [vmem:[%s3 + $0x110] sm:$0xff]
  %v80 = vld [vmem:[%s3 + $0x118] sm:$0xff]
  %v81 = vld [vmem:[%s3 + $0x120] sm:$0xff]
  %v82 = vld [vmem:[%s3 + $0x128] sm:$0xff]
  %v83 = vld [vmem:[%s3 + $0x130] sm:$0xff]
  %v84 = vld [vmem:[%s3 + $0x138] sm:$0xff]
  %v85 = vld [vmem:[%s3 + $0x140] sm:$0xff]
  %v86 = vld [vmem:[%s3 + $0x148] sm:$0xff]
  %v87 = vld [vmem:[%s3 + $0x150] sm:$0xff]
  %v88 = vld [vmem:[%s3 + $0x158] sm:$0xff]
  %v89 = vld [vmem:[%s3 + $0x160] sm:$0xff]
  %v90 = vld [vmem:[%s3 + $0x168] sm:$0xff]
  %v91 = vld [vmem:[%s3 + $0x170] sm:$0xff]
  %v92 = vld [vmem:[%s3 + $0x178] sm:$0xff]
  %v93 = vld [vmem:[%s3 + $0x180] sm:$0xff]
  %v94 = vld [vmem:[%s3 + $0x188] sm:$0xff]
  %v95 = vld [vmem:[%s3 + $0x190] sm:$0xff]
  %v96 = vld [vmem:[%s3 + $0x198] sm:$0xff]
  %v97 = vld [vmem:[%s3 + $0x1a0] sm:$0xff]
  %v98 = vld [vmem:[%s3 + $0x1a8] sm:$0xff]
  %v99 = vld [vmem:[%s3 + $0x1b0] sm:$0xff]
  %v100 = vld [vmem:[%s3 + $0x1b8] sm:$0xff]
  %v101 = vld [vmem:[%s3 + $0x1c0] sm:$0xff]
  %v102 = vld [vmem:[%s3 + $0x1c8] sm:$0xff]
  %v103 = vld [vmem:[%s3 + $0x1d0] sm:$0xff]
  %v104 = vld [vmem:[%s3 + $0x1d8] sm:$0xff]
  %v105 = vld [vmem:[%s3 + $0x1e0] sm:$0xff]
  %v106 = vld [vmem:[%s3 + $0x1e8] sm:$0xff]
  %v107 = vld [vmem:[%s3 + $0x1f0] sm:$0xff]
  %v108 = vld [vmem:[%s3 + $0x1f8] sm:$0xff]
  %v109 = vld [vmem:[%s3 + $0x200] sm:$0xff]
  %v110 = vld [vmem:[%s3 + $0x208] sm:$0xff]
  %v111 = vld [vmem:[%s3 + $0x210] sm:$0xff]
  %v112 = vld [vmem:[%s3 + $0x218] sm:$0xff]
  %v113 = vld [vmem:[%s3 + $0x220] sm:$0xff]
  %v114 = vld [vmem:[%s3 + $0x228] sm:$0xff]
  %v115 = vld [vmem:[%s3 + $0x230] sm:$0xff]
  %v116 = vld [vmem:[%s3 + $0x238] sm:$0xff]
  %v117 = vld [vmem:[%s3 + $0x240] sm:$0xff]
  %v118 = vld [vmem:[%s3 + $0x248] sm:$0xff]
  %v119 = vld [vmem:[%s3 + $0x250] sm:$0xff]
  %v120 = vld [vmem:[%s3 + $0x258] sm:$0xff]
  %v121 = vld [vmem:[%s3 + $0x260] sm:$0xff]
  %v122 = vld [vmem:[%s3 + $0x268] sm:$0xff]
  %v123 = vld [vmem:[%s3 + $0x270] sm:$0xff]
  %v124 = vld [vmem:[%s3 + $0x278] sm:$0xff]
  %v125 = vld [vmem:[%s3 + $0x280] sm:$0xff]
  %v126 = vld [vmem:[%s3 + $0x288] sm:$0xff]
  %v127 = vld [vmem:[%s3 + $0x290] sm:$0xff]
  %v128 = vld [vmem:[%s3 + $0x298] sm:$0xff]
  %v129 = vld [vmem:[%s3 + $0x2a0] sm:$0xff]
  %v130 = vld [vmem:[%s3 + $0x2a8] sm:$0xff]
  %v131 = vld [vmem:[%s3 + $0x2b0] sm:$0xff]
  %v132 = vld [vmem:[%s3 + $0x2b8] sm:$0xff]
  %v133 = vld [vmem:[%s3 + $0x2c0] sm:$0xff]
  %v134 = vld [vmem:[%s3 + $0x2c8] sm:$0xff]
  %v135 = vld [vmem:[%s3 + $0x2d0] sm:$0xff]
  %v136 = vld [vmem:[%s3 + $0x2d8] sm:$0xff]
  %v137 = vld [vmem:[%s3 + $0x2e0] sm:$0xff]
  %v138 = vld [vmem:[%s3 + $0x2e8] sm:$0xff]
  %v139 = vld [vmem:[%s3 + $0x2f0] sm:$0xff]
  %v140 = vld [vmem:[%s3 + $0x2f8] sm:$0xff]
  %v141 = vld [vmem:[%s4] sm:$0xff]
  %v142 = vld [vmem:[%s4 + $0x8] sm:$0xff]
  %v143 = vld [vmem:[%s4 + $0x10] sm:$0xff]
  %v144 = vld [vmem:[%s4 + $0x18] sm:$0xff]
  %v145 = vld [vmem:[%s4 + $0x20] sm:$0xff]
  %v146 = vld [vmem:[%s4 + $0x28] sm:$0xff]
  %v147 = vld [vmem:[%s4 + $0x30] sm:$0xff]
  %v148 = vld [vmem:[%s4 + $0x38] sm:$0xff]
  %v149 = vld [vmem:[%s5] sm:$0x1]
  %v150 = vld [vmem:[%s8] sm:$0xff]
  %v151 = vld [vmem:[%s8 + $0x8] sm:$0xff]
  %v152 = vld [vmem:[%s8 + $0x10] sm:$0xff]
  %v153 = vld [vmem:[%s8 + $0x18] sm:$0xff]
  %v154 = vld [vmem:[%s8 + $0x20] sm:$0xff]
  %v155 = vld [vmem:[%s8 + $0x28] sm:$0xff]
  %v156 = vld [vmem:[%s8 + $0x30] sm:$0xff]
  %v157 = vld [vmem:[%s8 + $0x38] sm:$0xff]
  %v158 = vld [vmem:[%s9] sm:$0x1]
  %v159 = vld [vmem:[%s10] sm:$0xff]
  %v160 = vld [vmem:[%s10 + $0x8] sm:$0xff]
  %v161 = vld [vmem:[%s10 + $0x10] sm:$0xff]
  %v162 = vld [vmem:[%s10 + $0x18] sm:$0xff]
  %v163 = vld [vmem:[%s10 + $0x20] sm:$0xff]
  %v164 = vld [vmem:[%s10 + $0x28] sm:$0xff]
  %v165 = vld [vmem:[%s10 + $0x30] sm:$0xff]
  %v166 = vld [vmem:[%s10 + $0x38] sm:$0xff]
  %v167 = vld [vmem:[%s10 + $0x40] sm:$0xff]
  %v168 = vld [vmem:[%s10 + $0x48] sm:$0xff]
  %v169 = vld [vmem:[%s10 + $0x50] sm:$0xff]
  %v170 = vld [vmem:[%s10 + $0x58] sm:$0xff]
  %v171 = vld [vmem:[%s10 + $0x60] sm:$0xff]
  %v172 = vld [vmem:[%s10 + $0x68] sm:$0xff]
  %v173 = vld [vmem:[%s10 + $0x70] sm:$0xff]
  %v174 = vld [vmem:[%s10 + $0x78] sm:$0xff]
  %v175 = vld [vmem:[%s11] sm:$0x1]
  %v176 = vld [vmem:[%s0] sm:$0xff]
  %v177 = vld [vmem:[%s0 + $0x8] sm:$0x1]
  %vm178 = vcmask 523264
  %v179 = vsel %vm178, %v176, 0.0
  %180 = vadd.xlane.f32.xlu0 %v179
  %v181 = vpop.xlane.xlu0 %180
  %vm182 = vcmask 516096
  %v183 = vsel %vm182, %v177, 0.0
  %184 = vadd.xlane.f32.xlu0 %v183
  %v185 = vpop.xlane.xlu0 %184
  %v186 = vrcp.pop 64.0
  %v187 = vmul.f32 64.0, %v186
  %v188 = vsub.f32 1.0, %v187
  %v189 = vmul.f32 %v186, %v188
  %v190 = vadd.f32 %v186, %v189
  %vm191 = vweird.f32 %v186
  %v192 = vsel %vm191, %v186, %v190
  %v193 = vmul.f32 %v181, %v192
  %v194 = vmul.f32 %v185, %v192
  %v195 = vsub.f32 %v176, %v193
  %v196 = vsub.f32 %v177, %v194
  %v197 = vmul.f32 %v195, %v195
  %v198 = vmul.f32 %v196, %v196
  %v199 = vsel %vm178, %v197, 0.0
  %200 = vadd.xlane.f32.xlu0 %v199
  %v201 = vpop.xlane.xlu0 %200
  %v202 = vsel %vm182, %v198, 0.0
  %203 = vadd.xlane.f32.xlu0 %v202
  %v204 = vpop.xlane.xlu0 %203
  %v205 = vmul.f32 %v201, %v192
  %v206 = vmul.f32 %v204, %v192
  %v207 = vadd.f32 %v205, 1e-05
  %v208 = vadd.f32 %v206, 1e-05
  %v209 = vrsqrt.pop %v207
  %v210 = vmul.f32 %v209, %v207
  %v211 = vmul.f32 %v210, %v209
  %v212 = vmul.f32 0.5, %v211
  %v213 = vsub.f32 1.5, %v212
  %v214 = vmul.f32 %v209, %v213
  %vm215 = vweird.f32 %v207
  %vm216 = vweird.f32 %v209
  %vm217 = vmor %vm215, %vm216
  %v218 = vsel %vm217, %v209, %v214
  %v219 = vrsqrt.pop %v208
  %v220 = vmul.f32 %v219, %v208
  %v221 = vmul.f32 %v220, %v219
  %v222 = vmul.f32 0.5, %v221
  %v223 = vsub.f32 1.5, %v222
  %v224 = vmul.f32 %v219, %v223
  %vm225 = vweird.f32 %v208
  %vm226 = vweird.f32 %v219
  %vm227 = vmor %vm225, %vm226
  %v228 = vsel %vm227, %v219, %v224
  %v229 = vmul.f32 %v195, %v218
  %v230 = vmul.f32 %v196, %v228
  %v232 = vperm.slane %v41, 0
  %v234 = vmul.f32 %v229, %v232
  %v235 = vmul.f32 %v230, %v232
  %v237 = vperm.slane %v42, 0
  %v239 = vadd.f32 %v234, %v237
  %v240 = vadd.f32 %v235, %v237
  %v242 = vsel %vm178, %v239, 0
  %v245 = vsel %vm178, %v240, 0
  %247 = vmatpush.msra.mxu0 0.0
  %248 = vmatpush.msra.mxu0 0.0
  %249 = vmatpush.msra.mxu0 0.0
  %250 = vmatpush.msra.mxu0 0.0
  %251 = vmatpush.msra.mxu0 0.0
  %252 = vmatpush.msra.mxu0 0.0
  %253 = vmatpush.msra.mxu0 0.0
  %254 = vmatpush.msra.mxu0 0.0
  %255 = vmatpush.msra.mxu0 %v52
  %256 = vmatpush.msra.mxu0 %v51
  %257 = vmatpush.msra.mxu0 %v50
  %258 = vmatpush.msra.mxu0 %v49
  %259 = vmatpush.msra.mxu0 %v48
  %260 = vmatpush.msra.mxu0 %v47
  %261 = vmatpush.msra.mxu0 %v46
  %262 = vmatpush.msra.mxu0 %v45
  %263 = vmatmul.f32.gmra.mxu0 %v242
  %v264 = vpop.f32.mrf.mxu0
  %v265 = vadd.f32 0.0, %v264
  %266 = vmatmul.f32.gmra.mxu0 %v245
  %v267 = vpop.f32.mrf.mxu0
  %v268 = vadd.f32 0.0, %v267
  %269 = vdwg.mxu0
  %270 = vmatpush.msra.mxu0 0.0
  %271 = vmatpush.msra.mxu0 0.0
  %272 = vmatpush.msra.mxu0 0.0
  %273 = vmatpush.msra.mxu0 0.0
  %274 = vmatpush.msra.mxu0 0.0
  %275 = vmatpush.msra.mxu0 0.0
  %276 = vmatpush.msra.mxu0 0.0
  %277 = vmatpush.msra.mxu0 0.0
  %278 = vmatpush.msra.mxu0 %v60
  %279 = vmatpush.msra.mxu0 %v59
  %280 = vmatpush.msra.mxu0 %v58
  %281 = vmatpush.msra.mxu0 %v57
  %282 = vmatpush.msra.mxu0 %v56
  %283 = vmatpush.msra.mxu0 %v55
  %284 = vmatpush.msra.mxu0 %v54
  %285 = vmatpush.msra.mxu0 %v53
  %286 = vmatmul.f32.gmra.mxu0 %v242
  %v287 = vpop.f32.mrf.mxu0
  %v288 = vadd.f32 0.0, %v287
  %289 = vmatmul.f32.gmra.mxu0 %v245
  %v290 = vpop.f32.mrf.mxu0
  %v291 = vadd.f32 0.0, %v290
  %292 = vdwg.mxu0
  %293 = vmatpush.msra.mxu0 0.0
  %294 = vmatpush.msra.mxu0 0.0
  %295 = vmatpush.msra.mxu0 0.0
  %296 = vmatpush.msra.mxu0 0.0
  %297 = vmatpush.msra.mxu0 0.0
  %298 = vmatpush.msra.mxu0 0.0
  %299 = vmatpush.msra.mxu0 0.0
  %300 = vmatpush.msra.mxu0 0.0
  %301 = vmatpush.msra.mxu0 %v68
  %302 = vmatpush.msra.mxu0 %v67
  %303 = vmatpush.msra.mxu0 %v66
  %304 = vmatpush.msra.mxu0 %v65
  %305 = vmatpush.msra.mxu0 %v64
  %306 = vmatpush.msra.mxu0 %v63
  %307 = vmatpush.msra.mxu0 %v62
  %308 = vmatpush.msra.mxu0 %v61
  %309 = vmatmul.f32.gmra.mxu0 %v242
  %v310 = vpop.f32.mrf.mxu0
  %v311 = vadd.f32 0.0, %v310
  %312 = vmatmul.f32.gmra.mxu0 %v245
  %v313 = vpop.f32.mrf.mxu0
  %v314 = vadd.f32 0.0, %v313
  %315 = vdwg.mxu0
  %316 = vmatpush.msra.mxu0 0.0
  %317 = vmatpush.msra.mxu0 0.0
  %318 = vmatpush.msra.mxu0 0.0
  %319 = vmatpush.msra.mxu0 0.0
  %320 = vmatpush.msra.mxu0 0.0
  %321 = vmatpush.msra.mxu0 0.0
  %322 = vmatpush.msra.mxu0 0.0
  %323 = vmatpush.msra.mxu0 0.0
  %324 = vmatpush.msra.mxu0 %v76
  %325 = vmatpush.msra.mxu0 %v75
  %326 = vmatpush.msra.mxu0 %v74
  %327 = vmatpush.msra.mxu0 %v73
  %328 = vmatpush.msra.mxu0 %v72
  %329 = vmatpush.msra.mxu0 %v71
  %330 = vmatpush.msra.mxu0 %v70
  %331 = vmatpush.msra.mxu0 %v69
  %332 = vmatmul.f32.gmra.mxu0 %v242
  %v333 = vpop.f32.mrf.mxu0
  %v334 = vadd.f32 0.0, %v333
  %335 = vmatmul.f32.gmra.mxu0 %v245
  %v336 = vpop.f32.mrf.mxu0
  %v337 = vadd.f32 0.0, %v336
  %338 = vdwg.mxu0
  %339 = vmatpush.msra.mxu0 0.0
  %340 = vmatpush.msra.mxu0 0.0
  %341 = vmatpush.msra.mxu0 0.0
  %342 = vmatpush.msra.mxu0 0.0
  %343 = vmatpush.msra.mxu0 0.0
  %344 = vmatpush.msra.mxu0 0.0
  %345 = vmatpush.msra.mxu0 0.0
  %346 = vmatpush.msra.mxu0 0.0
  %347 = vmatpush.msra.mxu0 %v84
  %348 = vmatpush.msra.mxu0 %v83
  %349 = vmatpush.msra.mxu0 %v82
  %350 = vmatpush.msra.mxu0 %v81
  %351 = vmatpush.msra.mxu0 %v80
  %352 = vmatpush.msra.mxu0 %v79
  %353 = vmatpush.msra.mxu0 %v78
  %354 = vmatpush.msra.mxu0 %v77
  %355 = vmatmul.f32.gmra.mxu0 %v242
  %v356 = vpop.f32.mrf.mxu0
  %v357 = vadd.f32 0.0, %v356
  %358 = vmatmul.f32.gmra.mxu0 %v245
  %v359 = vpop.f32.mrf.mxu0
  %v360 = vadd.f32 0.0, %v359
  %361 = vdwg.mxu0
  %362 = vmatpush.msra.mxu0 0.0
  %363 = vmatpush.msra.mxu0 0.0
  %364 = vmatpush.msra.mxu0 0.0
  %365 = vmatpush.msra.mxu0 0.0
  %366 = vmatpush.msra.mxu0 0.0
  %367 = vmatpush.msra.mxu0 0.0
  %368 = vmatpush.msra.mxu0 0.0
  %369 = vmatpush.msra.mxu0 0.0
  %370 = vmatpush.msra.mxu0 %v92
  %371 = vmatpush.msra.mxu0 %v91
  %372 = vmatpush.msra.mxu0 %v90
  %373 = vmatpush.msra.mxu0 %v89
  %374 = vmatpush.msra.mxu0 %v88
  %375 = vmatpush.msra.mxu0 %v87
  %376 = vmatpush.msra.mxu0 %v86
  %377 = vmatpush.msra.mxu0 %v85
  %378 = vmatmul.f32.gmra.mxu0 %v242
  %v379 = vpop.f32.mrf.mxu0
  %v380 = vadd.f32 0.0, %v379
  %381 = vmatmul.f32.gmra.mxu0 %v245
  %v382 = vpop.f32.mrf.mxu0
  %v383 = vadd.f32 0.0, %v382
  %384 = vdwg.mxu0
  %385 = vmatpush.msra.mxu0 0.0
  %386 = vmatpush.msra.mxu0 0.0
  %387 = vmatpush.msra.mxu0 0.0
  %388 = vmatpush.msra.mxu0 0.0
  %389 = vmatpush.msra.mxu0 0.0
  %390 = vmatpush.msra.mxu0 0.0
  %391 = vmatpush.msra.mxu0 0.0
  %392 = vmatpush.msra.mxu0 0.0
  %393 = vmatpush.msra.mxu0 %v100
  %394 = vmatpush.msra.mxu0 %v99
  %395 = vmatpush.msra.mxu0 %v98
  %396 = vmatpush.msra.mxu0 %v97
  %397 = vmatpush.msra.mxu0 %v96
  %398 = vmatpush.msra.mxu0 %v95
  %399 = vmatpush.msra.mxu0 %v94
  %400 = vmatpush.msra.mxu0 %v93
  %401 = vmatmul.f32.gmra.mxu0 %v242
  %v402 = vpop.f32.mrf.mxu0
  %v403 = vadd.f32 0.0, %v402
  %404 = vmatmul.f32.gmra.mxu0 %v245
  %v405 = vpop.f32.mrf.mxu0
  %v406 = vadd.f32 0.0, %v405
  %407 = vdwg.mxu0
  %408 = vmatpush.msra.mxu0 0.0
  %409 = vmatpush.msra.mxu0 0.0
  %410 = vmatpush.msra.mxu0 0.0
  %411 = vmatpush.msra.mxu0 0.0
  %412 = vmatpush.msra.mxu0 0.0
  %413 = vmatpush.msra.mxu0 0.0
  %414 = vmatpush.msra.mxu0 0.0
  %415 = vmatpush.msra.mxu0 0.0
  %416 = vmatpush.msra.mxu0 %v108
  %417 = vmatpush.msra.mxu0 %v107
  %418 = vmatpush.msra.mxu0 %v106
  %419 = vmatpush.msra.mxu0 %v105
  %420 = vmatpush.msra.mxu0 %v104
  %421 = vmatpush.msra.mxu0 %v103
  %422 = vmatpush.msra.mxu0 %v102
  %423 = vmatpush.msra.mxu0 %v101
  %424 = vmatmul.f32.gmra.mxu0 %v242
  %v425 = vpop.f32.mrf.mxu0
  %v426 = vadd.f32 0.0, %v425
  %427 = vmatmul.f32.gmra.mxu0 %v245
  %v428 = vpop.f32.mrf.mxu0
  %v429 = vadd.f32 0.0, %v428
  %430 = vdwg.mxu0
  %431 = vmatpush.msra.mxu0 0.0
  %432 = vmatpush.msra.mxu0 0.0
  %433 = vmatpush.msra.mxu0 0.0
  %434 = vmatpush.msra.mxu0 0.0
  %435 = vmatpush.msra.mxu0 0.0
  %436 = vmatpush.msra.mxu0 0.0
  %437 = vmatpush.msra.mxu0 0.0
  %438 = vmatpush.msra.mxu0 0.0
  %439 = vmatpush.msra.mxu0 %v116
  %440 = vmatpush.msra.mxu0 %v115
  %441 = vmatpush.msra.mxu0 %v114
  %442 = vmatpush.msra.mxu0 %v113
  %443 = vmatpush.msra.mxu0 %v112
  %444 = vmatpush.msra.mxu0 %v111
  %445 = vmatpush.msra.mxu0 %v110
  %446 = vmatpush.msra.mxu0 %v109
  %447 = vmatmul.f32.gmra.mxu0 %v242
  %v448 = vpop.f32.mrf.mxu0
  %v449 = vadd.f32 0.0, %v448
  %450 = vmatmul.f32.gmra.mxu0 %v245
  %v451 = vpop.f32.mrf.mxu0
  %v452 = vadd.f32 0.0, %v451
  %453 = vdwg.mxu0
  %454 = vmatpush.msra.mxu0 0.0
  %455 = vmatpush.msra.mxu0 0.0
  %456 = vmatpush.msra.mxu0 0.0
  %457 = vmatpush.msra.mxu0 0.0
  %458 = vmatpush.msra.mxu0 0.0
  %459 = vmatpush.msra.mxu0 0.0
  %460 = vmatpush.msra.mxu0 0.0
  %461 = vmatpush.msra.mxu0 0.0
  %462 = vmatpush.msra.mxu0 %v124
  %463 = vmatpush.msra.mxu0 %v123
  %464 = vmatpush.msra.mxu0 %v122
  %465 = vmatpush.msra.mxu0 %v121
  %466 = vmatpush.msra.mxu0 %v120
  %467 = vmatpush.msra.mxu0 %v119
  %468 = vmatpush.msra.mxu0 %v118
  %469 = vmatpush.msra.mxu0 %v117
  %470 = vmatmul.f32.gmra.mxu0 %v242
  %v471 = vpop.f32.mrf.mxu0
  %v472 = vadd.f32 0.0, %v471
  %473 = vmatmul.f32.gmra.mxu0 %v245
  %v474 = vpop.f32.mrf.mxu0
  %v475 = vadd.f32 0.0, %v474
  %476 = vdwg.mxu0
  %477 = vmatpush.msra.mxu0 0.0
  %478 = vmatpush.msra.mxu0 0.0
  %479 = vmatpush.msra.mxu0 0.0
  %480 = vmatpush.msra.mxu0 0.0
  %481 = vmatpush.msra.mxu0 0.0
  %482 = vmatpush.msra.mxu0 0.0
  %483 = vmatpush.msra.mxu0 0.0
  %484 = vmatpush.msra.mxu0 0.0
  %485 = vmatpush.msra.mxu0 %v132
  %486 = vmatpush.msra.mxu0 %v131
  %487 = vmatpush.msra.mxu0 %v130
  %488 = vmatpush.msra.mxu0 %v129
  %489 = vmatpush.msra.mxu0 %v128
  %490 = vmatpush.msra.mxu0 %v127
  %491 = vmatpush.msra.mxu0 %v126
  %492 = vmatpush.msra.mxu0 %v125
  %493 = vmatmul.f32.gmra.mxu0 %v242
  %v494 = vpop.f32.mrf.mxu0
  %v495 = vadd.f32 0.0, %v494
  %496 = vmatmul.f32.gmra.mxu0 %v245
  %v497 = vpop.f32.mrf.mxu0
  %v498 = vadd.f32 0.0, %v497
  %499 = vdwg.mxu0
  %500 = vmatpush.msra.mxu0 0.0
  %501 = vmatpush.msra.mxu0 0.0
  %502 = vmatpush.msra.mxu0 0.0
  %503 = vmatpush.msra.mxu0 0.0
  %504 = vmatpush.msra.mxu0 0.0
  %505 = vmatpush.msra.mxu0 0.0
  %506 = vmatpush.msra.mxu0 0.0
  %507 = vmatpush.msra.mxu0 0.0
  %508 = vmatpush.msra.mxu0 %v140
  %509 = vmatpush.msra.mxu0 %v139
  %510 = vmatpush.msra.mxu0 %v138
  %511 = vmatpush.msra.mxu0 %v137
  %512 = vmatpush.msra.mxu0 %v136
  %513 = vmatpush.msra.mxu0 %v135
  %514 = vmatpush.msra.mxu0 %v134
  %515 = vmatpush.msra.mxu0 %v133
  %516 = vmatmul.f32.gmra.mxu0 %v242
  %v517 = vpop.f32.mrf.mxu0
  %v518 = vadd.f32 0.0, %v517
  %519 = vmatmul.f32.gmra.mxu0 %v245
  %v520 = vpop.f32.mrf.mxu0
  %v521 = vadd.f32 0.0, %v520
  %522 = vdwg.mxu0
  %vm523 = vcmask 130048
  %v525 = vsel %vm523, %v265, 0
  %v528 = vsel %vm523, %v268, 0
  %v531 = vsel %vm523, %v357, 0
  %v534 = vsel %vm523, %v360, 0
  %536 = vmatpush.xpose.msra.mxu0 0.0
  %537 = vmatpush.xpose.msra.mxu0 0.0
  %538 = vmatpush.xpose.msra.mxu0 0.0
  %539 = vmatpush.xpose.msra.mxu0 0.0
  %540 = vmatpush.xpose.msra.mxu0 0.0
  %541 = vmatpush.xpose.msra.mxu0 0.0
  %542 = vmatpush.xpose.msra.mxu0 0.0
  %543 = vmatpush.xpose.msra.mxu0 0.0
  %544 = vmatpush.xpose.msra.mxu0 0.0
  %545 = vmatpush.xpose.msra.mxu0 0.0
  %546 = vmatpush.xpose.msra.mxu0 0.0
  %547 = vmatpush.xpose.msra.mxu0 0.0
  %548 = vmatpush.xpose.msra.mxu0 0.0
  %549 = vmatpush.xpose.msra.mxu0 0.0
  %550 = vmatpush.xpose.msra.mxu0 %v534
  %551 = vmatpush.xpose.msra.mxu0 %v531
  %552 = vmatmul.f32.gmra.mxu0 %v525
  %v553 = vpop.f32.mrf.mxu0
  %v554 = vadd.f32 0.0, %v553
  %555 = vmatmul.f32.gmra.mxu0 %v528
  %v556 = vpop.f32.mrf.mxu0
  %v557 = vadd.f32 0.0, %v556
  %558 = vdwg.mxu0
  %v560 = vsel %vm523, %v288, 0
  %v563 = vsel %vm523, %v291, 0
  %v566 = vsel %vm523, %v380, 0
  %v569 = vsel %vm523, %v383, 0
  %571 = vmatpush.xpose.msra.mxu0 0.0
  %572 = vmatpush.xpose.msra.mxu0 0.0
  %573 = vmatpush.xpose.msra.mxu0 0.0
  %574 = vmatpush.xpose.msra.mxu0 0.0
  %575 = vmatpush.xpose.msra.mxu0 0.0
  %576 = vmatpush.xpose.msra.mxu0 0.0
  %577 = vmatpush.xpose.msra.mxu0 0.0
  %578 = vmatpush.xpose.msra.mxu0 0.0
  %579 = vmatpush.xpose.msra.mxu0 0.0
  %580 = vmatpush.xpose.msra.mxu0 0.0
  %581 = vmatpush.xpose.msra.mxu0 0.0
  %582 = vmatpush.xpose.msra.mxu0 0.0
  %583 = vmatpush.xpose.msra.mxu0 0.0
  %584 = vmatpush.xpose.msra.mxu0 0.0
  %585 = vmatpush.xpose.msra.mxu0 %v569
  %586 = vmatpush.xpose.msra.mxu0 %v566
  %587 = vmatmul.f32.gmra.mxu0 %v560
  %v588 = vpop.f32.mrf.mxu0
  %v589 = vadd.f32 0.0, %v588
  %590 = vmatmul.f32.gmra.mxu0 %v563
  %v591 = vpop.f32.mrf.mxu0
  %v592 = vadd.f32 0.0, %v591
  %593 = vdwg.mxu0
  %v595 = vsel %vm523, %v311, 0
  %v598 = vsel %vm523, %v314, 0
  %v601 = vsel %vm523, %v403, 0
  %v604 = vsel %vm523, %v406, 0
  %606 = vmatpush.xpose.msra.mxu0 0.0
  %607 = vmatpush.xpose.msra.mxu0 0.0
  %608 = vmatpush.xpose.msra.mxu0 0.0
  %609 = vmatpush.xpose.msra.mxu0 0.0
  %610 = vmatpush.xpose.msra.mxu0 0.0
  %611 = vmatpush.xpose.msra.mxu0 0.0
  %612 = vmatpush.xpose.msra.mxu0 0.0
  %613 = vmatpush.xpose.msra.mxu0 0.0
  %614 = vmatpush.xpose.msra.mxu0 0.0
  %615 = vmatpush.xpose.msra.mxu0 0.0
  %616 = vmatpush.xpose.msra.mxu0 0.0
  %617 = vmatpush.xpose.msra.mxu0 0.0
  %618 = vmatpush.xpose.msra.mxu0 0.0
  %619 = vmatpush.xpose.msra.mxu0 0.0
  %620 = vmatpush.xpose.msra.mxu0 %v604
  %621 = vmatpush.xpose.msra.mxu0 %v601
  %622 = vmatmul.f32.gmra.mxu0 %v595
  %v623 = vpop.f32.mrf.mxu0
  %v624 = vadd.f32 0.0, %v623
  %625 = vmatmul.f32.gmra.mxu0 %v598
  %v626 = vpop.f32.mrf.mxu0
  %v627 = vadd.f32 0.0, %v626
  %628 = vdwg.mxu0
  %v630 = vsel %vm523, %v334, 0
  %v633 = vsel %vm523, %v337, 0
  %v636 = vsel %vm523, %v426, 0
  %v639 = vsel %vm523, %v429, 0
  %641 = vmatpush.xpose.msra.mxu0 0.0
  %642 = vmatpush.xpose.msra.mxu0 0.0
  %643 = vmatpush.xpose.msra.mxu0 0.0
  %644 = vmatpush.xpose.msra.mxu0 0.0
  %645 = vmatpush.xpose.msra.mxu0 0.0
  %646 = vmatpush.xpose.msra.mxu0 0.0
  %647 = vmatpush.xpose.msra.mxu0 0.0
  %648 = vmatpush.xpose.msra.mxu0 0.0
  %649 = vmatpush.xpose.msra.mxu0 0.0
  %650 = vmatpush.xpose.msra.mxu0 0.0
  %651 = vmatpush.xpose.msra.mxu0 0.0
  %652 = vmatpush.xpose.msra.mxu0 0.0
  %653 = vmatpush.xpose.msra.mxu0 0.0
  %654 = vmatpush.xpose.msra.mxu0 0.0
  %655 = vmatpush.xpose.msra.mxu0 %v639
  %656 = vmatpush.xpose.msra.mxu0 %v636
  %657 = vmatmul.f32.gmra.mxu0 %v630
  %v658 = vpop.f32.mrf.mxu0
  %v659 = vadd.f32 0.0, %v658
  %660 = vmatmul.f32.gmra.mxu0 %v633
  %v661 = vpop.f32.mrf.mxu0
  %v662 = vadd.f32 0.0, %v661
  %663 = vdwg.mxu0
  %v664 = vmul.f32 %v554, 0.25
  %v665 = vmul.f32 %v557, 0.25
  %v666 = vmul.f32 %v589, 0.25
  %v667 = vmul.f32 %v592, 0.25
  %v668 = vmul.f32 %v624, 0.25
  %v669 = vmul.f32 %v627, 0.25
  %v670 = vmul.f32 %v659, 0.25
  %v671 = vmul.f32 %v662, 0.25
  %vm672 = vcmask 72704
  %v673 = vsel %vm672, %v664, -inf
  %674 = vmax.xlane.f32.xlu0 %v673
  %v675 = vpop.xlane.xlu0 %674
  %vm676 = vcmask 65536
  %v677 = vsel %vm676, %v665, -inf
  %678 = vmax.xlane.f32.xlu0 %v677
  %v679 = vpop.xlane.xlu0 %678
  %v680 = vsel %vm672, %v666, -inf
  %681 = vmax.xlane.f32.xlu0 %v680
  %v682 = vpop.xlane.xlu0 %681
  %v683 = vsel %vm676, %v667, -inf
  %684 = vmax.xlane.f32.xlu0 %v683
  %v685 = vpop.xlane.xlu0 %684
  %v686 = vsel %vm672, %v668, -inf
  %687 = vmax.xlane.f32.xlu0 %v686
  %v688 = vpop.xlane.xlu0 %687
  %v689 = vsel %vm676, %v669, -inf
  %690 = vmax.xlane.f32.xlu0 %v689
  %v691 = vpop.xlane.xlu0 %690
  %v692 = vsel %vm672, %v670, -inf
  %693 = vmax.xlane.f32.xlu0 %v692
  %v694 = vpop.xlane.xlu0 %693
  %v695 = vsel %vm676, %v671, -inf
  %696 = vmax.xlane.f32.xlu0 %v695
  %v697 = vpop.xlane.xlu0 %696
  %v698 = vsub.f32 %v664, %v675
  %v699 = vsub.f32 %v665, %v679
  %v700 = vsub.f32 %v666, %v682
  %v701 = vsub.f32 %v667, %v685
  %v702 = vsub.f32 %v668, %v688
  %v703 = vsub.f32 %v669, %v691
  %v704 = vsub.f32 %v670, %v694
  %v705 = vsub.f32 %v671, %v697
  %v706 = vmul.f32 %v698, 1.442695
  %v707 = vpow.pop %v706
  %v708 = vmul.f32 %v699, 1.442695
  %v709 = vpow.pop %v708
  %v710 = vmul.f32 %v700, 1.442695
  %v711 = vpow.pop %v710
  %v712 = vmul.f32 %v701, 1.442695
  %v713 = vpow.pop %v712
  %v714 = vmul.f32 %v702, 1.442695
  %v715 = vpow.pop %v714
  %v716 = vmul.f32 %v703, 1.442695
  %v717 = vpow.pop %v716
  %v718 = vmul.f32 %v704, 1.442695
  %v719 = vpow.pop %v718
  %v720 = vmul.f32 %v705, 1.442695
  %v721 = vpow.pop %v720
  %v722 = vsel %vm672, %v707, 0.0
  %723 = vadd.xlane.f32.xlu0 %v722
  %v724 = vpop.xlane.xlu0 %723
  %v725 = vsel %vm676, %v709, 0.0
  %726 = vadd.xlane.f32.xlu0 %v725
  %v727 = vpop.xlane.xlu0 %726
  %v728 = vsel %vm672, %v711, 0.0
  %729 = vadd.xlane.f32.xlu0 %v728
  %v730 = vpop.xlane.xlu0 %729
  %v731 = vsel %vm676, %v713, 0.0
  %732 = vadd.xlane.f32.xlu0 %v731
  %v733 = vpop.xlane.xlu0 %732
  %v734 = vsel %vm672, %v715, 0.0
  %735 = vadd.xlane.f32.xlu0 %v734
  %v736 = vpop.xlane.xlu0 %735
  %v737 = vsel %vm676, %v717, 0.0
  %738 = vadd.xlane.f32.xlu0 %v737
  %v739 = vpop.xlane.xlu0 %738
  %v740 = vsel %vm672, %v719, 0.0
  %741 = vadd.xlane.f32.xlu0 %v740
  %v742 = vpop.xlane.xlu0 %741
  %v743 = vsel %vm676, %v721, 0.0
  %744 = vadd.xlane.f32.xlu0 %v743
  %v745 = vpop.xlane.xlu0 %744
  %v746 = vrcp.pop %v724
  %v747 = vrcp.pop %v727
  %v748 = vrcp.pop %v730
  %v749 = vrcp.pop %v733
  %v750 = vrcp.pop %v736
  %v751 = vrcp.pop %v739
  %v752 = vrcp.pop %v742
  %v753 = vrcp.pop %v745
  %v754 = vmul.f32 %v707, %v746
  %v755 = vmul.f32 %v709, %v747
  %v756 = vmul.f32 %v711, %v748
  %v757 = vmul.f32 %v713, %v749
  %v758 = vmul.f32 %v715, %v750
  %v759 = vmul.f32 %v717, %v751
  %v760 = vmul.f32 %v719, %v752
  %v761 = vmul.f32 %v721, %v753
  %v763 = vsel %vm672, %v754, 0
  %v766 = vsel %vm672, %v755, 0
  %vm768 = vcmask 1040384
  %v770 = vsel %vm768, %v452, 0
  %772 = vmatpush.msra.mxu0 0.0
  %773 = vmatpush.msra.mxu0 0.0
  %774 = vmatpush.msra.mxu0 0.0
  %775 = vmatpush.msra.mxu0 0.0
  %776 = vmatpush.msra.mxu0 0.0
  %777 = vmatpush.msra.mxu0 0.0
  %778 = vmatpush.msra.mxu0 0.0
  %779 = vmatpush.msra.mxu0 0.0
  %780 = vmatpush.msra.mxu0 0.0
  %781 = vmatpush.msra.mxu0 0.0
  %782 = vmatpush.msra.mxu0 0.0
  %783 = vmatpush.msra.mxu0 0.0
  %784 = vmatpush.msra.mxu0 0.0
  %785 = vmatpush.msra.mxu0 0.0
  %786 = vmatpush.msra.mxu0 %v770
  %787 = vmatpush.msra.mxu0 %v449
  %788 = vmatmul.f32.gmra.mxu0 %v763
  %v789 = vpop.f32.mrf.mxu0
  %v790 = vadd.f32 0.0, %v789
  %791 = vmatmul.f32.gmra.mxu0 %v766
  %v792 = vpop.f32.mrf.mxu0
  %v793 = vadd.f32 0.0, %v792
  %794 = vdwg.mxu0
  %v796 = vsel %vm672, %v756, 0
  %v799 = vsel %vm672, %v757, 0
  %v802 = vsel %vm768, %v475, 0
  %804 = vmatpush.msra.mxu0 0.0
  %805 = vmatpush.msra.mxu0 0.0
  %806 = vmatpush.msra.mxu0 0.0
  %807 = vmatpush.msra.mxu0 0.0
  %808 = vmatpush.msra.mxu0 0.0
  %809 = vmatpush.msra.mxu0 0.0
  %810 = vmatpush.msra.mxu0 0.0
  %811 = vmatpush.msra.mxu0 0.0
  %812 = vmatpush.msra.mxu0 0.0
  %813 = vmatpush.msra.mxu0 0.0
  %814 = vmatpush.msra.mxu0 0.0
  %815 = vmatpush.msra.mxu0 0.0
  %816 = vmatpush.msra.mxu0 0.0
  %817 = vmatpush.msra.mxu0 0.0
  %818 = vmatpush.msra.mxu0 %v802
  %819 = vmatpush.msra.mxu0 %v472
  %820 = vmatmul.f32.gmra.mxu0 %v796
  %v821 = vpop.f32.mrf.mxu0
  %v822 = vadd.f32 0.0, %v821
  %823 = vmatmul.f32.gmra.mxu0 %v799
  %v824 = vpop.f32.mrf.mxu0
  %v825 = vadd.f32 0.0, %v824
  %826 = vdwg.mxu0
  %v828 = vsel %vm672, %v758, 0
  %v831 = vsel %vm672, %v759, 0
  %v834 = vsel %vm768, %v498, 0
  %836 = vmatpush.msra.mxu0 0.0
  %837 = vmatpush.msra.mxu0 0.0
  %838 = vmatpush.msra.mxu0 0.0
  %839 = vmatpush.msra.mxu0 0.0
  %840 = vmatpush.msra.mxu0 0.0
  %841 = vmatpush.msra.mxu0 0.0
  %842 = vmatpush.msra.mxu0 0.0
  %843 = vmatpush.msra.mxu0 0.0
  %844 = vmatpush.msra.mxu0 0.0
  %845 = vmatpush.msra.mxu0 0.0
  %846 = vmatpush.msra.mxu0 0.0
  %847 = vmatpush.msra.mxu0 0.0
  %848 = vmatpush.msra.mxu0 0.0
  %849 = vmatpush.msra.mxu0 0.0
  %850 = vmatpush.msra.mxu0 %v834
  %851 = vmatpush.msra.mxu0 %v495
  %852 = vmatmul.f32.gmra.mxu0 %v828
  %v853 = vpop.f32.mrf.mxu0
  %v854 = vadd.f32 0.0, %v853
  %855 = vmatmul.f32.gmra.mxu0 %v831
  %v856 = vpop.f32.mrf.mxu0
  %v857 = vadd.f32 0.0, %v856
  %858 = vdwg.mxu0
  %v860 = vsel %vm672, %v760, 0
  %v863 = vsel %vm672, %v761, 0
  %v866 = vsel %vm768, %v521, 0
  %868 = vmatpush.msra.mxu0 0.0
  %869 = vmatpush.msra.mxu0 0.0
  %870 = vmatpush.msra.mxu0 0.0
  %871 = vmatpush.msra.mxu0 0.0
  %872 = vmatpush.msra.mxu0 0.0
  %873 = vmatpush.msra.mxu0 0.0
  %874 = vmatpush.msra.mxu0 0.0
  %875 = vmatpush.msra.mxu0 0.0
  %876 = vmatpush.msra.mxu0 0.0
  %877 = vmatpush.msra.mxu0 0.0
  %878 = vmatpush.msra.mxu0 0.0
  %879 = vmatpush.msra.mxu0 0.0
  %880 = vmatpush.msra.mxu0 0.0
  %881 = vmatpush.msra.mxu0 0.0
  %882 = vmatpush.msra.mxu0 %v866
  %883 = vmatpush.msra.mxu0 %v518
  %884 = vmatmul.f32.gmra.mxu0 %v860
  %v885 = vpop.f32.mrf.mxu0
  %v886 = vadd.f32 0.0, %v885
  %887 = vmatmul.f32.gmra.mxu0 %v863
  %v888 = vpop.f32.mrf.mxu0
  %v889 = vadd.f32 0.0, %v888
  %890 = vdwg.mxu0
  %v892 = vsel %vm523, %v790, 0
  %v895 = vsel %vm523, %v793, 0
  %897 = vmatpush.msra.mxu0 0.0
  %898 = vmatpush.msra.mxu0 0.0
  %899 = vmatpush.msra.mxu0 0.0
  %900 = vmatpush.msra.mxu0 0.0
  %901 = vmatpush.msra.mxu0 0.0
  %902 = vmatpush.msra.mxu0 0.0
  %903 = vmatpush.msra.mxu0 0.0
  %904 = vmatpush.msra.mxu0 0.0
  %905 = vmatpush.msra.mxu0 0.0
  %906 = vmatpush.msra.mxu0 0.0
  %907 = vmatpush.msra.mxu0 0.0
  %908 = vmatpush.msra.mxu0 0.0
  %909 = vmatpush.msra.mxu0 0.0
  %910 = vmatpush.msra.mxu0 0.0
  %911 = vmatpush.msra.mxu0 %v142
  %912 = vmatpush.msra.mxu0 %v141
  %913 = vmatmul.f32.gmra.mxu0 %v892
  %v914 = vpop.f32.mrf.mxu0
  %v915 = vadd.f32 0.0, %v914
  %916 = vmatmul.f32.gmra.mxu0 %v895
  %v917 = vpop.f32.mrf.mxu0
  %v918 = vadd.f32 0.0, %v917
  %919 = vdwg.mxu0
  %v921 = vsel %vm523, %v822, 0
  %v924 = vsel %vm523, %v825, 0
  %926 = vmatpush.msra.mxu0 0.0
  %927 = vmatpush.msra.mxu0 0.0
  %928 = vmatpush.msra.mxu0 0.0
  %929 = vmatpush.msra.mxu0 0.0
  %930 = vmatpush.msra.mxu0 0.0
  %931 = vmatpush.msra.mxu0 0.0
  %932 = vmatpush.msra.mxu0 0.0
  %933 = vmatpush.msra.mxu0 0.0
  %934 = vmatpush.msra.mxu0 0.0
  %935 = vmatpush.msra.mxu0 0.0
  %936 = vmatpush.msra.mxu0 0.0
  %937 = vmatpush.msra.mxu0 0.0
  %938 = vmatpush.msra.mxu0 0.0
  %939 = vmatpush.msra.mxu0 0.0
  %940 = vmatpush.msra.mxu0 %v144
  %941 = vmatpush.msra.mxu0 %v143
  %942 = vmatmul.f32.gmra.mxu0 %v921
  %v943 = vpop.f32.mrf.mxu0
  %v944 = vadd.f32 0.0, %v943
  %945 = vmatmul.f32.gmra.mxu0 %v924
  %v946 = vpop.f32.mrf.mxu0
  %v947 = vadd.f32 0.0, %v946
  %948 = vdwg.mxu0
  %v950 = vsel %vm523, %v854, 0
  %v953 = vsel %vm523, %v857, 0
  %955 = vmatpush.msra.mxu0 0.0
  %956 = vmatpush.msra.mxu0 0.0
  %957 = vmatpush.msra.mxu0 0.0
  %958 = vmatpush.msra.mxu0 0.0
  %959 = vmatpush.msra.mxu0 0.0
  %960 = vmatpush.msra.mxu0 0.0
  %961 = vmatpush.msra.mxu0 0.0
  %962 = vmatpush.msra.mxu0 0.0
  %963 = vmatpush.msra.mxu0 0.0
  %964 = vmatpush.msra.mxu0 0.0
  %965 = vmatpush.msra.mxu0 0.0
  %966 = vmatpush.msra.mxu0 0.0
  %967 = vmatpush.msra.mxu0 0.0
  %968 = vmatpush.msra.mxu0 0.0
  %969 = vmatpush.msra.mxu0 %v146
  %970 = vmatpush.msra.mxu0 %v145
  %971 = vmatmul.f32.gmra.mxu0 %v950
  %v972 = vpop.f32.mrf.mxu0
  %v973 = vadd.f32 0.0, %v972
  %974 = vmatmul.f32.gmra.mxu0 %v953
  %v975 = vpop.f32.mrf.mxu0
  %v976 = vadd.f32 0.0, %v975
  %977 = vdwg.mxu0
  %v979 = vsel %vm523, %v886, 0
  %v982 = vsel %vm523, %v889, 0
  %984 = vmatpush.msra.mxu0 0.0
  %985 = vmatpush.msra.mxu0 0.0
  %986 = vmatpush.msra.mxu0 0.0
  %987 = vmatpush.msra.mxu0 0.0
  %988 = vmatpush.msra.mxu0 0.0
  %989 = vmatpush.msra.mxu0 0.0
  %990 = vmatpush.msra.mxu0 0.0
  %991 = vmatpush.msra.mxu0 0.0
  %992 = vmatpush.msra.mxu0 0.0
  %993 = vmatpush.msra.mxu0 0.0
  %994 = vmatpush.msra.mxu0 0.0
  %995 = vmatpush.msra.mxu0 0.0
  %996 = vmatpush.msra.mxu0 0.0
  %997 = vmatpush.msra.mxu0 0.0
  %998 = vmatpush.msra.mxu0 %v148
  %999 = vmatpush.msra.mxu0 %v147
  %1000 = vmatmul.f32.gmra.mxu0 %v979
  %v1001 = vpop.f32.mrf.mxu0
  %v1002 = vadd.f32 0.0, %v1001
  %1003 = vmatmul.f32.gmra.mxu0 %v982
  %v1004 = vpop.f32.mrf.mxu0
  %v1005 = vadd.f32 0.0, %v1004
  %1006 = vdwg.mxu0
  %v1007 = vsel %vm178, %v915, 0.0
  %v1008 = vsel %vm178, %v944, 0.0
  %v1009 = vadd.f32 %v1007, %v1008
  %v1010 = vsel %vm178, %v973, 0.0
  %v1011 = vadd.f32 %v1009, %v1010
  %v1012 = vsel %vm178, %v1002, 0.0
  %v1013 = vadd.f32 %v1011, %v1012
  %v1014 = vsel %vm182, %v918, 0.0
  %v1015 = vsel %vm182, %v947, 0.0
  %v1016 = vadd.f32 %v1014, %v1015
  %v1017 = vsel %vm182, %v976, 0.0
  %v1018 = vadd.f32 %v1016, %v1017
  %v1019 = vsel %vm182, %v1005, 0.0
  %v1020 = vadd.f32 %v1018, %v1019
  %v1021 = vadd.f32 %v176, %v1013
  %v1022 = vadd.f32 %v177, %v1020
  %v1024 = vperm.slane %v149, 0
  %v1026 = vadd.f32 %v1021, %v1024
  %v1027 = vadd.f32 %v1022, %v1024
  %v1028 = vsel %vm178, %v1026, 0.0
  %1029 = vadd.xlane.f32.xlu0 %v1028
  %v1030 = vpop.xlane.xlu0 %1029
  %v1031 = vsel %vm182, %v1027, 0.0
  %1032 = vadd.xlane.f32.xlu0 %v1031
  %v1033 = vpop.xlane.xlu0 %1032
  %v1034 = vmul.f32 %v1030, %v192
  %v1035 = vmul.f32 %v1033, %v192
  %v1036 = vsub.f32 %v1026, %v1034
  %v1037 = vsub.f32 %v1027, %v1035
  %v1038 = vmul.f32 %v1036, %v1036
  %v1039 = vmul.f32 %v1037, %v1037
  %v1040 = vsel %vm178, %v1038, 0.0
  %1041 = vadd.xlane.f32.xlu0 %v1040
  %v1042 = vpop.xlane.xlu0 %1041
  %v1043 = vsel %vm182, %v1039, 0.0
  %1044 = vadd.xlane.f32.xlu0 %v1043
  %v1045 = vpop.xlane.xlu0 %1044
  %v1046 = vmul.f32 %v1042, %v192
  %v1047 = vmul.f32 %v1045, %v192
  %v1048 = vadd.f32 %v1046, 1e-05
  %v1049 = vadd.f32 %v1047, 1e-05
  %v1050 = vrsqrt.pop %v1048
  %v1051 = vmul.f32 %v1050, %v1048
  %v1052 = vmul.f32 %v1051, %v1050
  %v1053 = vmul.f32 0.5, %v1052
  %v1054 = vsub.f32 1.5, %v1053
  %v1055 = vmul.f32 %v1050, %v1054
  %vm1056 = vweird.f32 %v1048
  %vm1057 = vweird.f32 %v1050
  %vm1058 = vmor %vm1056, %vm1057
  %v1059 = vsel %vm1058, %v1050, %v1055
  %v1060 = vrsqrt.pop %v1049
  %v1061 = vmul.f32 %v1060, %v1049
  %v1062 = vmul.f32 %v1061, %v1060
  %v1063 = vmul.f32 0.5, %v1062
  %v1064 = vsub.f32 1.5, %v1063
  %v1065 = vmul.f32 %v1060, %v1064
  %vm1066 = vweird.f32 %v1049
  %vm1067 = vweird.f32 %v1060
  %vm1068 = vmor %vm1066, %vm1067
  %v1069 = vsel %vm1068, %v1060, %v1065
  %v1070 = vmul.f32 %v1036, %v1059
  %v1071 = vmul.f32 %v1037, %v1069
  %v1073 = vperm.slane %v43, 0
  %v1075 = vmul.f32 %v1070, %v1073
  %v1076 = vmul.f32 %v1071, %v1073
  %v1078 = vperm.slane %v44, 0
  %v1080 = vadd.f32 %v1075, %v1078
  %v1081 = vadd.f32 %v1076, %v1078
  %v1083 = vperm.slane %v158, 0
  %v1086 = vsel %vm178, %v1080, 0
  %v1089 = vsel %vm178, %v1081, 0
  %1091 = vmatpush.msra.mxu0 0.0
  %1092 = vmatpush.msra.mxu0 0.0
  %1093 = vmatpush.msra.mxu0 0.0
  %1094 = vmatpush.msra.mxu0 0.0
  %1095 = vmatpush.msra.mxu0 0.0
  %1096 = vmatpush.msra.mxu0 0.0
  %1097 = vmatpush.msra.mxu0 0.0
  %1098 = vmatpush.msra.mxu0 0.0
  %1099 = vmatpush.msra.mxu0 %v157
  %1100 = vmatpush.msra.mxu0 %v156
  %1101 = vmatpush.msra.mxu0 %v155
  %1102 = vmatpush.msra.mxu0 %v154
  %1103 = vmatpush.msra.mxu0 %v153
  %1104 = vmatpush.msra.mxu0 %v152
  %1105 = vmatpush.msra.mxu0 %v151
  %1106 = vmatpush.msra.mxu0 %v150
  %1107 = vmatmul.f32.gmra.mxu0 %v1086
  %v1108 = vpop.f32.mrf.mxu0
  %v1109 = vadd.f32 %v1083, %v1108
  %1110 = vmatmul.f32.gmra.mxu0 %v1089
  %v1111 = vpop.f32.mrf.mxu0
  %v1112 = vadd.f32 %v1083, %v1111
  %1113 = vdwg.mxu0
  %v1114 = vmul.f32 %v1109, 0.5
  %v1115 = vmul.f32 %v1112, 0.5
  %v1116 = vmul.f32 %v1109, 0.70710677
  %v1117 = vmul.f32 %v1112, 0.70710677
  %v1118 = vmax.f32 %v1116, -4.0
  %v1119 = vmax.f32 %v1117, -4.0
  %v1120 = vmin.f32 %v1118, 4.0
  %v1121 = vmin.f32 %v1119, 4.0
  %v1122 = vmul.f32 %v1120, %v1120
  %v1123 = vmul.f32 %v1121, %v1121
  %v1124 = vmul.f32 %v1122, -2.7261424e-10
  %v1125 = vmul.f32 %v1123, -2.7261424e-10
  %v1126 = vadd.f32 %v1124, 2.7706815e-08
  %v1127 = vadd.f32 %v1125, 2.7706815e-08
  %v1128 = vmul.f32 %v1122, %v1126
  %v1129 = vmul.f32 %v1123, %v1127
  %v1130 = vadd.f32 %v1128, -2.101024e-06
  %v1131 = vadd.f32 %v1129, -2.101024e-06
  %v1132 = vmul.f32 %v1122, %v1130
  %v1133 = vmul.f32 %v1123, %v1131
  %v1134 = vadd.f32 %v1132, -5.6925062e-05
  %v1135 = vadd.f32 %v1133, -5.6925062e-05
  %v1136 = vmul.f32 %v1122, %v1134
  %v1137 = vmul.f32 %v1123, %v1135
  %v1138 = vadd.f32 %v1136, -0.00073499064
  %v1139 = vadd.f32 %v1137, -0.00073499064
  %v1140 = vmul.f32 %v1122, %v1138
  %v1141 = vmul.f32 %v1123, %v1139
  %v1142 = vadd.f32 %v1140, -0.0029546
  %v1143 = vadd.f32 %v1141, -0.0029546
  %v1144 = vmul.f32 %v1122, %v1142
  %v1145 = vmul.f32 %v1123, %v1143
  %v1146 = vadd.f32 %v1144, -0.016096033
  %v1147 = vadd.f32 %v1145, -0.016096033
  %v1148 = vmul.f32 %v1120, %v1146
  %v1149 = vmul.f32 %v1121, %v1147
  %v1150 = vmul.f32 %v1122, -1.45660715e-05
  %v1151 = vmul.f32 %v1123, -1.45660715e-05
  %v1152 = vadd.f32 %v1150, -0.00021337405
  %v1153 = vadd.f32 %v1151, -0.00021337405
  %v1154 = vmul.f32 %v1122, %v1152
  %v1155 = vmul.f32 %v1123, %v1153
  %v1156 = vadd.f32 %v1154, -0.001682827
  %v1157 = vadd.f32 %v1155, -0.001682827
  %v1158 = vmul.f32 %v1122, %v1156
  %v1159 = vmul.f32 %v1123, %v1157
  %v1160 = vadd.f32 %v1158, -0.0073733293
  %v1161 = vadd.f32 %v1159, -0.0073733293
  %v1162 = vmul.f32 %v1122, %v1160
  %v1163 = vmul.f32 %v1123, %v1161
  %v1164 = vadd.f32 %v1162, -0.014264739
  %v1165 = vadd.f32 %v1163, -0.014264739
  %v1166 = vrcp.pop %v1164
  %v1167 = vmul.f32 %v1164, %v1166
  %v1168 = vsub.f32 1.0, %v1167
  %v1169 = vmul.f32 %v1166, %v1168
  %v1170 = vadd.f32 %v1166, %v1169
  %vm1171 = vweird.f32 %v1164
  %vm1172 = vweird.f32 %v1166
  %vm1173 = vmor %vm1171, %vm1172
  %v1174 = vsel %vm1173, %v1166, %v1170
  %v1175 = vand.u32 2147483647, %v1164
  %vm1176 = vcmp.eq.f32.partialorder %v1175, 8.507059e+37
  %v1177 = vand.u32 %v1164, 2147483648
  %v1178 = vor.u32 1.1754944e-38, %v1177
  %v1179 = vsel %vm1176, %v1178, %v1174
  %v1180 = vmul.f32 %v1148, %v1179
  %v1181 = vrcp.pop %v1165
  %v1182 = vmul.f32 %v1165, %v1181
  %v1183 = vsub.f32 1.0, %v1182
  %v1184 = vmul.f32 %v1181, %v1183
  %v1185 = vadd.f32 %v1181, %v1184
  %vm1186 = vweird.f32 %v1165
  %vm1187 = vweird.f32 %v1181
  %vm1188 = vmor %vm1186, %vm1187
  %v1189 = vsel %vm1188, %v1181, %v1185
  %v1190 = vand.u32 2147483647, %v1165
  %vm1191 = vcmp.eq.f32.partialorder %v1190, 8.507059e+37
  %v1192 = vand.u32 %v1165, 2147483648
  %v1193 = vor.u32 1.1754944e-38, %v1192
  %v1194 = vsel %vm1191, %v1193, %v1189
  %v1195 = vmul.f32 %v1149, %v1194
  %v1196 = vadd.f32 %v1180, 1.0
  %v1197 = vadd.f32 %v1195, 1.0
  %v1198 = vmul.f32 %v1114, %v1196
  %v1199 = vmul.f32 %v1115, %v1197
  %v1201 = vperm.slane %v175, 0
  %1203 = vmatpush.msra.mxu0 %v174
  %1204 = vmatpush.msra.mxu0 %v173
  %1205 = vmatpush.msra.mxu0 %v172
  %1206 = vmatpush.msra.mxu0 %v171
  %1207 = vmatpush.msra.mxu0 %v170
  %1208 = vmatpush.msra.mxu0 %v169
  %1209 = vmatpush.msra.mxu0 %v168
  %1210 = vmatpush.msra.mxu0 %v167
  %1211 = vmatpush.msra.mxu0 %v166
  %1212 = vmatpush.msra.mxu0 %v165
  %1213 = vmatpush.msra.mxu0 %v164
  %1214 = vmatpush.msra.mxu0 %v163
  %1215 = vmatpush.msra.mxu0 %v162
  %1216 = vmatpush.msra.mxu0 %v161
  %1217 = vmatpush.msra.mxu0 %v160
  %1218 = vmatpush.msra.mxu0 %v159
  %1219 = vmatmul.f32.gmra.mxu0 %v1198
  %v1220 = vpop.f32.mrf.mxu0
  %v1221 = vadd.f32 %v1201, %v1220
  %1222 = vmatmul.f32.gmra.mxu0 %v1199
  %v1223 = vpop.f32.mrf.mxu0
  %v1224 = vadd.f32 %v1201, %v1223
  %1225 = vdwg.mxu0
  %v1226 = vadd.f32 %v1026, %v1221
  %v1227 = vadd.f32 %v1027, %v1224
  %1228 = vst.msk [vmem:[%s12] sm:$0xff] %vm178, %v1226
  %1229 = vst.msk [vmem:[%s12 + $0x8] sm:$0x1] %vm182, %v1227
  %s1230 = scalar_lea.vmem %s0, 16
  %v1231 = vld [vmem:[%s1230] sm:$0xff]
  %v1232 = vld [vmem:[%s1230 + $0x8] sm:$0x1]
  %v1233 = vsel %vm178, %v1231, 0.0
  %1234 = vadd.xlane.f32.xlu0 %v1233
  %v1235 = vpop.xlane.xlu0 %1234
  %v1236 = vsel %vm182, %v1232, 0.0
  %1237 = vadd.xlane.f32.xlu0 %v1236
  %v1238 = vpop.xlane.xlu0 %1237
  %v1239 = vmul.f32 %v1235, %v192
  %v1240 = vmul.f32 %v1238, %v192
  %v1241 = vsub.f32 %v1231, %v1239
  %v1242 = vsub.f32 %v1232, %v1240
  %v1243 = vmul.f32 %v1241, %v1241
  %v1244 = vmul.f32 %v1242, %v1242
  %v1245 = vsel %vm178, %v1243, 0.0
  %1246 = vadd.xlane.f32.xlu0 %v1245
  %v1247 = vpop.xlane.xlu0 %1246
  %v1248 = vsel %vm182, %v1244, 0.0
  %1249 = vadd.xlane.f32.xlu0 %v1248
  %v1250 = vpop.xlane.xlu0 %1249
  %v1251 = vmul.f32 %v1247, %v192
  %v1252 = vmul.f32 %v1250, %v192
  %v1253 = vadd.f32 %v1251, 1e-05
  %v1254 = vadd.f32 %v1252, 1e-05
  %v1255 = vrsqrt.pop %v1253
  %v1256 = vmul.f32 %v1255, %v1253
  %v1257 = vmul.f32 %v1256, %v1255
  %v1258 = vmul.f32 0.5, %v1257
  %v1259 = vsub.f32 1.5, %v1258
  %v1260 = vmul.f32 %v1255, %v1259
  %vm1261 = vweird.f32 %v1253
  %vm1262 = vweird.f32 %v1255
  %vm1263 = vmor %vm1261, %vm1262
  %v1264 = vsel %vm1263, %v1255, %v1260
  %v1265 = vrsqrt.pop %v1254
  %v1266 = vmul.f32 %v1265, %v1254
  %v1267 = vmul.f32 %v1266, %v1265
  %v1268 = vmul.f32 0.5, %v1267
  %v1269 = vsub.f32 1.5, %v1268
  %v1270 = vmul.f32 %v1265, %v1269
  %vm1271 = vweird.f32 %v1254
  %vm1272 = vweird.f32 %v1265
  %vm1273 = vmor %vm1271, %vm1272
  %v1274 = vsel %vm1273, %v1265, %v1270
  %v1275 = vmul.f32 %v1241, %v1264
  %v1276 = vmul.f32 %v1242, %v1274
  %v1277 = vmul.f32 %v1275, %v232
  %v1278 = vmul.f32 %v1276, %v232
  %v1279 = vadd.f32 %v1277, %v237
  %v1280 = vadd.f32 %v1278, %v237
  %v1282 = vsel %vm178, %v1279, 0
  %v1285 = vsel %vm178, %v1280, 0
  %1287 = vmatpush.msra.mxu0 0.0
  %1288 = vmatpush.msra.mxu0 0.0
  %1289 = vmatpush.msra.mxu0 0.0
  %1290 = vmatpush.msra.mxu0 0.0
  %1291 = vmatpush.msra.mxu0 0.0
  %1292 = vmatpush.msra.mxu0 0.0
  %1293 = vmatpush.msra.mxu0 0.0
  %1294 = vmatpush.msra.mxu0 0.0
  %1295 = vmatpush.msra.mxu0 %v52
  %1296 = vmatpush.msra.mxu0 %v51
  %1297 = vmatpush.msra.mxu0 %v50
  %1298 = vmatpush.msra.mxu0 %v49
  %1299 = vmatpush.msra.mxu0 %v48
  %1300 = vmatpush.msra.mxu0 %v47
  %1301 = vmatpush.msra.mxu0 %v46
  %1302 = vmatpush.msra.mxu0 %v45
  %1303 = vmatmul.f32.gmra.mxu0 %v1282
  %v1304 = vpop.f32.mrf.mxu0
  %v1305 = vadd.f32 0.0, %v1304
  %1306 = vmatmul.f32.gmra.mxu0 %v1285
  %v1307 = vpop.f32.mrf.mxu0
  %v1308 = vadd.f32 0.0, %v1307
  %1309 = vdwg.mxu0
  %1310 = vmatpush.msra.mxu0 0.0
  %1311 = vmatpush.msra.mxu0 0.0
  %1312 = vmatpush.msra.mxu0 0.0
  %1313 = vmatpush.msra.mxu0 0.0
  %1314 = vmatpush.msra.mxu0 0.0
  %1315 = vmatpush.msra.mxu0 0.0
  %1316 = vmatpush.msra.mxu0 0.0
  %1317 = vmatpush.msra.mxu0 0.0
  %1318 = vmatpush.msra.mxu0 %v60
  %1319 = vmatpush.msra.mxu0 %v59
  %1320 = vmatpush.msra.mxu0 %v58
  %1321 = vmatpush.msra.mxu0 %v57
  %1322 = vmatpush.msra.mxu0 %v56
  %1323 = vmatpush.msra.mxu0 %v55
  %1324 = vmatpush.msra.mxu0 %v54
  %1325 = vmatpush.msra.mxu0 %v53
  %1326 = vmatmul.f32.gmra.mxu0 %v1282
  %v1327 = vpop.f32.mrf.mxu0
  %v1328 = vadd.f32 0.0, %v1327
  %1329 = vmatmul.f32.gmra.mxu0 %v1285
  %v1330 = vpop.f32.mrf.mxu0
  %v1331 = vadd.f32 0.0, %v1330
  %1332 = vdwg.mxu0
  %1333 = vmatpush.msra.mxu0 0.0
  %1334 = vmatpush.msra.mxu0 0.0
  %1335 = vmatpush.msra.mxu0 0.0
  %1336 = vmatpush.msra.mxu0 0.0
  %1337 = vmatpush.msra.mxu0 0.0
  %1338 = vmatpush.msra.mxu0 0.0
  %1339 = vmatpush.msra.mxu0 0.0
  %1340 = vmatpush.msra.mxu0 0.0
  %1341 = vmatpush.msra.mxu0 %v68
  %1342 = vmatpush.msra.mxu0 %v67
  %1343 = vmatpush.msra.mxu0 %v66
  %1344 = vmatpush.msra.mxu0 %v65
  %1345 = vmatpush.msra.mxu0 %v64
  %1346 = vmatpush.msra.mxu0 %v63
  %1347 = vmatpush.msra.mxu0 %v62
  %1348 = vmatpush.msra.mxu0 %v61
  %1349 = vmatmul.f32.gmra.mxu0 %v1282
  %v1350 = vpop.f32.mrf.mxu0
  %v1351 = vadd.f32 0.0, %v1350
  %1352 = vmatmul.f32.gmra.mxu0 %v1285
  %v1353 = vpop.f32.mrf.mxu0
  %v1354 = vadd.f32 0.0, %v1353
  %1355 = vdwg.mxu0
  %1356 = vmatpush.msra.mxu0 0.0
  %1357 = vmatpush.msra.mxu0 0.0
  %1358 = vmatpush.msra.mxu0 0.0
  %1359 = vmatpush.msra.mxu0 0.0
  %1360 = vmatpush.msra.mxu0 0.0
  %1361 = vmatpush.msra.mxu0 0.0
  %1362 = vmatpush.msra.mxu0 0.0
  %1363 = vmatpush.msra.mxu0 0.0
  %1364 = vmatpush.msra.mxu0 %v76
  %1365 = vmatpush.msra.mxu0 %v75
  %1366 = vmatpush.msra.mxu0 %v74
  %1367 = vmatpush.msra.mxu0 %v73
  %1368 = vmatpush.msra.mxu0 %v72
  %1369 = vmatpush.msra.mxu0 %v71
  %1370 = vmatpush.msra.mxu0 %v70
  %1371 = vmatpush.msra.mxu0 %v69
  %1372 = vmatmul.f32.gmra.mxu0 %v1282
  %v1373 = vpop.f32.mrf.mxu0
  %v1374 = vadd.f32 0.0, %v1373
  %1375 = vmatmul.f32.gmra.mxu0 %v1285
  %v1376 = vpop.f32.mrf.mxu0
  %v1377 = vadd.f32 0.0, %v1376
  %1378 = vdwg.mxu0
  %1379 = vmatpush.msra.mxu0 0.0
  %1380 = vmatpush.msra.mxu0 0.0
  %1381 = vmatpush.msra.mxu0 0.0
  %1382 = vmatpush.msra.mxu0 0.0
  %1383 = vmatpush.msra.mxu0 0.0
  %1384 = vmatpush.msra.mxu0 0.0
  %1385 = vmatpush.msra.mxu0 0.0
  %1386 = vmatpush.msra.mxu0 0.0
  %1387 = vmatpush.msra.mxu0 %v84
  %1388 = vmatpush.msra.mxu0 %v83
  %1389 = vmatpush.msra.mxu0 %v82
  %1390 = vmatpush.msra.mxu0 %v81
  %1391 = vmatpush.msra.mxu0 %v80
  %1392 = vmatpush.msra.mxu0 %v79
  %1393 = vmatpush.msra.mxu0 %v78
  %1394 = vmatpush.msra.mxu0 %v77
  %1395 = vmatmul.f32.gmra.mxu0 %v1282
  %v1396 = vpop.f32.mrf.mxu0
  %v1397 = vadd.f32 0.0, %v1396
  %1398 = vmatmul.f32.gmra.mxu0 %v1285
  %v1399 = vpop.f32.mrf.mxu0
  %v1400 = vadd.f32 0.0, %v1399
  %1401 = vdwg.mxu0
  %1402 = vmatpush.msra.mxu0 0.0
  %1403 = vmatpush.msra.mxu0 0.0
  %1404 = vmatpush.msra.mxu0 0.0
  %1405 = vmatpush.msra.mxu0 0.0
  %1406 = vmatpush.msra.mxu0 0.0
  %1407 = vmatpush.msra.mxu0 0.0
  %1408 = vmatpush.msra.mxu0 0.0
  %1409 = vmatpush.msra.mxu0 0.0
  %1410 = vmatpush.msra.mxu0 %v92
  %1411 = vmatpush.msra.mxu0 %v91
  %1412 = vmatpush.msra.mxu0 %v90
  %1413 = vmatpush.msra.mxu0 %v89
  %1414 = vmatpush.msra.mxu0 %v88
  %1415 = vmatpush.msra.mxu0 %v87
  %1416 = vmatpush.msra.mxu0 %v86
  %1417 = vmatpush.msra.mxu0 %v85
  %1418 = vmatmul.f32.gmra.mxu0 %v1282
  %v1419 = vpop.f32.mrf.mxu0
  %v1420 = vadd.f32 0.0, %v1419
  %1421 = vmatmul.f32.gmra.mxu0 %v1285
  %v1422 = vpop.f32.mrf.mxu0
  %v1423 = vadd.f32 0.0, %v1422
  %1424 = vdwg.mxu0
  %1425 = vmatpush.msra.mxu0 0.0
  %1426 = vmatpush.msra.mxu0 0.0
  %1427 = vmatpush.msra.mxu0 0.0
  %1428 = vmatpush.msra.mxu0 0.0
  %1429 = vmatpush.msra.mxu0 0.0
  %1430 = vmatpush.msra.mxu0 0.0
  %1431 = vmatpush.msra.mxu0 0.0
  %1432 = vmatpush.msra.mxu0 0.0
  %1433 = vmatpush.msra.mxu0 %v100
  %1434 = vmatpush.msra.mxu0 %v99
  %1435 = vmatpush.msra.mxu0 %v98
  %1436 = vmatpush.msra.mxu0 %v97
  %1437 = vmatpush.msra.mxu0 %v96
  %1438 = vmatpush.msra.mxu0 %v95
  %1439 = vmatpush.msra.mxu0 %v94
  %1440 = vmatpush.msra.mxu0 %v93
  %1441 = vmatmul.f32.gmra.mxu0 %v1282
  %v1442 = vpop.f32.mrf.mxu0
  %v1443 = vadd.f32 0.0, %v1442
  %1444 = vmatmul.f32.gmra.mxu0 %v1285
  %v1445 = vpop.f32.mrf.mxu0
  %v1446 = vadd.f32 0.0, %v1445
  %1447 = vdwg.mxu0
  %1448 = vmatpush.msra.mxu0 0.0
  %1449 = vmatpush.msra.mxu0 0.0
  %1450 = vmatpush.msra.mxu0 0.0
  %1451 = vmatpush.msra.mxu0 0.0
  %1452 = vmatpush.msra.mxu0 0.0
  %1453 = vmatpush.msra.mxu0 0.0
  %1454 = vmatpush.msra.mxu0 0.0
  %1455 = vmatpush.msra.mxu0 0.0
  %1456 = vmatpush.msra.mxu0 %v108
  %1457 = vmatpush.msra.mxu0 %v107
  %1458 = vmatpush.msra.mxu0 %v106
  %1459 = vmatpush.msra.mxu0 %v105
  %1460 = vmatpush.msra.mxu0 %v104
  %1461 = vmatpush.msra.mxu0 %v103
  %1462 = vmatpush.msra.mxu0 %v102
  %1463 = vmatpush.msra.mxu0 %v101
  %1464 = vmatmul.f32.gmra.mxu0 %v1282
  %v1465 = vpop.f32.mrf.mxu0
  %v1466 = vadd.f32 0.0, %v1465
  %1467 = vmatmul.f32.gmra.mxu0 %v1285
  %v1468 = vpop.f32.mrf.mxu0
  %v1469 = vadd.f32 0.0, %v1468
  %1470 = vdwg.mxu0
  %1471 = vmatpush.msra.mxu0 0.0
  %1472 = vmatpush.msra.mxu0 0.0
  %1473 = vmatpush.msra.mxu0 0.0
  %1474 = vmatpush.msra.mxu0 0.0
  %1475 = vmatpush.msra.mxu0 0.0
  %1476 = vmatpush.msra.mxu0 0.0
  %1477 = vmatpush.msra.mxu0 0.0
  %1478 = vmatpush.msra.mxu0 0.0
  %1479 = vmatpush.msra.mxu0 %v116
  %1480 = vmatpush.msra.mxu0 %v115
  %1481 = vmatpush.msra.mxu0 %v114
  %1482 = vmatpush.msra.mxu0 %v113
  %1483 = vmatpush.msra.mxu0 %v112
  %1484 = vmatpush.msra.mxu0 %v111
  %1485 = vmatpush.msra.mxu0 %v110
  %1486 = vmatpush.msra.mxu0 %v109
  %1487 = vmatmul.f32.gmra.mxu0 %v1282
  %v1488 = vpop.f32.mrf.mxu0
  %v1489 = vadd.f32 0.0, %v1488
  %1490 = vmatmul.f32.gmra.mxu0 %v1285
  %v1491 = vpop.f32.mrf.mxu0
  %v1492 = vadd.f32 0.0, %v1491
  %1493 = vdwg.mxu0
  %1494 = vmatpush.msra.mxu0 0.0
  %1495 = vmatpush.msra.mxu0 0.0
  %1496 = vmatpush.msra.mxu0 0.0
  %1497 = vmatpush.msra.mxu0 0.0
  %1498 = vmatpush.msra.mxu0 0.0
  %1499 = vmatpush.msra.mxu0 0.0
  %1500 = vmatpush.msra.mxu0 0.0
  %1501 = vmatpush.msra.mxu0 0.0
  %1502 = vmatpush.msra.mxu0 %v124
  %1503 = vmatpush.msra.mxu0 %v123
  %1504 = vmatpush.msra.mxu0 %v122
  %1505 = vmatpush.msra.mxu0 %v121
  %1506 = vmatpush.msra.mxu0 %v120
  %1507 = vmatpush.msra.mxu0 %v119
  %1508 = vmatpush.msra.mxu0 %v118
  %1509 = vmatpush.msra.mxu0 %v117
  %1510 = vmatmul.f32.gmra.mxu0 %v1282
  %v1511 = vpop.f32.mrf.mxu0
  %v1512 = vadd.f32 0.0, %v1511
  %1513 = vmatmul.f32.gmra.mxu0 %v1285
  %v1514 = vpop.f32.mrf.mxu0
  %v1515 = vadd.f32 0.0, %v1514
  %1516 = vdwg.mxu0
  %1517 = vmatpush.msra.mxu0 0.0
  %1518 = vmatpush.msra.mxu0 0.0
  %1519 = vmatpush.msra.mxu0 0.0
  %1520 = vmatpush.msra.mxu0 0.0
  %1521 = vmatpush.msra.mxu0 0.0
  %1522 = vmatpush.msra.mxu0 0.0
  %1523 = vmatpush.msra.mxu0 0.0
  %1524 = vmatpush.msra.mxu0 0.0
  %1525 = vmatpush.msra.mxu0 %v132
  %1526 = vmatpush.msra.mxu0 %v131
  %1527 = vmatpush.msra.mxu0 %v130
  %1528 = vmatpush.msra.mxu0 %v129
  %1529 = vmatpush.msra.mxu0 %v128
  %1530 = vmatpush.msra.mxu0 %v127
  %1531 = vmatpush.msra.mxu0 %v126
  %1532 = vmatpush.msra.mxu0 %v125
  %1533 = vmatmul.f32.gmra.mxu0 %v1282
  %v1534 = vpop.f32.mrf.mxu0
  %v1535 = vadd.f32 0.0, %v1534
  %1536 = vmatmul.f32.gmra.mxu0 %v1285
  %v1537 = vpop.f32.mrf.mxu0
  %v1538 = vadd.f32 0.0, %v1537
  %1539 = vdwg.mxu0
  %1540 = vmatpush.msra.mxu0 0.0
  %1541 = vmatpush.msra.mxu0 0.0
  %1542 = vmatpush.msra.mxu0 0.0
  %1543 = vmatpush.msra.mxu0 0.0
  %1544 = vmatpush.msra.mxu0 0.0
  %1545 = vmatpush.msra.mxu0 0.0
  %1546 = vmatpush.msra.mxu0 0.0
  %1547 = vmatpush.msra.mxu0 0.0
  %1548 = vmatpush.msra.mxu0 %v140
  %1549 = vmatpush.msra.mxu0 %v139
  %1550 = vmatpush.msra.mxu0 %v138
  %1551 = vmatpush.msra.mxu0 %v137
  %1552 = vmatpush.msra.mxu0 %v136
  %1553 = vmatpush.msra.mxu0 %v135
  %1554 = vmatpush.msra.mxu0 %v134
  %1555 = vmatpush.msra.mxu0 %v133
  %1556 = vmatmul.f32.gmra.mxu0 %v1282
  %v1557 = vpop.f32.mrf.mxu0
  %v1558 = vadd.f32 0.0, %v1557
  %1559 = vmatmul.f32.gmra.mxu0 %v1285
  %v1560 = vpop.f32.mrf.mxu0
  %v1561 = vadd.f32 0.0, %v1560
  %1562 = vdwg.mxu0
  %v1564 = vsel %vm523, %v1305, 0
  %v1567 = vsel %vm523, %v1308, 0
  %v1570 = vsel %vm523, %v1397, 0
  %v1573 = vsel %vm523, %v1400, 0
  %1575 = vmatpush.xpose.msra.mxu0 0.0
  %1576 = vmatpush.xpose.msra.mxu0 0.0
  %1577 = vmatpush.xpose.msra.mxu0 0.0
  %1578 = vmatpush.xpose.msra.mxu0 0.0
  %1579 = vmatpush.xpose.msra.mxu0 0.0
  %1580 = vmatpush.xpose.msra.mxu0 0.0
  %1581 = vmatpush.xpose.msra.mxu0 0.0
  %1582 = vmatpush.xpose.msra.mxu0 0.0
  %1583 = vmatpush.xpose.msra.mxu0 0.0
  %1584 = vmatpush.xpose.msra.mxu0 0.0
  %1585 = vmatpush.xpose.msra.mxu0 0.0
  %1586 = vmatpush.xpose.msra.mxu0 0.0
  %1587 = vmatpush.xpose.msra.mxu0 0.0
  %1588 = vmatpush.xpose.msra.mxu0 0.0
  %1589 = vmatpush.xpose.msra.mxu0 %v1573
  %1590 = vmatpush.xpose.msra.mxu0 %v1570
  %1591 = vmatmul.f32.gmra.mxu0 %v1564
  %v1592 = vpop.f32.mrf.mxu0
  %v1593 = vadd.f32 0.0, %v1592
  %1594 = vmatmul.f32.gmra.mxu0 %v1567
  %v1595 = vpop.f32.mrf.mxu0
  %v1596 = vadd.f32 0.0, %v1595
  %1597 = vdwg.mxu0
  %v1599 = vsel %vm523, %v1328, 0
  %v1602 = vsel %vm523, %v1331, 0
  %v1605 = vsel %vm523, %v1420, 0
  %v1608 = vsel %vm523, %v1423, 0
  %1610 = vmatpush.xpose.msra.mxu0 0.0
  %1611 = vmatpush.xpose.msra.mxu0 0.0
  %1612 = vmatpush.xpose.msra.mxu0 0.0
  %1613 = vmatpush.xpose.msra.mxu0 0.0
  %1614 = vmatpush.xpose.msra.mxu0 0.0
  %1615 = vmatpush.xpose.msra.mxu0 0.0
  %1616 = vmatpush.xpose.msra.mxu0 0.0
  %1617 = vmatpush.xpose.msra.mxu0 0.0
  %1618 = vmatpush.xpose.msra.mxu0 0.0
  %1619 = vmatpush.xpose.msra.mxu0 0.0
  %1620 = vmatpush.xpose.msra.mxu0 0.0
  %1621 = vmatpush.xpose.msra.mxu0 0.0
  %1622 = vmatpush.xpose.msra.mxu0 0.0
  %1623 = vmatpush.xpose.msra.mxu0 0.0
  %1624 = vmatpush.xpose.msra.mxu0 %v1608
  %1625 = vmatpush.xpose.msra.mxu0 %v1605
  %1626 = vmatmul.f32.gmra.mxu0 %v1599
  %v1627 = vpop.f32.mrf.mxu0
  %v1628 = vadd.f32 0.0, %v1627
  %1629 = vmatmul.f32.gmra.mxu0 %v1602
  %v1630 = vpop.f32.mrf.mxu0
  %v1631 = vadd.f32 0.0, %v1630
  %1632 = vdwg.mxu0
  %v1634 = vsel %vm523, %v1351, 0
  %v1637 = vsel %vm523, %v1354, 0
  %v1640 = vsel %vm523, %v1443, 0
  %v1643 = vsel %vm523, %v1446, 0
  %1645 = vmatpush.xpose.msra.mxu0 0.0
  %1646 = vmatpush.xpose.msra.mxu0 0.0
  %1647 = vmatpush.xpose.msra.mxu0 0.0
  %1648 = vmatpush.xpose.msra.mxu0 0.0
  %1649 = vmatpush.xpose.msra.mxu0 0.0
  %1650 = vmatpush.xpose.msra.mxu0 0.0
  %1651 = vmatpush.xpose.msra.mxu0 0.0
  %1652 = vmatpush.xpose.msra.mxu0 0.0
  %1653 = vmatpush.xpose.msra.mxu0 0.0
  %1654 = vmatpush.xpose.msra.mxu0 0.0
  %1655 = vmatpush.xpose.msra.mxu0 0.0
  %1656 = vmatpush.xpose.msra.mxu0 0.0
  %1657 = vmatpush.xpose.msra.mxu0 0.0
  %1658 = vmatpush.xpose.msra.mxu0 0.0
  %1659 = vmatpush.xpose.msra.mxu0 %v1643
  %1660 = vmatpush.xpose.msra.mxu0 %v1640
  %1661 = vmatmul.f32.gmra.mxu0 %v1634
  %v1662 = vpop.f32.mrf.mxu0
  %v1663 = vadd.f32 0.0, %v1662
  %1664 = vmatmul.f32.gmra.mxu0 %v1637
  %v1665 = vpop.f32.mrf.mxu0
  %v1666 = vadd.f32 0.0, %v1665
  %1667 = vdwg.mxu0
  %v1669 = vsel %vm523, %v1374, 0
  %v1672 = vsel %vm523, %v1377, 0
  %v1675 = vsel %vm523, %v1466, 0
  %v1678 = vsel %vm523, %v1469, 0
  %1680 = vmatpush.xpose.msra.mxu0 0.0
  %1681 = vmatpush.xpose.msra.mxu0 0.0
  %1682 = vmatpush.xpose.msra.mxu0 0.0
  %1683 = vmatpush.xpose.msra.mxu0 0.0
  %1684 = vmatpush.xpose.msra.mxu0 0.0
  %1685 = vmatpush.xpose.msra.mxu0 0.0
  %1686 = vmatpush.xpose.msra.mxu0 0.0
  %1687 = vmatpush.xpose.msra.mxu0 0.0
  %1688 = vmatpush.xpose.msra.mxu0 0.0
  %1689 = vmatpush.xpose.msra.mxu0 0.0
  %1690 = vmatpush.xpose.msra.mxu0 0.0
  %1691 = vmatpush.xpose.msra.mxu0 0.0
  %1692 = vmatpush.xpose.msra.mxu0 0.0
  %1693 = vmatpush.xpose.msra.mxu0 0.0
  %1694 = vmatpush.xpose.msra.mxu0 %v1678
  %1695 = vmatpush.xpose.msra.mxu0 %v1675
  %1696 = vmatmul.f32.gmra.mxu0 %v1669
  %v1697 = vpop.f32.mrf.mxu0
  %v1698 = vadd.f32 0.0, %v1697
  %1699 = vmatmul.f32.gmra.mxu0 %v1672
  %v1700 = vpop.f32.mrf.mxu0
  %v1701 = vadd.f32 0.0, %v1700
  %1702 = vdwg.mxu0
  %v1703 = vmul.f32 %v1593, 0.25
  %v1704 = vmul.f32 %v1596, 0.25
  %v1705 = vmul.f32 %v1628, 0.25
  %v1706 = vmul.f32 %v1631, 0.25
  %v1707 = vmul.f32 %v1663, 0.25
  %v1708 = vmul.f32 %v1666, 0.25
  %v1709 = vmul.f32 %v1698, 0.25
  %v1710 = vmul.f32 %v1701, 0.25
  %v1711 = vsel %vm672, %v1703, -inf
  %1712 = vmax.xlane.f32.xlu0 %v1711
  %v1713 = vpop.xlane.xlu0 %1712
  %v1714 = vsel %vm676, %v1704, -inf
  %1715 = vmax.xlane.f32.xlu0 %v1714
  %v1716 = vpop.xlane.xlu0 %1715
  %v1717 = vsel %vm672, %v1705, -inf
  %1718 = vmax.xlane.f32.xlu0 %v1717
  %v1719 = vpop.xlane.xlu0 %1718
  %v1720 = vsel %vm676, %v1706, -inf
  %1721 = vmax.xlane.f32.xlu0 %v1720
  %v1722 = vpop.xlane.xlu0 %1721
  %v1723 = vsel %vm672, %v1707, -inf
  %1724 = vmax.xlane.f32.xlu0 %v1723
  %v1725 = vpop.xlane.xlu0 %1724
  %v1726 = vsel %vm676, %v1708, -inf
  %1727 = vmax.xlane.f32.xlu0 %v1726
  %v1728 = vpop.xlane.xlu0 %1727
  %v1729 = vsel %vm672, %v1709, -inf
  %1730 = vmax.xlane.f32.xlu0 %v1729
  %v1731 = vpop.xlane.xlu0 %1730
  %v1732 = vsel %vm676, %v1710, -inf
  %1733 = vmax.xlane.f32.xlu0 %v1732
  %v1734 = vpop.xlane.xlu0 %1733
  %v1735 = vsub.f32 %v1703, %v1713
  %v1736 = vsub.f32 %v1704, %v1716
  %v1737 = vsub.f32 %v1705, %v1719
  %v1738 = vsub.f32 %v1706, %v1722
  %v1739 = vsub.f32 %v1707, %v1725
  %v1740 = vsub.f32 %v1708, %v1728
  %v1741 = vsub.f32 %v1709, %v1731
  %v1742 = vsub.f32 %v1710, %v1734
  %v1743 = vmul.f32 %v1735, 1.442695
  %v1744 = vpow.pop %v1743
  %v1745 = vmul.f32 %v1736, 1.442695
  %v1746 = vpow.pop %v1745
  %v1747 = vmul.f32 %v1737, 1.442695
  %v1748 = vpow.pop %v1747
  %v1749 = vmul.f32 %v1738, 1.442695
  %v1750 = vpow.pop %v1749
  %v1751 = vmul.f32 %v1739, 1.442695
  %v1752 = vpow.pop %v1751
  %v1753 = vmul.f32 %v1740, 1.442695
  %v1754 = vpow.pop %v1753
  %v1755 = vmul.f32 %v1741, 1.442695
  %v1756 = vpow.pop %v1755
  %v1757 = vmul.f32 %v1742, 1.442695
  %v1758 = vpow.pop %v1757
  %v1759 = vsel %vm672, %v1744, 0.0
  %1760 = vadd.xlane.f32.xlu0 %v1759
  %v1761 = vpop.xlane.xlu0 %1760
  %v1762 = vsel %vm676, %v1746, 0.0
  %1763 = vadd.xlane.f32.xlu0 %v1762
  %v1764 = vpop.xlane.xlu0 %1763
  %v1765 = vsel %vm672, %v1748, 0.0
  %1766 = vadd.xlane.f32.xlu0 %v1765
  %v1767 = vpop.xlane.xlu0 %1766
  %v1768 = vsel %vm676, %v1750, 0.0
  %1769 = vadd.xlane.f32.xlu0 %v1768
  %v1770 = vpop.xlane.xlu0 %1769
  %v1771 = vsel %vm672, %v1752, 0.0
  %1772 = vadd.xlane.f32.xlu0 %v1771
  %v1773 = vpop.xlane.xlu0 %1772
  %v1774 = vsel %vm676, %v1754, 0.0
  %1775 = vadd.xlane.f32.xlu0 %v1774
  %v1776 = vpop.xlane.xlu0 %1775
  %v1777 = vsel %vm672, %v1756, 0.0
  %1778 = vadd.xlane.f32.xlu0 %v1777
  %v1779 = vpop.xlane.xlu0 %1778
  %v1780 = vsel %vm676, %v1758, 0.0
  %1781 = vadd.xlane.f32.xlu0 %v1780
  %v1782 = vpop.xlane.xlu0 %1781
  %v1783 = vrcp.pop %v1761
  %v1784 = vrcp.pop %v1764
  %v1785 = vrcp.pop %v1767
  %v1786 = vrcp.pop %v1770
  %v1787 = vrcp.pop %v1773
  %v1788 = vrcp.pop %v1776
  %v1789 = vrcp.pop %v1779
  %v1790 = vrcp.pop %v1782
  %v1791 = vmul.f32 %v1744, %v1783
  %v1792 = vmul.f32 %v1746, %v1784
  %v1793 = vmul.f32 %v1748, %v1785
  %v1794 = vmul.f32 %v1750, %v1786
  %v1795 = vmul.f32 %v1752, %v1787
  %v1796 = vmul.f32 %v1754, %v1788
  %v1797 = vmul.f32 %v1756, %v1789
  %v1798 = vmul.f32 %v1758, %v1790
  %v1800 = vsel %vm672, %v1791, 0
  %v1803 = vsel %vm672, %v1792, 0
  %v1806 = vsel %vm768, %v1492, 0
  %1808 = vmatpush.msra.mxu0 0.0
  %1809 = vmatpush.msra.mxu0 0.0
  %1810 = vmatpush.msra.mxu0 0.0
  %1811 = vmatpush.msra.mxu0 0.0
  %1812 = vmatpush.msra.mxu0 0.0
  %1813 = vmatpush.msra.mxu0 0.0
  %1814 = vmatpush.msra.mxu0 0.0
  %1815 = vmatpush.msra.mxu0 0.0
  %1816 = vmatpush.msra.mxu0 0.0
  %1817 = vmatpush.msra.mxu0 0.0
  %1818 = vmatpush.msra.mxu0 0.0
  %1819 = vmatpush.msra.mxu0 0.0
  %1820 = vmatpush.msra.mxu0 0.0
  %1821 = vmatpush.msra.mxu0 0.0
  %1822 = vmatpush.msra.mxu0 %v1806
  %1823 = vmatpush.msra.mxu0 %v1489
  %1824 = vmatmul.f32.gmra.mxu0 %v1800
  %v1825 = vpop.f32.mrf.mxu0
  %v1826 = vadd.f32 0.0, %v1825
  %1827 = vmatmul.f32.gmra.mxu0 %v1803
  %v1828 = vpop.f32.mrf.mxu0
  %v1829 = vadd.f32 0.0, %v1828
  %1830 = vdwg.mxu0
  %v1832 = vsel %vm672, %v1793, 0
  %v1835 = vsel %vm672, %v1794, 0
  %v1838 = vsel %vm768, %v1515, 0
  %1840 = vmatpush.msra.mxu0 0.0
  %1841 = vmatpush.msra.mxu0 0.0
  %1842 = vmatpush.msra.mxu0 0.0
  %1843 = vmatpush.msra.mxu0 0.0
  %1844 = vmatpush.msra.mxu0 0.0
  %1845 = vmatpush.msra.mxu0 0.0
  %1846 = vmatpush.msra.mxu0 0.0
  %1847 = vmatpush.msra.mxu0 0.0
  %1848 = vmatpush.msra.mxu0 0.0
  %1849 = vmatpush.msra.mxu0 0.0
  %1850 = vmatpush.msra.mxu0 0.0
  %1851 = vmatpush.msra.mxu0 0.0
  %1852 = vmatpush.msra.mxu0 0.0
  %1853 = vmatpush.msra.mxu0 0.0
  %1854 = vmatpush.msra.mxu0 %v1838
  %1855 = vmatpush.msra.mxu0 %v1512
  %1856 = vmatmul.f32.gmra.mxu0 %v1832
  %v1857 = vpop.f32.mrf.mxu0
  %v1858 = vadd.f32 0.0, %v1857
  %1859 = vmatmul.f32.gmra.mxu0 %v1835
  %v1860 = vpop.f32.mrf.mxu0
  %v1861 = vadd.f32 0.0, %v1860
  %1862 = vdwg.mxu0
  %v1864 = vsel %vm672, %v1795, 0
  %v1867 = vsel %vm672, %v1796, 0
  %v1870 = vsel %vm768, %v1538, 0
  %1872 = vmatpush.msra.mxu0 0.0
  %1873 = vmatpush.msra.mxu0 0.0
  %1874 = vmatpush.msra.mxu0 0.0
  %1875 = vmatpush.msra.mxu0 0.0
  %1876 = vmatpush.msra.mxu0 0.0
  %1877 = vmatpush.msra.mxu0 0.0
  %1878 = vmatpush.msra.mxu0 0.0
  %1879 = vmatpush.msra.mxu0 0.0
  %1880 = vmatpush.msra.mxu0 0.0
  %1881 = vmatpush.msra.mxu0 0.0
  %1882 = vmatpush.msra.mxu0 0.0
  %1883 = vmatpush.msra.mxu0 0.0
  %1884 = vmatpush.msra.mxu0 0.0
  %1885 = vmatpush.msra.mxu0 0.0
  %1886 = vmatpush.msra.mxu0 %v1870
  %1887 = vmatpush.msra.mxu0 %v1535
  %1888 = vmatmul.f32.gmra.mxu0 %v1864
  %v1889 = vpop.f32.mrf.mxu0
  %v1890 = vadd.f32 0.0, %v1889
  %1891 = vmatmul.f32.gmra.mxu0 %v1867
  %v1892 = vpop.f32.mrf.mxu0
  %v1893 = vadd.f32 0.0, %v1892
  %1894 = vdwg.mxu0
  %v1896 = vsel %vm672, %v1797, 0
  %v1899 = vsel %vm672, %v1798, 0
  %v1902 = vsel %vm768, %v1561, 0
  %1904 = vmatpush.msra.mxu0 0.0
  %1905 = vmatpush.msra.mxu0 0.0
  %1906 = vmatpush.msra.mxu0 0.0
  %1907 = vmatpush.msra.mxu0 0.0
  %1908 = vmatpush.msra.mxu0 0.0
  %1909 = vmatpush.msra.mxu0 0.0
  %1910 = vmatpush.msra.mxu0 0.0
  %1911 = vmatpush.msra.mxu0 0.0
  %1912 = vmatpush.msra.mxu0 0.0
  %1913 = vmatpush.msra.mxu0 0.0
  %1914 = vmatpush.msra.mxu0 0.0
  %1915 = vmatpush.msra.mxu0 0.0
  %1916 = vmatpush.msra.mxu0 0.0
  %1917 = vmatpush.msra.mxu0 0.0
  %1918 = vmatpush.msra.mxu0 %v1902
  %1919 = vmatpush.msra.mxu0 %v1558
  %1920 = vmatmul.f32.gmra.mxu0 %v1896
  %v1921 = vpop.f32.mrf.mxu0
  %v1922 = vadd.f32 0.0, %v1921
  %1923 = vmatmul.f32.gmra.mxu0 %v1899
  %v1924 = vpop.f32.mrf.mxu0
  %v1925 = vadd.f32 0.0, %v1924
  %1926 = vdwg.mxu0
  %v1928 = vsel %vm523, %v1826, 0
  %v1931 = vsel %vm523, %v1829, 0
  %1933 = vmatpush.msra.mxu0 0.0
  %1934 = vmatpush.msra.mxu0 0.0
  %1935 = vmatpush.msra.mxu0 0.0
  %1936 = vmatpush.msra.mxu0 0.0
  %1937 = vmatpush.msra.mxu0 0.0
  %1938 = vmatpush.msra.mxu0 0.0
  %1939 = vmatpush.msra.mxu0 0.0
  %1940 = vmatpush.msra.mxu0 0.0
  %1941 = vmatpush.msra.mxu0 0.0
  %1942 = vmatpush.msra.mxu0 0.0
  %1943 = vmatpush.msra.mxu0 0.0
  %1944 = vmatpush.msra.mxu0 0.0
  %1945 = vmatpush.msra.mxu0 0.0
  %1946 = vmatpush.msra.mxu0 0.0
  %1947 = vmatpush.msra.mxu0 %v142
  %1948 = vmatpush.msra.mxu0 %v141
  %1949 = vmatmul.f32.gmra.mxu0 %v1928
  %v1950 = vpop.f32.mrf.mxu0
  %v1951 = vadd.f32 0.0, %v1950
  %1952 = vmatmul.f32.gmra.mxu0 %v1931
  %v1953 = vpop.f32.mrf.mxu0
  %v1954 = vadd.f32 0.0, %v1953
  %1955 = vdwg.mxu0
  %v1957 = vsel %vm523, %v1858, 0
  %v1960 = vsel %vm523, %v1861, 0
  %1962 = vmatpush.msra.mxu0 0.0
  %1963 = vmatpush.msra.mxu0 0.0
  %1964 = vmatpush.msra.mxu0 0.0
  %1965 = vmatpush.msra.mxu0 0.0
  %1966 = vmatpush.msra.mxu0 0.0
  %1967 = vmatpush.msra.mxu0 0.0
  %1968 = vmatpush.msra.mxu0 0.0
  %1969 = vmatpush.msra.mxu0 0.0
  %1970 = vmatpush.msra.mxu0 0.0
  %1971 = vmatpush.msra.mxu0 0.0
  %1972 = vmatpush.msra.mxu0 0.0
  %1973 = vmatpush.msra.mxu0 0.0
  %1974 = vmatpush.msra.mxu0 0.0
  %1975 = vmatpush.msra.mxu0 0.0
  %1976 = vmatpush.msra.mxu0 %v144
  %1977 = vmatpush.msra.mxu0 %v143
  %1978 = vmatmul.f32.gmra.mxu0 %v1957
  %v1979 = vpop.f32.mrf.mxu0
  %v1980 = vadd.f32 0.0, %v1979
  %1981 = vmatmul.f32.gmra.mxu0 %v1960
  %v1982 = vpop.f32.mrf.mxu0
  %v1983 = vadd.f32 0.0, %v1982
  %1984 = vdwg.mxu0
  %v1986 = vsel %vm523, %v1890, 0
  %v1989 = vsel %vm523, %v1893, 0
  %1991 = vmatpush.msra.mxu0 0.0
  %1992 = vmatpush.msra.mxu0 0.0
  %1993 = vmatpush.msra.mxu0 0.0
  %1994 = vmatpush.msra.mxu0 0.0
  %1995 = vmatpush.msra.mxu0 0.0
  %1996 = vmatpush.msra.mxu0 0.0
  %1997 = vmatpush.msra.mxu0 0.0
  %1998 = vmatpush.msra.mxu0 0.0
  %1999 = vmatpush.msra.mxu0 0.0
  %2000 = vmatpush.msra.mxu0 0.0
  %2001 = vmatpush.msra.mxu0 0.0
  %2002 = vmatpush.msra.mxu0 0.0
  %2003 = vmatpush.msra.mxu0 0.0
  %2004 = vmatpush.msra.mxu0 0.0
  %2005 = vmatpush.msra.mxu0 %v146
  %2006 = vmatpush.msra.mxu0 %v145
  %2007 = vmatmul.f32.gmra.mxu0 %v1986
  %v2008 = vpop.f32.mrf.mxu0
  %v2009 = vadd.f32 0.0, %v2008
  %2010 = vmatmul.f32.gmra.mxu0 %v1989
  %v2011 = vpop.f32.mrf.mxu0
  %v2012 = vadd.f32 0.0, %v2011
  %2013 = vdwg.mxu0
  %v2015 = vsel %vm523, %v1922, 0
  %v2018 = vsel %vm523, %v1925, 0
  %2020 = vmatpush.msra.mxu0 0.0
  %2021 = vmatpush.msra.mxu0 0.0
  %2022 = vmatpush.msra.mxu0 0.0
  %2023 = vmatpush.msra.mxu0 0.0
  %2024 = vmatpush.msra.mxu0 0.0
  %2025 = vmatpush.msra.mxu0 0.0
  %2026 = vmatpush.msra.mxu0 0.0
  %2027 = vmatpush.msra.mxu0 0.0
  %2028 = vmatpush.msra.mxu0 0.0
  %2029 = vmatpush.msra.mxu0 0.0
  %2030 = vmatpush.msra.mxu0 0.0
  %2031 = vmatpush.msra.mxu0 0.0
  %2032 = vmatpush.msra.mxu0 0.0
  %2033 = vmatpush.msra.mxu0 0.0
  %2034 = vmatpush.msra.mxu0 %v148
  %2035 = vmatpush.msra.mxu0 %v147
  %2036 = vmatmul.f32.gmra.mxu0 %v2015
  %v2037 = vpop.f32.mrf.mxu0
  %v2038 = vadd.f32 0.0, %v2037
  %2039 = vmatmul.f32.gmra.mxu0 %v2018
  %v2040 = vpop.f32.mrf.mxu0
  %v2041 = vadd.f32 0.0, %v2040
  %2042 = vdwg.mxu0
  %v2043 = vsel %vm178, %v1951, 0.0
  %v2044 = vsel %vm178, %v1980, 0.0
  %v2045 = vadd.f32 %v2043, %v2044
  %v2046 = vsel %vm178, %v2009, 0.0
  %v2047 = vadd.f32 %v2045, %v2046
  %v2048 = vsel %vm178, %v2038, 0.0
  %v2049 = vadd.f32 %v2047, %v2048
  %v2050 = vsel %vm182, %v1954, 0.0
  %v2051 = vsel %vm182, %v1983, 0.0
  %v2052 = vadd.f32 %v2050, %v2051
  %v2053 = vsel %vm182, %v2012, 0.0
  %v2054 = vadd.f32 %v2052, %v2053
  %v2055 = vsel %vm182, %v2041, 0.0
  %v2056 = vadd.f32 %v2054, %v2055
  %v2057 = vadd.f32 %v1231, %v2049
  %v2058 = vadd.f32 %v1232, %v2056
  %v2059 = vadd.f32 %v2057, %v1024
  %v2060 = vadd.f32 %v2058, %v1024
  %v2061 = vsel %vm178, %v2059, 0.0
  %2062 = vadd.xlane.f32.xlu0 %v2061
  %v2063 = vpop.xlane.xlu0 %2062
  %v2064 = vsel %vm182, %v2060, 0.0
  %2065 = vadd.xlane.f32.xlu0 %v2064
  %v2066 = vpop.xlane.xlu0 %2065
  %v2067 = vmul.f32 %v2063, %v192
  %v2068 = vmul.f32 %v2066, %v192
  %v2069 = vsub.f32 %v2059, %v2067
  %v2070 = vsub.f32 %v2060, %v2068
  %v2071 = vmul.f32 %v2069, %v2069
  %v2072 = vmul.f32 %v2070, %v2070
  %v2073 = vsel %vm178, %v2071, 0.0
  %2074 = vadd.xlane.f32.xlu0 %v2073
  %v2075 = vpop.xlane.xlu0 %2074
  %v2076 = vsel %vm182, %v2072, 0.0
  %2077 = vadd.xlane.f32.xlu0 %v2076
  %v2078 = vpop.xlane.xlu0 %2077
  %v2079 = vmul.f32 %v2075, %v192
  %v2080 = vmul.f32 %v2078, %v192
  %v2081 = vadd.f32 %v2079, 1e-05
  %v2082 = vadd.f32 %v2080, 1e-05
  %v2083 = vrsqrt.pop %v2081
  %v2084 = vmul.f32 %v2083, %v2081
  %v2085 = vmul.f32 %v2084, %v2083
  %v2086 = vmul.f32 0.5, %v2085
  %v2087 = vsub.f32 1.5, %v2086
  %v2088 = vmul.f32 %v2083, %v2087
  %vm2089 = vweird.f32 %v2081
  %vm2090 = vweird.f32 %v2083
  %vm2091 = vmor %vm2089, %vm2090
  %v2092 = vsel %vm2091, %v2083, %v2088
  %v2093 = vrsqrt.pop %v2082
  %v2094 = vmul.f32 %v2093, %v2082
  %v2095 = vmul.f32 %v2094, %v2093
  %v2096 = vmul.f32 0.5, %v2095
  %v2097 = vsub.f32 1.5, %v2096
  %v2098 = vmul.f32 %v2093, %v2097
  %vm2099 = vweird.f32 %v2082
  %vm2100 = vweird.f32 %v2093
  %vm2101 = vmor %vm2099, %vm2100
  %v2102 = vsel %vm2101, %v2093, %v2098
  %v2103 = vmul.f32 %v2069, %v2092
  %v2104 = vmul.f32 %v2070, %v2102
  %v2105 = vmul.f32 %v2103, %v1073
  %v2106 = vmul.f32 %v2104, %v1073
  %v2107 = vadd.f32 %v2105, %v1078
  %v2108 = vadd.f32 %v2106, %v1078
  %v2110 = vsel %vm178, %v2107, 0
  %v2113 = vsel %vm178, %v2108, 0
  %2115 = vmatpush.msra.mxu0 0.0
  %2116 = vmatpush.msra.mxu0 0.0
  %2117 = vmatpush.msra.mxu0 0.0
  %2118 = vmatpush.msra.mxu0 0.0
  %2119 = vmatpush.msra.mxu0 0.0
  %2120 = vmatpush.msra.mxu0 0.0
  %2121 = vmatpush.msra.mxu0 0.0
  %2122 = vmatpush.msra.mxu0 0.0
  %2123 = vmatpush.msra.mxu0 %v157
  %2124 = vmatpush.msra.mxu0 %v156
  %2125 = vmatpush.msra.mxu0 %v155
  %2126 = vmatpush.msra.mxu0 %v154
  %2127 = vmatpush.msra.mxu0 %v153
  %2128 = vmatpush.msra.mxu0 %v152
  %2129 = vmatpush.msra.mxu0 %v151
  %2130 = vmatpush.msra.mxu0 %v150
  %2131 = vmatmul.f32.gmra.mxu0 %v2110
  %v2132 = vpop.f32.mrf.mxu0
  %v2133 = vadd.f32 %v1083, %v2132
  %2134 = vmatmul.f32.gmra.mxu0 %v2113
  %v2135 = vpop.f32.mrf.mxu0
  %v2136 = vadd.f32 %v1083, %v2135
  %2137 = vdwg.mxu0
  %v2138 = vmul.f32 %v2133, 0.5
  %v2139 = vmul.f32 %v2136, 0.5
  %v2140 = vmul.f32 %v2133, 0.70710677
  %v2141 = vmul.f32 %v2136, 0.70710677
  %v2142 = vmax.f32 %v2140, -4.0
  %v2143 = vmax.f32 %v2141, -4.0
  %v2144 = vmin.f32 %v2142, 4.0
  %v2145 = vmin.f32 %v2143, 4.0
  %v2146 = vmul.f32 %v2144, %v2144
  %v2147 = vmul.f32 %v2145, %v2145
  %v2148 = vmul.f32 %v2146, -2.7261424e-10
  %v2149 = vmul.f32 %v2147, -2.7261424e-10
  %v2150 = vadd.f32 %v2148, 2.7706815e-08
  %v2151 = vadd.f32 %v2149, 2.7706815e-08
  %v2152 = vmul.f32 %v2146, %v2150
  %v2153 = vmul.f32 %v2147, %v2151
  %v2154 = vadd.f32 %v2152, -2.101024e-06
  %v2155 = vadd.f32 %v2153, -2.101024e-06
  %v2156 = vmul.f32 %v2146, %v2154
  %v2157 = vmul.f32 %v2147, %v2155
  %v2158 = vadd.f32 %v2156, -5.6925062e-05
  %v2159 = vadd.f32 %v2157, -5.6925062e-05
  %v2160 = vmul.f32 %v2146, %v2158
  %v2161 = vmul.f32 %v2147, %v2159
  %v2162 = vadd.f32 %v2160, -0.00073499064
  %v2163 = vadd.f32 %v2161, -0.00073499064
  %v2164 = vmul.f32 %v2146, %v2162
  %v2165 = vmul.f32 %v2147, %v2163
  %v2166 = vadd.f32 %v2164, -0.0029546
  %v2167 = vadd.f32 %v2165, -0.0029546
  %v2168 = vmul.f32 %v2146, %v2166
  %v2169 = vmul.f32 %v2147, %v2167
  %v2170 = vadd.f32 %v2168, -0.016096033
  %v2171 = vadd.f32 %v2169, -0.016096033
  %v2172 = vmul.f32 %v2144, %v2170
  %v2173 = vmul.f32 %v2145, %v2171
  %v2174 = vmul.f32 %v2146, -1.45660715e-05
  %v2175 = vmul.f32 %v2147, -1.45660715e-05
  %v2176 = vadd.f32 %v2174, -0.00021337405
  %v2177 = vadd.f32 %v2175, -0.00021337405
  %v2178 = vmul.f32 %v2146, %v2176
  %v2179 = vmul.f32 %v2147, %v2177
  %v2180 = vadd.f32 %v2178, -0.001682827
  %v2181 = vadd.f32 %v2179, -0.001682827
  %v2182 = vmul.f32 %v2146, %v2180
  %v2183 = vmul.f32 %v2147, %v2181
  %v2184 = vadd.f32 %v2182, -0.0073733293
  %v2185 = vadd.f32 %v2183, -0.0073733293
  %v2186 = vmul.f32 %v2146, %v2184
  %v2187 = vmul.f32 %v2147, %v2185
  %v2188 = vadd.f32 %v2186, -0.014264739
  %v2189 = vadd.f32 %v2187, -0.014264739
  %v2190 = vrcp.pop %v2188
  %v2191 = vmul.f32 %v2188, %v2190
  %v2192 = vsub.f32 1.0, %v2191
  %v2193 = vmul.f32 %v2190, %v2192
  %v2194 = vadd.f32 %v2190, %v2193
  %vm2195 = vweird.f32 %v2188
  %vm2196 = vweird.f32 %v2190
  %vm2197 = vmor %vm2195, %vm2196
  %v2198 = vsel %vm2197, %v2190, %v2194
  %v2199 = vand.u32 2147483647, %v2188
  %vm2200 = vcmp.eq.f32.partialorder %v2199, 8.507059e+37
  %v2201 = vand.u32 %v2188, 2147483648
  %v2202 = vor.u32 1.1754944e-38, %v2201
  %v2203 = vsel %vm2200, %v2202, %v2198
  %v2204 = vmul.f32 %v2172, %v2203
  %v2205 = vrcp.pop %v2189
  %v2206 = vmul.f32 %v2189, %v2205
  %v2207 = vsub.f32 1.0, %v2206
  %v2208 = vmul.f32 %v2205, %v2207
  %v2209 = vadd.f32 %v2205, %v2208
  %vm2210 = vweird.f32 %v2189
  %vm2211 = vweird.f32 %v2205
  %vm2212 = vmor %vm2210, %vm2211
  %v2213 = vsel %vm2212, %v2205, %v2209
  %v2214 = vand.u32 2147483647, %v2189
  %vm2215 = vcmp.eq.f32.partialorder %v2214, 8.507059e+37
  %v2216 = vand.u32 %v2189, 2147483648
  %v2217 = vor.u32 1.1754944e-38, %v2216
  %v2218 = vsel %vm2215, %v2217, %v2213
  %v2219 = vmul.f32 %v2173, %v2218
  %v2220 = vadd.f32 %v2204, 1.0
  %v2221 = vadd.f32 %v2219, 1.0
  %v2222 = vmul.f32 %v2138, %v2220
  %v2223 = vmul.f32 %v2139, %v2221
  %2224 = vmatpush.msra.mxu0 %v174
  %2225 = vmatpush.msra.mxu0 %v173
  %2226 = vmatpush.msra.mxu0 %v172
  %2227 = vmatpush.msra.mxu0 %v171
  %2228 = vmatpush.msra.mxu0 %v170
  %2229 = vmatpush.msra.mxu0 %v169
  %2230 = vmatpush.msra.mxu0 %v168
  %2231 = vmatpush.msra.mxu0 %v167
  %2232 = vmatpush.msra.mxu0 %v166
  %2233 = vmatpush.msra.mxu0 %v165
  %2234 = vmatpush.msra.mxu0 %v164
  %2235 = vmatpush.msra.mxu0 %v163
  %2236 = vmatpush.msra.mxu0 %v162
  %2237 = vmatpush.msra.mxu0 %v161
  %2238 = vmatpush.msra.mxu0 %v160
  %2239 = vmatpush.msra.mxu0 %v159
  %2240 = vmatmul.f32.gmra.mxu0 %v2222
  %v2241 = vpop.f32.mrf.mxu0
  %v2242 = vadd.f32 %v1201, %v2241
  %2243 = vmatmul.f32.gmra.mxu0 %v2223
  %v2244 = vpop.f32.mrf.mxu0
  %v2245 = vadd.f32 %v1201, %v2244
  %2246 = vdwg.mxu0
  %v2247 = vadd.f32 %v2059, %v2242
  %v2248 = vadd.f32 %v2060, %v2245
  %s2249 = scalar_lea.vmem %s12, 16
  %2250 = vst.msk [vmem:[%s2249] sm:$0xff] %vm178, %v2247
  %2251 = vst.msk [vmem:[%s2249 + $0x8] sm:$0x1] %vm182, %v2248
  // Predicated region
  $region50: #{vit3d_forward.8} parent=0 // pred_check
    _
  $region51: #{vit3d_forward.8} parent=0 // pred_check_branch
    %2253 = sbr.rel (0) target = $region53
  $region52: #{vit3d_forward.8} parent=0 // pred_region
    _
  $region53: #{vit3d_forward.8} parent=0 // pred_fallthru
    _
  // Predicated region
  $region54: #{vit3d_forward.8} parent=0 // pred_check
    _
  $region55: #{vit3d_forward.8} parent=0 // pred_check_branch
    %2255 = sbr.rel (0) target = $region57
  $region56: #{vit3d_forward.8} parent=0 // pred_region
    _
  $region57: #{vit3d_forward.8} parent=0 // pred_fallthru
    _

// kernel: vit3d_forward.13
$region0: #{vit3d_forward.13}
  #allocation0 [shape = 'u32[]', space=smem, size = 0x4, offset = 0x4, fixed_abs, tag = 'smem constant byte address 0x4 - core index']
  #allocation1 [shape = 'u32[72,128]{1,0:T(1,128)}', space=vmem, size = 0x9000, scoped, tag = 'internal scratch']
  %s0 = inlined_call_operand.vmem [shape: f32[16,64], index: 0, kind: input, shape index: {}]
  %s1 = inlined_call_operand.vmem [shape: f32[64,192], index: 1, kind: input, shape index: {}]
  %s2 = inlined_call_operand.vmem [shape: f32[1,192], index: 2, kind: input, shape index: {}]
  %s3 = inlined_call_operand.vmem [shape: f32[16,192], index: 3, kind: output, shape index: {}]
  %s4 = sld [smem:[#allocation0]]
  $region22: #{vit3d_forward.13} parent=0
    _
  %s6 = ssub.s32 1, %s4
  %s7 = scalar_select 0, %s6, %s4
  // Predicated region
  $region2: #{vit3d_forward.13} parent=0 // pred_check
    _
  $region3: #{vit3d_forward.13} parent=0 // pred_check_branch
    %9 = sbr.rel (0) target = $region5
  $region4: #{vit3d_forward.13} parent=0 // pred_region
    _
  $region5: #{vit3d_forward.13} parent=0 // pred_fallthru
    _
  // Predicated region
  $region6: #{vit3d_forward.13} parent=0 // pred_check
    _
  $region7: #{vit3d_forward.13} parent=0 // pred_check_branch
    %11 = sbr.rel (0) target = $region9
  $region8: #{vit3d_forward.13} parent=0 // pred_region
    _
  $region9: #{vit3d_forward.13} parent=0 // pred_fallthru
    _
  // Predicated region
  $region10: #{vit3d_forward.13} parent=0 // pred_check
    _
  $region11: #{vit3d_forward.13} parent=0 // pred_check_branch
    %13 = sbr.rel (0) target = $region13
  $region12: #{vit3d_forward.13} parent=0 // pred_region
    _
  $region13: #{vit3d_forward.13} parent=0 // pred_fallthru
    _
  %v14 = vld [vmem:[%s0] sm:$0xff]
  %v15 = vld [vmem:[%s0 + $0x8] sm:$0xff]
  %v16 = vld [vmem:[%s1] sm:$0xff]
  %v17 = vld [vmem:[%s1 + $0x8] sm:$0xff]
  %v18 = vld [vmem:[%s1 + $0x10] sm:$0xff]
  %v19 = vld [vmem:[%s1 + $0x18] sm:$0xff]
  %v20 = vld [vmem:[%s1 + $0x20] sm:$0xff]
  %v21 = vld [vmem:[%s1 + $0x28] sm:$0xff]
  %v22 = vld [vmem:[%s1 + $0x30] sm:$0xff]
  %v23 = vld [vmem:[%s1 + $0x38] sm:$0xff]
  %v24 = vld [vmem:[%s1 + $0x40] sm:$0xff]
  %v25 = vld [vmem:[%s1 + $0x48] sm:$0xff]
  %v26 = vld [vmem:[%s1 + $0x50] sm:$0xff]
  %v27 = vld [vmem:[%s1 + $0x58] sm:$0xff]
  %v28 = vld [vmem:[%s1 + $0x60] sm:$0xff]
  %v29 = vld [vmem:[%s1 + $0x68] sm:$0xff]
  %v30 = vld [vmem:[%s1 + $0x70] sm:$0xff]
  %v31 = vld [vmem:[%s1 + $0x78] sm:$0xff]
  %v32 = vld [vmem:[%s2] sm:$0x3]
  %v34 = vperm.slane %v32, 0
  %v35 = vperm.slane %v32, 1
  %vm38 = vcmask 523264
  %v40 = vsel %vm38, %v14, 0
  %v43 = vsel %vm38, %v15, 0
  %45 = vmatpush.msra.mxu0 0.0
  %46 = vmatpush.msra.mxu0 0.0
  %47 = vmatpush.msra.mxu0 0.0
  %48 = vmatpush.msra.mxu0 0.0
  %49 = vmatpush.msra.mxu0 0.0
  %50 = vmatpush.msra.mxu0 0.0
  %51 = vmatpush.msra.mxu0 0.0
  %52 = vmatpush.msra.mxu0 0.0
  %53 = vmatpush.msra.mxu0 %v30
  %54 = vmatpush.msra.mxu0 %v28
  %55 = vmatpush.msra.mxu0 %v26
  %56 = vmatpush.msra.mxu0 %v24
  %57 = vmatpush.msra.mxu0 %v22
  %58 = vmatpush.msra.mxu0 %v20
  %59 = vmatpush.msra.mxu0 %v18
  %60 = vmatpush.msra.mxu0 %v16
  %61 = vmatmul.f32.gmra.mxu0 %v40
  %v62 = vpop.f32.mrf.mxu0
  %v63 = vadd.f32 %v34, %v62
  %64 = vmatmul.f32.gmra.mxu0 %v43
  %v65 = vpop.f32.mrf.mxu0
  %v66 = vadd.f32 %v34, %v65
  %67 = vdwg.mxu0
  %68 = vmatpush.msra.mxu0 0.0
  %69 = vmatpush.msra.mxu0 0.0
  %70 = vmatpush.msra.mxu0 0.0
  %71 = vmatpush.msra.mxu0 0.0
  %72 = vmatpush.msra.mxu0 0.0
  %73 = vmatpush.msra.mxu0 0.0
  %74 = vmatpush.msra.mxu0 0.0
  %75 = vmatpush.msra.mxu0 0.0
  %76 = vmatpush.msra.mxu0 %v31
  %77 = vmatpush.msra.mxu0 %v29
  %78 = vmatpush.msra.mxu0 %v27
  %79 = vmatpush.msra.mxu0 %v25
  %80 = vmatpush.msra.mxu0 %v23
  %81 = vmatpush.msra.mxu0 %v21
  %82 = vmatpush.msra.mxu0 %v19
  %83 = vmatpush.msra.mxu0 %v17
  %84 = vmatmul.f32.gmra.mxu0 %v40
  %v85 = vpop.f32.mrf.mxu0
  %v86 = vadd.f32 %v35, %v85
  %87 = vmatmul.f32.gmra.mxu0 %v43
  %v88 = vpop.f32.mrf.mxu0
  %v89 = vadd.f32 %v35, %v88
  %90 = vdwg.mxu0
  %91 = vst [vmem:[%s3] sm:$0xff] %v63
  %92 = vst.msk [vmem:[%s3 + $0x8] sm:$0xff] %vm38, %v86
  %93 = vst [vmem:[%s3 + $0x10] sm:$0xff] %v66
  %94 = vst.msk [vmem:[%s3 + $0x18] sm:$0xff] %vm38, %v89
  // Predicated region
  $region14: #{vit3d_forward.13} parent=0 // pred_check
    _
  $region15: #{vit3d_forward.13} parent=0 // pred_check_branch
    %96 = sbr.rel (0) target = $region17
  $region16: #{vit3d_forward.13} parent=0 // pred_region
    _
  $region17: #{vit3d_forward.13} parent=0 // pred_fallthru
    _
  // Predicated region
  $region18: #{vit3d_forward.13} parent=0 // pred_check
    _
  $region19: #{vit3d_forward.13} parent=0 // pred_check_branch
    %98 = sbr.rel (0) target = $region21
  $region20: #{vit3d_forward.13} parent=0 // pred_region
    _
  $region21: #{vit3d_forward.13} parent=0 // pred_fallthru
    _

</llo_original>
